<compile_context>
chip_gen: v7x
topology: tpu7x:2x2x1
jax: 0.10.0
libtpu: 0.0.40
codegen_flags: <defaults>
</compile_context>

<pallas_src>
import functools

import jax
import jax.numpy as jnp
from jax.experimental import pallas as pl
from jax.experimental.pallas import tpu as pltpu


def lightgcn_kernel(adj_ref, x0_ref, out_ref, x_cur, *, num_layers):
    """One grid step handles one (N, td) column slab of the embedding table.

    adj_ref : (N, N)  bf16 normalized adjacency, VMEM resident (constant block)
    x0_ref  : (N, td) bf16 layer-0 embeddings (this column slab)
    out_ref : (N, td) f32 output slab -- also used as the layer-sum accumulator
    x_cur   : (N, td) bf16 VMEM scratch, current-layer activations (MXU input)
    """
    x0 = x0_ref[...]
    out_ref[...] = x0.astype(jnp.float32)   # accumulator init (x_out = x)
    x_cur[...] = x0
    # num_layers is a small static int -> unrolled Python loop of MXU matmuls.
    for _ in range(num_layers):
        nxt = jnp.dot(adj_ref[...], x_cur[...],
                      preferred_element_type=jnp.float32)
        out_ref[...] = out_ref[...] + nxt
        x_cur[...] = nxt.astype(jnp.bfloat16)
    out_ref[...] = out_ref[...] * (1.0 / (1.0 + num_layers))


def _choose_td(D):
    """MXU-width-aware column-slab size.

    Prefer 256 (fills the 256-wide MXU on v6e/v7x) but only if >= 2 slabs
    remain so the 'parallel' grid axis can still shard across v7x's two
    TensorCores; otherwise 128 (v5e MXU width / minimum lane tile).
    """
    if D % 256 == 0 and D // 256 >= 2:
        return 256
    if D % 128 == 0:
        return 128
    return D  # tiny D: single full-width block


def _vmem_limit_bytes(N, td, adj_buffers):
    adj = adj_buffers * N * N * 2        # bf16 adjacency
    x0 = 2 * N * td * 2                  # bf16 slab, double-buffered
    out = 2 * N * td * 4                 # f32 slab, double-buffered
    scratch = N * td * 2                 # bf16 x_cur
    budget = adj + x0 + out + scratch + (4 << 20)   # + headroom
    return int(min(budget, 100 << 20))


def _build_forward(N, D, td, num_layers, out_dtype, *, single_buffer_adj):
    if single_buffer_adj:
        # Adjacency block never changes across grid steps -> single buffer.
        adj_spec = pl.BlockSpec((N, N), lambda j: (0, 0),
                                pipeline_mode=pl.Buffered(1))
        adj_bufs = 1
    else:
        adj_spec = pl.BlockSpec((N, N), lambda j: (0, 0))
        adj_bufs = 2

    kernel = functools.partial(lightgcn_kernel, num_layers=num_layers)
    cost = pl.CostEstimate(
        flops=int(2 * num_layers * N * N * D),
        transcendentals=0,
        bytes_accessed=int(N * N * 2 + N * D * 2 + N * D * 4),
    )
    return pl.pallas_call(
        kernel,
        out_shape=jax.ShapeDtypeStruct((N, D), out_dtype),
        grid_spec=pltpu.PrefetchScalarGridSpec(
            num_scalar_prefetch=0,
            grid=(D // td,),
            in_specs=[
                adj_spec,                                   # adjacency, reused
                pl.BlockSpec((N, td), lambda j: (0, j)),    # embedding slab
            ],
            out_specs=pl.BlockSpec((N, td), lambda j: (0, j)),
            scratch_shapes=[
                pltpu.VMEM((N, td), jnp.bfloat16),          # x_cur
            ],
        ),
        compiler_params=pltpu.CompilerParams(
            dimension_semantics=("parallel",),
            vmem_limit_bytes=_vmem_limit_bytes(N, td, adj_bufs),
        ),
        cost_estimate=cost,
    )


def lightgcn_forward(adj_bf16, x0_bf16, num_layers, *, td=None):
    """Runs the LightGCN propagation; returns the full (N, D) averaged table."""
    N, D = x0_bf16.shape
    if td is None:
        td = _choose_td(D)
    assert D % td == 0, "latent dim must tile by td"
    try:
        call = _build_forward(N, D, td, num_layers, jnp.float32,
                              single_buffer_adj=True)
        out = call(adj_bf16, x0_bf16)
        return jax.block_until_ready(out)
    except Exception:
        # Fallback if this JAX build rejects pipeline_mode=pl.Buffered(1).
        call = _build_forward(N, D, td, num_layers, jnp.float32,
                              single_buffer_adj=False)
        out = call(adj_bf16, x0_bf16)
        return jax.block_until_ready(out)


def build_normalized_adj(train_user, train_item, n_user, m_item):
    """Dense D^{-1/2} A D^{-1/2} for the bipartite user-item graph (float32).

    Matches LGConv's gcn_norm(add_self_loops=False) applied to the symmetric
    edge_index built in LightGCN.__init__.  Repeated (user, item) pairs are
    accumulated (.add), which is exactly what sum-aggregation over a repeated
    edge_index does in the PyTorch module.
    """
    num_nodes = n_user + m_item
    src = jnp.concatenate([train_user, train_item + n_user])
    dst = jnp.concatenate([train_item + n_user, train_user])
    adj = jnp.zeros((num_nodes, num_nodes), jnp.float32)
    adj = adj.at[dst, src].add(1.0)  # row = target node, col = source node
    deg = adj.sum(axis=1)
    d_inv_sqrt = jnp.where(deg > 0.0, 1.0 / jnp.sqrt(jnp.maximum(deg, 1e-12)), 0.0)
    return d_inv_sqrt[:, None] * adj * d_inv_sqrt[None, :]


def lightgcn_user_item(adj_norm_f32, all_embedding, n_user, num_layers):
    """Equivalent of LightGCN.forward: returns (user_out, item_out)."""
    adj_bf16 = adj_norm_f32.astype(jnp.bfloat16)
    x0_bf16 = all_embedding.astype(jnp.bfloat16)
    x_out = lightgcn_forward(adj_bf16, x0_bf16, num_layers)
    return x_out[:n_user], x_out[n_user:]


def _reference_forward_f32(adj_norm, x0, num_layers):
    x = x0.astype(jnp.float32)
    x_out = x
    for _ in range(num_layers):
        x = adj_norm @ x
        x_out = x_out + x
    return x_out / (1.0 + num_layers)


def _reference_forward_mixed(adj_bf16, x0_bf16, num_layers):
    """Mirrors the kernel's numerics: bf16 operands, f32 accumulation."""
    x = x0_bf16
    acc = x0_bf16.astype(jnp.float32)
    for _ in range(num_layers):
        nxt = jnp.dot(adj_bf16, x, preferred_element_type=jnp.float32)
        acc = acc + nxt
        x = nxt.astype(jnp.bfloat16)
    return acc / (1.0 + num_layers)


if __name__ == "__main__":
    # Small synthetic "dataset", consistent with the module's __init__.
    n_user = 128
    m_item = 128
    latent_dim = 256     # config['recdim']
    num_layers = 3       # config['layer']
    num_interactions = 512

    key = jax.random.PRNGKey(0)
    k_emb, k_u, k_i = jax.random.split(key, 3)

    # nn.Embedding(m_item + n_user, latent_dim) with normal_(std=0.1)
    all_embedding = 0.1 * jax.random.normal(
        k_emb, (n_user + m_item, latent_dim), dtype=jnp.float32)

    train_user = jax.random.randint(k_u, (num_interactions,), 0, n_user)
    train_item = jax.random.randint(k_i, (num_interactions,), 0, m_item)

    adj_norm = build_normalized_adj(train_user, train_item, n_user, m_item)

    user_out, item_out = lightgcn_user_item(
        adj_norm, all_embedding, n_user, num_layers)
    jax.block_until_ready((user_out, item_out))

    out_full = jnp.concatenate([user_out, item_out], axis=0)

    # (1) Exact-semantics check: bf16 operands + f32 accumulation, like the kernel.
    ref_mixed = _reference_forward_mixed(
        adj_norm.astype(jnp.bfloat16), all_embedding.astype(jnp.bfloat16),
        num_layers)
    # (2) Loose check against the pure-f32 PyTorch-equivalent forward.
    ref_f32 = _reference_forward_f32(adj_norm, all_embedding, num_layers)

    assert user_out.shape == (n_user, latent_dim)
    assert item_out.shape == (m_item, latent_dim)
    assert jnp.allclose(out_full, ref_mixed, atol=1e-4, rtol=1e-4)
    assert jnp.allclose(out_full, ref_f32, atol=1e-2, rtol=1e-2)

    print("KERNEL_OK")
</pallas_src>

<mosaic_0001>
module attributes {stable_mosaic.version = 11 : i64} {
  func.func @lightgcn_kernel(%arg0: i32, %arg1: memref<256x256xbf16, #tpu.memory_space<vmem>>, %arg2: memref<256x128xbf16, #tpu.memory_space<vmem>>, %arg3: memref<256x128xf32, #tpu.memory_space<vmem>>, %arg4: memref<256x128xbf16, #tpu.memory_space<vmem>>) attributes {dimension_semantics = [#tpu.dimension_semantics<parallel>], iteration_bounds = array<i64: 2>, scalar_prefetch = 0 : i64, scratch_operands = 1 : i64, tpu.core_type = #tpu.core_type<tc>, window_params = [{pipeline_mode = #tpu.pipeline_mode<synchronous>, transform_indices = @transform_0, window_bounds = array<i64: 256, 256>}, {transform_indices = @transform_1, window_bounds = array<i64: 256, 128>}, {transform_indices = @transform_2, window_bounds = array<i64: 256, 128>}]} {
    %c0 = arith.constant 0 : index
    %c0_0 = arith.constant 0 : index
    %0 = vector.load %arg2[%c0, %c0_0] : memref<256x128xbf16, #tpu.memory_space<vmem>>, vector<256x128xbf16>
    %1 = arith.extf %0 : vector<256x128xbf16> to vector<256x128xf32>
    %c0_1 = arith.constant 0 : index
    %c0_2 = arith.constant 0 : index
    %2 = vector.load %arg3[%c0_1, %c0_2] : memref<256x128xf32, #tpu.memory_space<vmem>>, vector<256x128xf32>
    tpu.vector_store %arg3[%c0_1, %c0_2], %1 {strides = array<i32>} : memref<256x128xf32, #tpu.memory_space<vmem>>, vector<256x128xf32>,
    %c0_3 = arith.constant 0 : index
    %c0_4 = arith.constant 0 : index
    %3 = vector.load %arg4[%c0_3, %c0_4] : memref<256x128xbf16, #tpu.memory_space<vmem>>, vector<256x128xbf16>
    tpu.vector_store %arg4[%c0_3, %c0_4], %0 {strides = array<i32>} : memref<256x128xbf16, #tpu.memory_space<vmem>>, vector<256x128xbf16>,
    %c0_5 = arith.constant 0 : index
    %c0_6 = arith.constant 0 : index
    %4 = vector.load %arg1[%c0_5, %c0_6] : memref<256x256xbf16, #tpu.memory_space<vmem>>, vector<256x256xbf16>
    %c0_7 = arith.constant 0 : index
    %c0_8 = arith.constant 0 : index
    %5 = vector.load %arg4[%c0_7, %c0_8] : memref<256x128xbf16, #tpu.memory_space<vmem>>, vector<256x128xbf16>
    %cst = arith.constant dense<0.000000e+00> : vector<256x128xf32>
    %6 = tpu.matmul %4, %5, %cst {dimension_numbers = #tpu.dot_dimension_numbers<[1], [0], [0], [1], [0, 0, 1, 1], [], []>} : vector<256x256xbf16>, vector<256x128xbf16>, vector<256x128xf32> -> vector<256x128xf32>
    %c0_9 = arith.constant 0 : index
    %c0_10 = arith.constant 0 : index
    %7 = vector.load %arg3[%c0_9, %c0_10] : memref<256x128xf32, #tpu.memory_space<vmem>>, vector<256x128xf32>
    %8 = arith.addf %7, %6 : vector<256x128xf32>
    %c0_11 = arith.constant 0 : index
    %c0_12 = arith.constant 0 : index
    %9 = vector.load %arg3[%c0_11, %c0_12] : memref<256x128xf32, #tpu.memory_space<vmem>>, vector<256x128xf32>
    tpu.vector_store %arg3[%c0_11, %c0_12], %8 {strides = array<i32>} : memref<256x128xf32, #tpu.memory_space<vmem>>, vector<256x128xf32>,
    %10 = arith.truncf %6 : vector<256x128xf32> to vector<256x128xbf16>
    %c0_13 = arith.constant 0 : index
    %c0_14 = arith.constant 0 : index
    %11 = vector.load %arg4[%c0_13, %c0_14] : memref<256x128xbf16, #tpu.memory_space<vmem>>, vector<256x128xbf16>
    tpu.vector_store %arg4[%c0_13, %c0_14], %10 {strides = array<i32>} : memref<256x128xbf16, #tpu.memory_space<vmem>>, vector<256x128xbf16>,
    %c0_15 = arith.constant 0 : index
    %c0_16 = arith.constant 0 : index
    %12 = vector.load %arg1[%c0_15, %c0_16] : memref<256x256xbf16, #tpu.memory_space<vmem>>, vector<256x256xbf16>
    %c0_17 = arith.constant 0 : index
    %c0_18 = arith.constant 0 : index
    %13 = vector.load %arg4[%c0_17, %c0_18] : memref<256x128xbf16, #tpu.memory_space<vmem>>, vector<256x128xbf16>
    %cst_19 = arith.constant dense<0.000000e+00> : vector<256x128xf32>
    %14 = tpu.matmul %12, %13, %cst_19 {dimension_numbers = #tpu.dot_dimension_numbers<[1], [0], [0], [1], [0, 0, 1, 1], [], []>} : vector<256x256xbf16>, vector<256x128xbf16>, vector<256x128xf32> -> vector<256x128xf32>
    %c0_20 = arith.constant 0 : index
    %c0_21 = arith.constant 0 : index
    %15 = vector.load %arg3[%c0_20, %c0_21] : memref<256x128xf32, #tpu.memory_space<vmem>>, vector<256x128xf32>
    %16 = arith.addf %15, %14 : vector<256x128xf32>
    %c0_22 = arith.constant 0 : index
    %c0_23 = arith.constant 0 : index
    %17 = vector.load %arg3[%c0_22, %c0_23] : memref<256x128xf32, #tpu.memory_space<vmem>>, vector<256x128xf32>
    tpu.vector_store %arg3[%c0_22, %c0_23], %16 {strides = array<i32>} : memref<256x128xf32, #tpu.memory_space<vmem>>, vector<256x128xf32>,
    %18 = arith.truncf %14 : vector<256x128xf32> to vector<256x128xbf16>
    %c0_24 = arith.constant 0 : index
    %c0_25 = arith.constant 0 : index
    %19 = vector.load %arg4[%c0_24, %c0_25] : memref<256x128xbf16, #tpu.memory_space<vmem>>, vector<256x128xbf16>
    tpu.vector_store %arg4[%c0_24, %c0_25], %18 {strides = array<i32>} : memref<256x128xbf16, #tpu.memory_space<vmem>>, vector<256x128xbf16>,
    %c0_26 = arith.constant 0 : index
    %c0_27 = arith.constant 0 : index
    %20 = vector.load %arg1[%c0_26, %c0_27] : memref<256x256xbf16, #tpu.memory_space<vmem>>, vector<256x256xbf16>
    %c0_28 = arith.constant 0 : index
    %c0_29 = arith.constant 0 : index
    %21 = vector.load %arg4[%c0_28, %c0_29] : memref<256x128xbf16, #tpu.memory_space<vmem>>, vector<256x128xbf16>
    %cst_30 = arith.constant dense<0.000000e+00> : vector<256x128xf32>
    %22 = tpu.matmul %20, %21, %cst_30 {dimension_numbers = #tpu.dot_dimension_numbers<[1], [0], [0], [1], [0, 0, 1, 1], [], []>} : vector<256x256xbf16>, vector<256x128xbf16>, vector<256x128xf32> -> vector<256x128xf32>
    %c0_31 = arith.constant 0 : index
    %c0_32 = arith.constant 0 : index
    %23 = vector.load %arg3[%c0_31, %c0_32] : memref<256x128xf32, #tpu.memory_space<vmem>>, vector<256x128xf32>
    %24 = arith.addf %23, %22 : vector<256x128xf32>
    %c0_33 = arith.constant 0 : index
    %c0_34 = arith.constant 0 : index
    %25 = vector.load %arg3[%c0_33, %c0_34] : memref<256x128xf32, #tpu.memory_space<vmem>>, vector<256x128xf32>
    tpu.vector_store %arg3[%c0_33, %c0_34], %24 {strides = array<i32>} : memref<256x128xf32, #tpu.memory_space<vmem>>, vector<256x128xf32>,
    %26 = arith.truncf %22 : vector<256x128xf32> to vector<256x128xbf16>
    %c0_35 = arith.constant 0 : index
    %c0_36 = arith.constant 0 : index
    %27 = vector.load %arg4[%c0_35, %c0_36] : memref<256x128xbf16, #tpu.memory_space<vmem>>, vector<256x128xbf16>
    tpu.vector_store %arg4[%c0_35, %c0_36], %26 {strides = array<i32>} : memref<256x128xbf16, #tpu.memory_space<vmem>>, vector<256x128xbf16>,
    %c0_37 = arith.constant 0 : index
    %c0_38 = arith.constant 0 : index
    %28 = vector.load %arg3[%c0_37, %c0_38] : memref<256x128xf32, #tpu.memory_space<vmem>>, vector<256x128xf32>
    %cst_39 = arith.constant 2.500000e-01 : f32
    %29 = vector.broadcast %cst_39 : f32 to vector<256x128xf32>
    %30 = arith.mulf %28, %29 : vector<256x128xf32>
    %c0_40 = arith.constant 0 : index
    %c0_41 = arith.constant 0 : index
    %31 = vector.load %arg3[%c0_40, %c0_41] : memref<256x128xf32, #tpu.memory_space<vmem>>, vector<256x128xf32>
    tpu.vector_store %arg3[%c0_40, %c0_41], %30 {strides = array<i32>} : memref<256x128xf32, #tpu.memory_space<vmem>>, vector<256x128xf32>,
    return
  }
  func.func @transform_0(%arg0: i32) -> (i32, i32) {
    %c0_i32 = arith.constant 0 : i32
    %c0_i32_0 = arith.constant 0 : i32
    %c0_i32_1 = arith.constant 0 : i32
    return %c0_i32, %c0_i32_0 : i32, i32
  }
  func.func @transform_1(%arg0: i32) -> (i32, i32) {
    %c0_i32 = arith.constant 0 : i32
    %c0_i32_0 = arith.constant 0 : i32
    return %c0_i32, %arg0 : i32, i32
  }
  func.func @transform_2(%arg0: i32) -> (i32, i32) {
    %c0_i32 = arith.constant 0 : i32
    %c0_i32_0 = arith.constant 0 : i32
    return %c0_i32, %arg0 : i32, i32
  }
}

module attributes {stable_mosaic.version = 11 : i64} {
  func.func @lightgcn_kernel(%arg0: i32, %arg1: memref<256x256xbf16, #tpu.memory_space<vmem>>, %arg2: memref<256x128xbf16, #tpu.memory_space<vmem>>, %arg3: memref<256x128xf32, #tpu.memory_space<vmem>>, %arg4: memref<256x128xbf16, #tpu.memory_space<vmem>>) attributes {dimension_semantics = [#tpu.dimension_semantics<parallel>], iteration_bounds = array<i64: 2>, scalar_prefetch = 0 : i64, scratch_operands = 1 : i64, tpu.core_type = #tpu.core_type<tc>, window_params = [{pipeline_mode = #tpu.pipeline_mode<synchronous>, transform_indices = @transform_0, window_bounds = array<i64: 256, 256>}, {transform_indices = @transform_1, window_bounds = array<i64: 256, 128>}, {transform_indices = @transform_2, window_bounds = array<i64: 256, 128>}]} {
    %c0 = arith.constant 0 : index
    %c0_0 = arith.constant 0 : index
    %0 = vector.load %arg2[%c0, %c0_0] : memref<256x128xbf16, #tpu.memory_space<vmem>>, vector<256x128xbf16>
    %1 = arith.extf %0 : vector<256x128xbf16> to vector<256x128xf32>
    %c0_1 = arith.constant 0 : index
    %c0_2 = arith.constant 0 : index
    %2 = vector.load %arg3[%c0_1, %c0_2] : memref<256x128xf32, #tpu.memory_space<vmem>>, vector<256x128xf32>
    tpu.vector_store %arg3[%c0_1, %c0_2], %1 {strides = array<i32>} : memref<256x128xf32, #tpu.memory_space<vmem>>, vector<256x128xf32>,
    %c0_3 = arith.constant 0 : index
    %c0_4 = arith.constant 0 : index
    %3 = vector.load %arg4[%c0_3, %c0_4] : memref<256x128xbf16, #tpu.memory_space<vmem>>, vector<256x128xbf16>
    tpu.vector_store %arg4[%c0_3, %c0_4], %0 {strides = array<i32>} : memref<256x128xbf16, #tpu.memory_space<vmem>>, vector<256x128xbf16>,
    %c0_5 = arith.constant 0 : index
    %c0_6 = arith.constant 0 : index
    %4 = vector.load %arg1[%c0_5, %c0_6] : memref<256x256xbf16, #tpu.memory_space<vmem>>, vector<256x256xbf16>
    %c0_7 = arith.constant 0 : index
    %c0_8 = arith.constant 0 : index
    %5 = vector.load %arg4[%c0_7, %c0_8] : memref<256x128xbf16, #tpu.memory_space<vmem>>, vector<256x128xbf16>
    %cst = arith.constant dense<0.000000e+00> : vector<256x128xf32>
    %6 = tpu.matmul %4, %5, %cst {dimension_numbers = #tpu.dot_dimension_numbers<[1], [0], [0], [1], [0, 0, 1, 1], [], []>} : vector<256x256xbf16>, vector<256x128xbf16>, vector<256x128xf32> -> vector<256x128xf32>
    %c0_9 = arith.constant 0 : index
    %c0_10 = arith.constant 0 : index
    %7 = vector.load %arg3[%c0_9, %c0_10] : memref<256x128xf32, #tpu.memory_space<vmem>>, vector<256x128xf32>
    %8 = arith.addf %7, %6 : vector<256x128xf32>
    %c0_11 = arith.constant 0 : index
    %c0_12 = arith.constant 0 : index
    %9 = vector.load %arg3[%c0_11, %c0_12] : memref<256x128xf32, #tpu.memory_space<vmem>>, vector<256x128xf32>
    tpu.vector_store %arg3[%c0_11, %c0_12], %8 {strides = array<i32>} : memref<256x128xf32, #tpu.memory_space<vmem>>, vector<256x128xf32>,
    %10 = arith.truncf %6 : vector<256x128xf32> to vector<256x128xbf16>
    %c0_13 = arith.constant 0 : index
    %c0_14 = arith.constant 0 : index
    %11 = vector.load %arg4[%c0_13, %c0_14] : memref<256x128xbf16, #tpu.memory_space<vmem>>, vector<256x128xbf16>
    tpu.vector_store %arg4[%c0_13, %c0_14], %10 {strides = array<i32>} : memref<256x128xbf16, #tpu.memory_space<vmem>>, vector<256x128xbf16>,
    %c0_15 = arith.constant 0 : index
    %c0_16 = arith.constant 0 : index
    %12 = vector.load %arg1[%c0_15, %c0_16] : memref<256x256xbf16, #tpu.memory_space<vmem>>, vector<256x256xbf16>
    %c0_17 = arith.constant 0 : index
    %c0_18 = arith.constant 0 : index
    %13 = vector.load %arg4[%c0_17, %c0_18] : memref<256x128xbf16, #tpu.memory_space<vmem>>, vector<256x128xbf16>
    %cst_19 = arith.constant dense<0.000000e+00> : vector<256x128xf32>
    %14 = tpu.matmul %12, %13, %cst_19 {dimension_numbers = #tpu.dot_dimension_numbers<[1], [0], [0], [1], [0, 0, 1, 1], [], []>} : vector<256x256xbf16>, vector<256x128xbf16>, vector<256x128xf32> -> vector<256x128xf32>
    %c0_20 = arith.constant 0 : index
    %c0_21 = arith.constant 0 : index
    %15 = vector.load %arg3[%c0_20, %c0_21] : memref<256x128xf32, #tpu.memory_space<vmem>>, vector<256x128xf32>
    %16 = arith.addf %15, %14 : vector<256x128xf32>
    %c0_22 = arith.constant 0 : index
    %c0_23 = arith.constant 0 : index
    %17 = vector.load %arg3[%c0_22, %c0_23] : memref<256x128xf32, #tpu.memory_space<vmem>>, vector<256x128xf32>
    tpu.vector_store %arg3[%c0_22, %c0_23], %16 {strides = array<i32>} : memref<256x128xf32, #tpu.memory_space<vmem>>, vector<256x128xf32>,
    %18 = arith.truncf %14 : vector<256x128xf32> to vector<256x128xbf16>
    %c0_24 = arith.constant 0 : index
    %c0_25 = arith.constant 0 : index
    %19 = vector.load %arg4[%c0_24, %c0_25] : memref<256x128xbf16, #tpu.memory_space<vmem>>, vector<256x128xbf16>
    tpu.vector_store %arg4[%c0_24, %c0_25], %18 {strides = array<i32>} : memref<256x128xbf16, #tpu.memory_space<vmem>>, vector<256x128xbf16>,
    %c0_26 = arith.constant 0 : index
    %c0_27 = arith.constant 0 : index
    %20 = vector.load %arg1[%c0_26, %c0_27] : memref<256x256xbf16, #tpu.memory_space<vmem>>, vector<256x256xbf16>
    %c0_28 = arith.constant 0 : index
    %c0_29 = arith.constant 0 : index
    %21 = vector.load %arg4[%c0_28, %c0_29] : memref<256x128xbf16, #tpu.memory_space<vmem>>, vector<256x128xbf16>
    %cst_30 = arith.constant dense<0.000000e+00> : vector<256x128xf32>
    %22 = tpu.matmul %20, %21, %cst_30 {dimension_numbers = #tpu.dot_dimension_numbers<[1], [0], [0], [1], [0, 0, 1, 1], [], []>} : vector<256x256xbf16>, vector<256x128xbf16>, vector<256x128xf32> -> vector<256x128xf32>
    %c0_31 = arith.constant 0 : index
    %c0_32 = arith.constant 0 : index
    %23 = vector.load %arg3[%c0_31, %c0_32] : memref<256x128xf32, #tpu.memory_space<vmem>>, vector<256x128xf32>
    %24 = arith.addf %23, %22 : vector<256x128xf32>
    %c0_33 = arith.constant 0 : index
    %c0_34 = arith.constant 0 : index
    %25 = vector.load %arg3[%c0_33, %c0_34] : memref<256x128xf32, #tpu.memory_space<vmem>>, vector<256x128xf32>
    tpu.vector_store %arg3[%c0_33, %c0_34], %24 {strides = array<i32>} : memref<256x128xf32, #tpu.memory_space<vmem>>, vector<256x128xf32>,
    %26 = arith.truncf %22 : vector<256x128xf32> to vector<256x128xbf16>
    %c0_35 = arith.constant 0 : index
    %c0_36 = arith.constant 0 : index
    %27 = vector.load %arg4[%c0_35, %c0_36] : memref<256x128xbf16, #tpu.memory_space<vmem>>, vector<256x128xbf16>
    tpu.vector_store %arg4[%c0_35, %c0_36], %26 {strides = array<i32>} : memref<256x128xbf16, #tpu.memory_space<vmem>>, vector<256x128xbf16>,
    %c0_37 = arith.constant 0 : index
    %c0_38 = arith.constant 0 : index
    %28 = vector.load %arg3[%c0_37, %c0_38] : memref<256x128xf32, #tpu.memory_space<vmem>>, vector<256x128xf32>
    %cst_39 = arith.constant 2.500000e-01 : f32
    %29 = vector.broadcast %cst_39 : f32 to vector<256x128xf32>
    %30 = arith.mulf %28, %29 : vector<256x128xf32>
    %c0_40 = arith.constant 0 : index
    %c0_41 = arith.constant 0 : index
    %31 = vector.load %arg3[%c0_40, %c0_41] : memref<256x128xf32, #tpu.memory_space<vmem>>, vector<256x128xf32>
    tpu.vector_store %arg3[%c0_40, %c0_41], %30 {strides = array<i32>} : memref<256x128xf32, #tpu.memory_space<vmem>>, vector<256x128xf32>,
    return
  }
  func.func @transform_0(%arg0: i32) -> (i32, i32) {
    %c0_i32 = arith.constant 0 : i32
    %c0_i32_0 = arith.constant 0 : i32
    %c0_i32_1 = arith.constant 0 : i32
    return %c0_i32, %c0_i32_0 : i32, i32
  }
  func.func @transform_1(%arg0: i32) -> (i32, i32) {
    %c0_i32 = arith.constant 0 : i32
    %c0_i32_0 = arith.constant 0 : i32
    return %c0_i32, %arg0 : i32, i32
  }
  func.func @transform_2(%arg0: i32) -> (i32, i32) {
    %c0_i32 = arith.constant 0 : i32
    %c0_i32_0 = arith.constant 0 : i32
    return %c0_i32, %arg0 : i32, i32
  }
}

</mosaic_0001>

<llo_original>
// kernel: tpu_custom_call.1
$region0: #{tpu_custom_call.1}
  #allocation0 [shape = 'u32[]', space=smem, size = 0x4, offset = 0x4, fixed_abs, tag = 'smem constant byte address 0x4 - core index']
  #allocation1 [shape = 'u32[144,128]{1,0:T(1,128)}', space=vmem, size = 0x12000, scoped, tag = 'internal scratch']
  #allocation2 [shape = 'bf16[256,128]{1,0:T(16,128)(2,1)}', space=vmem, size = 0x10000, scoped, tag = 'scratch operand']
  %s0 = inlined_call_operand.hbm [shape: bf16[256,256], index: 0, kind: input, shape index: {}]
  %s1 = inlined_call_operand.hbm [shape: bf16[256,256], index: 1, kind: input, shape index: {}]
  %s2 = inlined_call_operand.hbm [shape: f32[256,256], index: 2, kind: output, shape index: {}]
  %s3 = sld [smem:[#allocation0]]
  $region49: #{tpu_custom_call.1} parent=0
    _
  %s5 = ssub.s32 1, %s3
  %s6 = scalar_select 0, %s5, %s3
  $region1: #{tpu_custom_call.1} parent=0
    #allocation3 [shape = 'u8[131072]{0}', space=vmem, size = 0x20000, scoped, tag = 'input window, operand 0, single buffered']
    #allocation4 [shape = 's32[2]{0}', space=sflag, size = 0x8, scoped, tag = 'scoped memory for tpu_custom_call.1']
    #allocation5 [shape = 's32[2]{0}', space=sflag, size = 0x8, scoped, tag = 'scoped memory for tpu_custom_call.1']
    #allocation6 [shape = 'u8[131072]{0}', space=vmem, size = 0x20000, scoped, tag = 'input window, operand 1']
    #allocation7 [shape = 's32[2]{0}', space=sflag, size = 0x8, scoped, tag = 'scoped memory for tpu_custom_call.1']
    #allocation8 [shape = 'u8[262144]{0}', space=vmem, size = 0x40000, scoped, tag = 'output window, operand 0']
    %7 = vsyncpa [#allocation4], 0
    %8 = vsyncpa [#allocation7], 0
    %s9 = scalar_lea.sflag [#allocation7], 1
    %10 = vsyncpa %s9, 0
    %11 = vsyncpa [#allocation5], 0
    %s12 = scalar_lea.sflag [#allocation5], 1
    %13 = vsyncpa %s12, 0
    loop: start=0, step=1, limit=4
    $region2: #{tpu_custom_call.1} parent=1 // loop_pre_header
      _
    $region3: #{tpu_custom_call.1} parent=1 // loop_header
      %s15 = sphi 0, %s19
      %p16 = scmp.ge.s32.totalorder %s15, 4
      %s23 = sphi 0, %s23
      %s25 = sphi 0, %s23
      %s26 = sphi 0, %s25
      %s40 = sphi 0, %s26
      %s46 = sphi 0, %s48
      %s49 = sphi 0, %s46
      %s50 = sphi 0, %s49
      %s66 = sphi 0, %s50
      %s72 = sphi 0, %s74
      %s75 = sphi 0, %s72
      %s76 = sphi 0, %s75
      %s92 = sphi 0, %s76
    $region4: #{tpu_custom_call.1} parent=1 // loop_header_branch
      %18 = sbr.rel (%p16) target = $region8
    $region5: #{tpu_custom_call.1} parent=1 // loop_body
      %s20 = ssub.s32 %s15, 1
      %s21 = ssub.s32 %s15, 2
      %s22 = sadd.s32 %s15, 1
      %s24 = sadd.s32 %s23, 1
      %p27 = scmp.eq.s32.totalorder %s15, 1
      %p28 = scmp.ne.s32.totalorder %s23, %s25
      %p29 = scmp.eq.s32.totalorder %s15, 0
      %p30 = por %p28, %p29
      %p31 = scmp.ne.s32.totalorder %s23, %s25
      %p32 = scmp.eq.s32.totalorder %s20, 1
      %p33 = por %p31, %p32
      %p34 = scmp.ne.s32.totalorder %s25, %s26
      %p35 = scmp.eq.s32.totalorder %s20, 0
      %p36 = por %p34, %p35
      %p37 = scmp.ne.s32.totalorder %s25, %s26
      %p38 = scmp.eq.s32.totalorder %s21, 1
      %p39 = por %p37, %p38
      %p41 = scmp.ne.s32.totalorder %s26, %s40
      %p42 = scmp.eq.s32.totalorder %s21, 0
      %p43 = por %p41, %p42
      %s44 = ssub.s32 %s15, %s22
      %p45 = scmp.eq.s32.totalorder %s44, 0
      %s47 = sadd.s32 %s46, 1
      %s48 = scalar_select %p45, %s46, %s47
      %p51 = pneg %p45
      %p52 = scmp.eq.s32.totalorder %s15, 1
      %p53 = por %p51, %p52
      %p54 = scmp.ne.s32.totalorder %s46, %s49
      %p55 = scmp.eq.s32.totalorder %s15, 0
      %p56 = por %p54, %p55
      %p57 = scmp.ne.s32.totalorder %s46, %s49
      %p58 = scmp.eq.s32.totalorder %s20, 1
      %p59 = por %p57, %p58
      %p60 = scmp.ne.s32.totalorder %s49, %s50
      %p61 = scmp.eq.s32.totalorder %s20, 0
      %p62 = por %p60, %p61
      %p63 = scmp.ne.s32.totalorder %s49, %s50
      %p64 = scmp.eq.s32.totalorder %s21, 1
      %p65 = por %p63, %p64
      %p67 = scmp.ne.s32.totalorder %s50, %s66
      %p68 = scmp.eq.s32.totalorder %s21, 0
      %p69 = por %p67, %p68
      %s70 = ssub.s32 %s15, %s22
      %p71 = scmp.eq.s32.totalorder %s70, 0
      %s73 = sadd.s32 %s72, 1
      %s74 = scalar_select %p71, %s72, %s73
      %p77 = pneg %p71
      %p78 = scmp.eq.s32.totalorder %s15, 1
      %p79 = por %p77, %p78
      %p80 = scmp.ne.s32.totalorder %s72, %s75
      %p81 = scmp.eq.s32.totalorder %s15, 0
      %p82 = por %p80, %p81
      %p83 = scmp.ne.s32.totalorder %s72, %s75
      %p84 = scmp.eq.s32.totalorder %s20, 1
      %p85 = por %p83, %p84
      %p86 = scmp.ne.s32.totalorder %s75, %s76
      %p87 = scmp.eq.s32.totalorder %s20, 0
      %p88 = por %p86, %p87
      %p89 = scmp.ne.s32.totalorder %s75, %s76
      %p90 = scmp.eq.s32.totalorder %s21, 1
      %p91 = por %p89, %p90
      %p93 = scmp.ne.s32.totalorder %s76, %s92
      %p94 = scmp.eq.s32.totalorder %s21, 0
      %p95 = por %p93, %p94
      %p96 = scmp.le.s32.totalorder 1, %s15
      %p97 = scmp.lt.s32.totalorder %s15, 3
      %p98 = pnand %p96, %p97
      %p99 = pneg %p98
      // Predicated region
      $region9: #{tpu_custom_call.1} parent=5 // pred_check
        _
      $region10: #{tpu_custom_call.1} parent=5 // pred_check_branch
        %101 = sbr.rel (%p98) target = $region12
      $region11: #{tpu_custom_call.1} parent=5 // pred_region
        %s102 = ssub.s32 %s15, 1
        // Predicated region
        $region13: #{tpu_custom_call.1} parent=11 // pred_check
          %p103 = pneg %p36
        $region14: #{tpu_custom_call.1} parent=11 // pred_check_branch
          %105 = sbr.rel (%p103) target = $region16
        $region15: #{tpu_custom_call.1} parent=11 // pred_region
          %s107 = ssub.s32 4096, 4096
          %108 = vsyncadd [#allocation4], %s107
          %s109 = sshll.u32 [#allocation3], 4
          %s110 = int_to_ptr.vmem [resolvable:$true] %s109
          %115 = dma.hbm_to_vmem [thread:$0]  %s0, 4096, %s110, [#allocation4], 128, 128, 8
        $region16: #{tpu_custom_call.1} parent=11 // pred_fallthru
          _
      $region12: #{tpu_custom_call.1} parent=5 // pred_fallthru
        _
      %p116 = scmp.lt.s32.totalorder %s15, 2
      // Predicated region
      $region17: #{tpu_custom_call.1} parent=5 // pred_check
        %p117 = pneg %p116
      $region18: #{tpu_custom_call.1} parent=5 // pred_check_branch
        %119 = sbr.rel (%p117) target = $region20
      $region19: #{tpu_custom_call.1} parent=5 // pred_region
        // Predicated region
        $region21: #{tpu_custom_call.1} parent=19 // pred_check
          %p120 = pneg %p56
        $region22: #{tpu_custom_call.1} parent=19 // pred_check_branch
          %122 = sbr.rel (%p120) target = $region24
        $region23: #{tpu_custom_call.1} parent=19 // pred_region
          %s123 = sand.u32 %s46, 1
          %s124 = scalar_lea.sflag [#allocation7], %s123
          %s125 = sand.u32 %s46, 1
          %s126 = smul.addr %s125, 128
          %s127 = scalar_lea.vmem [#allocation6], %s126
          %s129 = ssub.s32 2048, 2048
          %130 = vsyncadd %s124, %s129
          %s131 = smul.addr %s15, 64
          %s132 = scalar_lea.hbm %s1, %s131
          %s133 = sshll.u32 %s127, 4
          %s134 = int_to_ptr.vmem [resolvable:$true] %s133
          %139 = dma.hbm_to_vmem [thread:$0]  %s132, 2048, %s134, %s124, 128, 64, 4
        $region24: #{tpu_custom_call.1} parent=19 // pred_fallthru
          _
      $region20: #{tpu_custom_call.1} parent=5 // pred_fallthru
        _
      %p140 = scmp.le.s32.totalorder 1, %s15
      %p141 = scmp.lt.s32.totalorder %s15, 3
      %p142 = pnand %p140, %p141
      %p143 = pneg %p142
      // Predicated region
      $region25: #{tpu_custom_call.1} parent=5 // pred_check
        _
      $region26: #{tpu_custom_call.1} parent=5 // pred_check_branch
        %145 = sbr.rel (%p142) target = $region28
      $region27: #{tpu_custom_call.1} parent=5 // pred_region
        %s146 = ssub.s32 %s15, 1
        // Predicated region
        $region29: #{tpu_custom_call.1} parent=27 // pred_check
          %p147 = pneg %p36
        $region30: #{tpu_custom_call.1} parent=27 // pred_check_branch
          %149 = sbr.rel (%p147) target = $region32
        $region31: #{tpu_custom_call.1} parent=27 // pred_region
          %150 = dma.done [#allocation4], 4096
        $region32: #{tpu_custom_call.1} parent=27 // pred_fallthru
          _
        %s151 = sand.u32 %s49, 1
        %s152 = scalar_lea.sflag [#allocation7], %s151
        %s153 = sand.u32 %s49, 1
        %s154 = smul.addr %s153, 128
        %s155 = scalar_lea.vmem [#allocation6], %s154
        // Predicated region
        $region33: #{tpu_custom_call.1} parent=27 // pred_check
          %p156 = pneg %p62
        $region34: #{tpu_custom_call.1} parent=27 // pred_check_branch
          %158 = sbr.rel (%p156) target = $region36
        $region35: #{tpu_custom_call.1} parent=27 // pred_region
          %159 = dma.done %s152, 2048
        $region36: #{tpu_custom_call.1} parent=27 // pred_fallthru
          _
        %p160 = pneg %p36
        %p161 = pneg %p33
        %s162 = sand.u32 %s49, 1
        %s163 = scalar_lea.sflag [#allocation7], %s162
        %s164 = sand.u32 %s49, 1
        %s165 = smul.addr %s164, 128
        %s166 = scalar_lea.vmem [#allocation6], %s165
        %p167 = pneg %p62
        %p168 = pneg %p59
        %p169 = pneg %p88
        %p170 = pneg %p85
        %s171 = sand.u32 %s75, 1
        %s172 = scalar_lea.sflag [#allocation5], %s171
        %s173 = sand.u32 %s75, 1
        %s174 = smul.addr %s173, 256
        %s175 = scalar_lea.vmem [#allocation8], %s174
        %v177 = vld [vmem:[%s155] sm:$0xf]
        %v178 = vld [vmem:[%s155 + $0x4] sm:$0xf]
        %v179 = vld [vmem:[%s155 + $0x8] sm:$0xf]
        %v180 = vld [vmem:[%s155 + $0xc] sm:$0xf]
        %v181 = vld [vmem:[%s155 + $0x10] sm:$0xf]
        %v182 = vld [vmem:[%s155 + $0x14] sm:$0xf]
        %v183 = vld [vmem:[%s155 + $0x18] sm:$0xf]
        %v184 = vld [vmem:[%s155 + $0x1c] sm:$0xf]
        %v185 = vld [vmem:[%s155 + $0x20] sm:$0xf]
        %v186 = vld [vmem:[%s155 + $0x24] sm:$0xf]
        %v187 = vld [vmem:[%s155 + $0x28] sm:$0xf]
        %v188 = vld [vmem:[%s155 + $0x2c] sm:$0xf]
        %v189 = vld [vmem:[%s155 + $0x30] sm:$0xf]
        %v190 = vld [vmem:[%s155 + $0x34] sm:$0xf]
        %v191 = vld [vmem:[%s155 + $0x38] sm:$0xf]
        %v192 = vld [vmem:[%s155 + $0x3c] sm:$0xf]
        %v193 = vld [vmem:[%s155 + $0x40] sm:$0xf]
        %v194 = vld [vmem:[%s155 + $0x44] sm:$0xf]
        %v195 = vld [vmem:[%s155 + $0x48] sm:$0xf]
        %v196 = vld [vmem:[%s155 + $0x4c] sm:$0xf]
        %v197 = vld [vmem:[%s155 + $0x50] sm:$0xf]
        %v198 = vld [vmem:[%s155 + $0x54] sm:$0xf]
        %v199 = vld [vmem:[%s155 + $0x58] sm:$0xf]
        %v200 = vld [vmem:[%s155 + $0x5c] sm:$0xf]
        %v201 = vld [vmem:[%s155 + $0x60] sm:$0xf]
        %v202 = vld [vmem:[%s155 + $0x64] sm:$0xf]
        %v203 = vld [vmem:[%s155 + $0x68] sm:$0xf]
        %v204 = vld [vmem:[%s155 + $0x6c] sm:$0xf]
        %v205 = vld [vmem:[%s155 + $0x70] sm:$0xf]
        %v206 = vld [vmem:[%s155 + $0x74] sm:$0xf]
        %v207 = vld [vmem:[%s155 + $0x78] sm:$0xf]
        %v208 = vld [vmem:[%s155 + $0x7c] sm:$0xf]
        %v209 = vunpack.c.l.bf16 %v177
        %v210 = vunpack.c.l.bf16 %v178
        %v211 = vunpack.c.l.bf16 %v179
        %v212 = vunpack.c.l.bf16 %v180
        %v213 = vunpack.c.l.bf16 %v181
        %v214 = vunpack.c.l.bf16 %v182
        %v215 = vunpack.c.l.bf16 %v183
        %v216 = vunpack.c.l.bf16 %v184
        %v217 = vunpack.c.l.bf16 %v185
        %v218 = vunpack.c.l.bf16 %v186
        %v219 = vunpack.c.l.bf16 %v187
        %v220 = vunpack.c.l.bf16 %v188
        %v221 = vunpack.c.l.bf16 %v189
        %v222 = vunpack.c.l.bf16 %v190
        %v223 = vunpack.c.l.bf16 %v191
        %v224 = vunpack.c.l.bf16 %v192
        %v225 = vunpack.c.l.bf16 %v193
        %v226 = vunpack.c.l.bf16 %v194
        %v227 = vunpack.c.l.bf16 %v195
        %v228 = vunpack.c.l.bf16 %v196
        %v229 = vunpack.c.l.bf16 %v197
        %v230 = vunpack.c.l.bf16 %v198
        %v231 = vunpack.c.l.bf16 %v199
        %v232 = vunpack.c.l.bf16 %v200
        %v233 = vunpack.c.l.bf16 %v201
        %v234 = vunpack.c.l.bf16 %v202
        %v235 = vunpack.c.l.bf16 %v203
        %v236 = vunpack.c.l.bf16 %v204
        %v237 = vunpack.c.l.bf16 %v205
        %v238 = vunpack.c.l.bf16 %v206
        %v239 = vunpack.c.l.bf16 %v207
        %v240 = vunpack.c.l.bf16 %v208
        %241 = vst [vmem:[%s175] sm:$0xff] %v209
        %242 = vst [vmem:[%s175 + $0x8] sm:$0xff] %v210
        %243 = vst [vmem:[%s175 + $0x10] sm:$0xff] %v211
        %244 = vst [vmem:[%s175 + $0x18] sm:$0xff] %v212
        %245 = vst [vmem:[%s175 + $0x20] sm:$0xff] %v213
        %246 = vst [vmem:[%s175 + $0x28] sm:$0xff] %v214
        %247 = vst [vmem:[%s175 + $0x30] sm:$0xff] %v215
        %248 = vst [vmem:[%s175 + $0x38] sm:$0xff] %v216
        %249 = vst [vmem:[%s175 + $0x40] sm:$0xff] %v217
        %250 = vst [vmem:[%s175 + $0x48] sm:$0xff] %v218
        %251 = vst [vmem:[%s175 + $0x50] sm:$0xff] %v219
        %252 = vst [vmem:[%s175 + $0x58] sm:$0xff] %v220
        %253 = vst [vmem:[%s175 + $0x60] sm:$0xff] %v221
        %254 = vst [vmem:[%s175 + $0x68] sm:$0xff] %v222
        %255 = vst [vmem:[%s175 + $0x70] sm:$0xff] %v223
        %256 = vst [vmem:[%s175 + $0x78] sm:$0xff] %v224
        %257 = vst [vmem:[%s175 + $0x80] sm:$0xff] %v225
        %258 = vst [vmem:[%s175 + $0x88] sm:$0xff] %v226
        %259 = vst [vmem:[%s175 + $0x90] sm:$0xff] %v227
        %260 = vst [vmem:[%s175 + $0x98] sm:$0xff] %v228
        %261 = vst [vmem:[%s175 + $0xa0] sm:$0xff] %v229
        %262 = vst [vmem:[%s175 + $0xa8] sm:$0xff] %v230
        %263 = vst [vmem:[%s175 + $0xb0] sm:$0xff] %v231
        %264 = vst [vmem:[%s175 + $0xb8] sm:$0xff] %v232
        %265 = vst [vmem:[%s175 + $0xc0] sm:$0xff] %v233
        %266 = vst [vmem:[%s175 + $0xc8] sm:$0xff] %v234
        %267 = vst [vmem:[%s175 + $0xd0] sm:$0xff] %v235
        %268 = vst [vmem:[%s175 + $0xd8] sm:$0xff] %v236
        %269 = vst [vmem:[%s175 + $0xe0] sm:$0xff] %v237
        %270 = vst [vmem:[%s175 + $0xe8] sm:$0xff] %v238
        %271 = vst [vmem:[%s175 + $0xf0] sm:$0xff] %v239
        %272 = vst [vmem:[%s175 + $0xf8] sm:$0xff] %v240
        %v305 = vunpack.c.l.b16 %v177
        %v306 = vunpack.c.l.b16 %v178
        %v307 = vunpack.c.l.b16 %v179
        %v308 = vunpack.c.l.b16 %v180
        %v309 = vunpack.c.l.b16 %v181
        %v310 = vunpack.c.l.b16 %v182
        %v311 = vunpack.c.l.b16 %v183
        %v312 = vunpack.c.l.b16 %v184
        %v313 = vunpack.c.l.b16 %v185
        %v314 = vunpack.c.l.b16 %v186
        %v315 = vunpack.c.l.b16 %v187
        %v316 = vunpack.c.l.b16 %v188
        %v317 = vunpack.c.l.b16 %v189
        %v318 = vunpack.c.l.b16 %v190
        %v319 = vunpack.c.l.b16 %v191
        %v320 = vunpack.c.l.b16 %v192
        %v321 = vunpack.c.l.b16 %v193
        %v322 = vunpack.c.l.b16 %v194
        %v323 = vunpack.c.l.b16 %v195
        %v324 = vunpack.c.l.b16 %v196
        %v325 = vunpack.c.l.b16 %v197
        %v326 = vunpack.c.l.b16 %v198
        %v327 = vunpack.c.l.b16 %v199
        %v328 = vunpack.c.l.b16 %v200
        %v329 = vunpack.c.l.b16 %v201
        %v330 = vunpack.c.l.b16 %v202
        %v331 = vunpack.c.l.b16 %v203
        %v332 = vunpack.c.l.b16 %v204
        %v333 = vunpack.c.l.b16 %v205
        %v334 = vunpack.c.l.b16 %v206
        %v335 = vunpack.c.l.b16 %v207
        %v336 = vunpack.c.l.b16 %v208
        %v337 = vpack.c.b16 %v306, %v305
        %v338 = vpack.c.b16 %v308, %v307
        %v339 = vpack.c.b16 %v310, %v309
        %v340 = vpack.c.b16 %v312, %v311
        %v341 = vpack.c.b16 %v314, %v313
        %v342 = vpack.c.b16 %v316, %v315
        %v343 = vpack.c.b16 %v318, %v317
        %v344 = vpack.c.b16 %v320, %v319
        %v345 = vpack.c.b16 %v322, %v321
        %v346 = vpack.c.b16 %v324, %v323
        %v347 = vpack.c.b16 %v326, %v325
        %v348 = vpack.c.b16 %v328, %v327
        %v349 = vpack.c.b16 %v330, %v329
        %v350 = vpack.c.b16 %v332, %v331
        %v351 = vpack.c.b16 %v334, %v333
        %v352 = vpack.c.b16 %v336, %v335
        %369 = vst [vmem:[#allocation2] sm:$0xff] %v337
        %370 = vst [vmem:[#allocation2 + $0x8] sm:$0xff] %v338
        %371 = vst [vmem:[#allocation2 + $0x10] sm:$0xff] %v339
        %372 = vst [vmem:[#allocation2 + $0x18] sm:$0xff] %v340
        %373 = vst [vmem:[#allocation2 + $0x20] sm:$0xff] %v341
        %374 = vst [vmem:[#allocation2 + $0x28] sm:$0xff] %v342
        %375 = vst [vmem:[#allocation2 + $0x30] sm:$0xff] %v343
        %376 = vst [vmem:[#allocation2 + $0x38] sm:$0xff] %v344
        %377 = vst [vmem:[#allocation2 + $0x40] sm:$0xff] %v345
        %378 = vst [vmem:[#allocation2 + $0x48] sm:$0xff] %v346
        %379 = vst [vmem:[#allocation2 + $0x50] sm:$0xff] %v347
        %380 = vst [vmem:[#allocation2 + $0x58] sm:$0xff] %v348
        %381 = vst [vmem:[#allocation2 + $0x60] sm:$0xff] %v349
        %382 = vst [vmem:[#allocation2 + $0x68] sm:$0xff] %v350
        %383 = vst [vmem:[#allocation2 + $0x70] sm:$0xff] %v351
        %384 = vst [vmem:[#allocation2 + $0x78] sm:$0xff] %v352
        %v385 = vld [vmem:[#allocation3] sm:$0xff]
        %v386 = vld [vmem:[#allocation3 + $0x8] sm:$0xff]
        %v387 = vld [vmem:[#allocation3 + $0x10] sm:$0xff]
        %v388 = vld [vmem:[#allocation3 + $0x18] sm:$0xff]
        %v389 = vld [vmem:[#allocation3 + $0x20] sm:$0xff]
        %v390 = vld [vmem:[#allocation3 + $0x28] sm:$0xff]
        %v391 = vld [vmem:[#allocation3 + $0x30] sm:$0xff]
        %v392 = vld [vmem:[#allocation3 + $0x38] sm:$0xff]
        %v393 = vld [vmem:[#allocation3 + $0x40] sm:$0xff]
        %v394 = vld [vmem:[#allocation3 + $0x48] sm:$0xff]
        %v395 = vld [vmem:[#allocation3 + $0x50] sm:$0xff]
        %v396 = vld [vmem:[#allocation3 + $0x58] sm:$0xff]
        %v397 = vld [vmem:[#allocation3 + $0x60] sm:$0xff]
        %v398 = vld [vmem:[#allocation3 + $0x68] sm:$0xff]
        %v399 = vld [vmem:[#allocation3 + $0x70] sm:$0xff]
        %v400 = vld [vmem:[#allocation3 + $0x78] sm:$0xff]
        %v401 = vld [vmem:[#allocation3 + $0x80] sm:$0xff]
        %v402 = vld [vmem:[#allocation3 + $0x88] sm:$0xff]
        %v403 = vld [vmem:[#allocation3 + $0x90] sm:$0xff]
        %v404 = vld [vmem:[#allocation3 + $0x98] sm:$0xff]
        %v405 = vld [vmem:[#allocation3 + $0xa0] sm:$0xff]
        %v406 = vld [vmem:[#allocation3 + $0xa8] sm:$0xff]
        %v407 = vld [vmem:[#allocation3 + $0xb0] sm:$0xff]
        %v408 = vld [vmem:[#allocation3 + $0xb8] sm:$0xff]
        %v409 = vld [vmem:[#allocation3 + $0xc0] sm:$0xff]
        %v410 = vld [vmem:[#allocation3 + $0xc8] sm:$0xff]
        %v411 = vld [vmem:[#allocation3 + $0xd0] sm:$0xff]
        %v412 = vld [vmem:[#allocation3 + $0xd8] sm:$0xff]
        %v413 = vld [vmem:[#allocation3 + $0xe0] sm:$0xff]
        %v414 = vld [vmem:[#allocation3 + $0xe8] sm:$0xff]
        %v415 = vld [vmem:[#allocation3 + $0xf0] sm:$0xff]
        %v416 = vld [vmem:[#allocation3 + $0xf8] sm:$0xff]
        %v417 = vld [vmem:[#allocation2] sm:$0xff]
        %v418 = vld [vmem:[#allocation2 + $0x8] sm:$0xff]
        %v419 = vld [vmem:[#allocation2 + $0x10] sm:$0xff]
        %v420 = vld [vmem:[#allocation2 + $0x18] sm:$0xff]
        %v421 = vld [vmem:[#allocation2 + $0x20] sm:$0xff]
        %v422 = vld [vmem:[#allocation2 + $0x28] sm:$0xff]
        %v423 = vld [vmem:[#allocation2 + $0x30] sm:$0xff]
        %v424 = vld [vmem:[#allocation2 + $0x38] sm:$0xff]
        %v425 = vld [vmem:[#allocation2 + $0x40] sm:$0xff]
        %v426 = vld [vmem:[#allocation2 + $0x48] sm:$0xff]
        %v427 = vld [vmem:[#allocation2 + $0x50] sm:$0xff]
        %v428 = vld [vmem:[#allocation2 + $0x58] sm:$0xff]
        %v429 = vld [vmem:[#allocation2 + $0x60] sm:$0xff]
        %v430 = vld [vmem:[#allocation2 + $0x68] sm:$0xff]
        %v431 = vld [vmem:[#allocation2 + $0x70] sm:$0xff]
        %v432 = vld [vmem:[#allocation2 + $0x78] sm:$0xff]
        %v465 = vunpack.c.l.b16 %v385
        %v466 = vunpack.c.h.b16 %v385
        %v467 = vunpack.c.l.b16 %v386
        %v468 = vunpack.c.h.b16 %v386
        %v469 = vunpack.c.l.b16 %v387
        %v470 = vunpack.c.h.b16 %v387
        %v471 = vunpack.c.l.b16 %v388
        %v472 = vunpack.c.h.b16 %v388
        %v473 = vunpack.c.l.b16 %v389
        %v474 = vunpack.c.h.b16 %v389
        %v475 = vunpack.c.l.b16 %v390
        %v476 = vunpack.c.h.b16 %v390
        %v477 = vunpack.c.l.b16 %v391
        %v478 = vunpack.c.h.b16 %v391
        %v479 = vunpack.c.l.b16 %v392
        %v480 = vunpack.c.h.b16 %v392
        %v481 = vunpack.c.l.b16 %v393
        %v482 = vunpack.c.h.b16 %v393
        %v483 = vunpack.c.l.b16 %v394
        %v484 = vunpack.c.h.b16 %v394
        %v485 = vunpack.c.l.b16 %v395
        %v486 = vunpack.c.h.b16 %v395
        %v487 = vunpack.c.l.b16 %v396
        %v488 = vunpack.c.h.b16 %v396
        %v489 = vunpack.c.l.b16 %v397
        %v490 = vunpack.c.h.b16 %v397
        %v491 = vunpack.c.l.b16 %v398
        %v492 = vunpack.c.h.b16 %v398
        %v493 = vunpack.c.l.b16 %v399
        %v494 = vunpack.c.h.b16 %v399
        %v495 = vunpack.c.l.b16 %v400
        %v496 = vunpack.c.h.b16 %v400
        %v497 = vunpack.c.l.b16 %v401
        %v498 = vunpack.c.h.b16 %v401
        %v499 = vunpack.c.l.b16 %v402
        %v500 = vunpack.c.h.b16 %v402
        %v501 = vunpack.c.l.b16 %v403
        %v502 = vunpack.c.h.b16 %v403
        %v503 = vunpack.c.l.b16 %v404
        %v504 = vunpack.c.h.b16 %v404
        %v505 = vunpack.c.l.b16 %v405
        %v506 = vunpack.c.h.b16 %v405
        %v507 = vunpack.c.l.b16 %v406
        %v508 = vunpack.c.h.b16 %v406
        %v509 = vunpack.c.l.b16 %v407
        %v510 = vunpack.c.h.b16 %v407
        %v511 = vunpack.c.l.b16 %v408
        %v512 = vunpack.c.h.b16 %v408
        %v513 = vunpack.c.l.b16 %v409
        %v514 = vunpack.c.h.b16 %v409
        %v515 = vunpack.c.l.b16 %v410
        %v516 = vunpack.c.h.b16 %v410
        %v517 = vunpack.c.l.b16 %v411
        %v518 = vunpack.c.h.b16 %v411
        %v519 = vunpack.c.l.b16 %v412
        %v520 = vunpack.c.h.b16 %v412
        %v521 = vunpack.c.l.b16 %v413
        %v522 = vunpack.c.h.b16 %v413
        %v523 = vunpack.c.l.b16 %v414
        %v524 = vunpack.c.h.b16 %v414
        %v525 = vunpack.c.l.b16 %v415
        %v526 = vunpack.c.h.b16 %v415
        %v527 = vunpack.c.l.b16 %v416
        %v528 = vunpack.c.h.b16 %v416
        %v529 = vpack.c.b16 %v467, %v465
        %v530 = vpack.c.b16 %v468, %v466
        %v531 = vpack.c.b16 %v471, %v469
        %v532 = vpack.c.b16 %v472, %v470
        %v533 = vpack.c.b16 %v475, %v473
        %v534 = vpack.c.b16 %v476, %v474
        %v535 = vpack.c.b16 %v479, %v477
        %v536 = vpack.c.b16 %v480, %v478
        %v537 = vpack.c.b16 %v483, %v481
        %v538 = vpack.c.b16 %v484, %v482
        %v539 = vpack.c.b16 %v487, %v485
        %v540 = vpack.c.b16 %v488, %v486
        %v541 = vpack.c.b16 %v491, %v489
        %v542 = vpack.c.b16 %v492, %v490
        %v543 = vpack.c.b16 %v495, %v493
        %v544 = vpack.c.b16 %v496, %v494
        %v545 = vpack.c.b16 %v499, %v497
        %v546 = vpack.c.b16 %v500, %v498
        %v547 = vpack.c.b16 %v503, %v501
        %v548 = vpack.c.b16 %v504, %v502
        %v549 = vpack.c.b16 %v507, %v505
        %v550 = vpack.c.b16 %v508, %v506
        %v551 = vpack.c.b16 %v511, %v509
        %v552 = vpack.c.b16 %v512, %v510
        %v553 = vpack.c.b16 %v515, %v513
        %v554 = vpack.c.b16 %v516, %v514
        %v555 = vpack.c.b16 %v519, %v517
        %v556 = vpack.c.b16 %v520, %v518
        %v557 = vpack.c.b16 %v523, %v521
        %v558 = vpack.c.b16 %v524, %v522
        %v559 = vpack.c.b16 %v527, %v525
        %v560 = vpack.c.b16 %v528, %v526
        %593 = vmatprep.subr.bf16.mxu0 0
        %594 = vmatpush1.bf16.msra.mxu0 %v417
        %595 = vmatprep.subr.bf16.mxu0 0
        %596 = vmatpush1.bf16.msra.mxu0 %v418
        %597 = vmatprep.subr.bf16.mxu0 0
        %598 = vmatpush1.bf16.msra.mxu0 %v419
        %599 = vmatprep.subr.bf16.mxu0 0
        %600 = vmatpush1.bf16.msra.mxu0 %v420
        %601 = vmatprep.subr.bf16.mxu0 0
        %602 = vmatpush1.bf16.msra.mxu0 %v421
        %603 = vmatprep.subr.bf16.mxu0 0
        %604 = vmatpush1.bf16.msra.mxu0 %v422
        %605 = vmatprep.subr.bf16.mxu0 0
        %606 = vmatpush1.bf16.msra.mxu0 %v423
        %607 = vmatprep.subr.bf16.mxu0 0
        %608 = vmatpush1.bf16.msra.mxu0 %v424
        %609 = vmatprep.subr.bf16.mxu0 0
        %610 = vmatpush1.bf16.msra.mxu0 %v425
        %611 = vmatprep.subr.bf16.mxu0 0
        %612 = vmatpush1.bf16.msra.mxu0 %v426
        %613 = vmatprep.subr.bf16.mxu0 0
        %614 = vmatpush1.bf16.msra.mxu0 %v427
        %615 = vmatprep.subr.bf16.mxu0 0
        %616 = vmatpush1.bf16.msra.mxu0 %v428
        %617 = vmatprep.subr.bf16.mxu0 0
        %618 = vmatpush1.bf16.msra.mxu0 %v429
        %619 = vmatprep.subr.bf16.mxu0 0
        %620 = vmatpush1.bf16.msra.mxu0 %v430
        %621 = vmatprep.subr.bf16.mxu0 0
        %622 = vmatpush1.bf16.msra.mxu0 %v431
        %623 = vmatprep.subr.bf16.mxu0 0
        %624 = vmatpush1.bf16.msra.mxu0 %v432
        %625 = vmatprep.mubr.bf16.mxu0 %v530
        %626 = vmatmul.mubr.bf16.gmra.mrb[0].mxu0 %v529
        %v627 = vpop.f32.mrb[0].mxu0
        %v628 = vadd.f32 0.0, %v627
        %v629 = vpop.f32.mrb[0].mxu0
        %v630 = vpop.f32.mrb[0].mxu0
        %v631 = vadd.f32 0.0, %v630
        %v632 = vpop.f32.mrb[0].mxu0
        %633 = vmatprep.mubr.bf16.mxu0 %v532
        %634 = vmatmul.mubr.bf16.gmra.mrb[0].mxu0 %v531
        %v635 = vpop.f32.mrb[0].mxu0
        %v636 = vadd.f32 0.0, %v635
        %v637 = vpop.f32.mrb[0].mxu0
        %v638 = vpop.f32.mrb[0].mxu0
        %v639 = vadd.f32 0.0, %v638
        %v640 = vpop.f32.mrb[0].mxu0
        %641 = vmatprep.mubr.bf16.mxu0 %v534
        %642 = vmatmul.mubr.bf16.gmra.mrb[0].mxu0 %v533
        %v643 = vpop.f32.mrb[0].mxu0
        %v644 = vadd.f32 0.0, %v643
        %v645 = vpop.f32.mrb[0].mxu0
        %v646 = vpop.f32.mrb[0].mxu0
        %v647 = vadd.f32 0.0, %v646
        %v648 = vpop.f32.mrb[0].mxu0
        %649 = vmatprep.mubr.bf16.mxu0 %v536
        %650 = vmatmul.mubr.bf16.gmra.mrb[0].mxu0 %v535
        %v651 = vpop.f32.mrb[0].mxu0
        %v652 = vadd.f32 0.0, %v651
        %v653 = vpop.f32.mrb[0].mxu0
        %v654 = vpop.f32.mrb[0].mxu0
        %v655 = vadd.f32 0.0, %v654
        %v656 = vpop.f32.mrb[0].mxu0
        %657 = vmatprep.mubr.bf16.mxu0 %v538
        %658 = vmatmul.mubr.bf16.gmra.mrb[0].mxu0 %v537
        %v659 = vpop.f32.mrb[0].mxu0
        %v660 = vadd.f32 0.0, %v659
        %v661 = vpop.f32.mrb[0].mxu0
        %v662 = vpop.f32.mrb[0].mxu0
        %v663 = vadd.f32 0.0, %v662
        %v664 = vpop.f32.mrb[0].mxu0
        %665 = vmatprep.mubr.bf16.mxu0 %v540
        %666 = vmatmul.mubr.bf16.gmra.mrb[0].mxu0 %v539
        %v667 = vpop.f32.mrb[0].mxu0
        %v668 = vadd.f32 0.0, %v667
        %v669 = vpop.f32.mrb[0].mxu0
        %v670 = vpop.f32.mrb[0].mxu0
        %v671 = vadd.f32 0.0, %v670
        %v672 = vpop.f32.mrb[0].mxu0
        %673 = vmatprep.mubr.bf16.mxu0 %v542
        %674 = vmatmul.mubr.bf16.gmra.mrb[0].mxu0 %v541
        %v675 = vpop.f32.mrb[0].mxu0
        %v676 = vadd.f32 0.0, %v675
        %v677 = vpop.f32.mrb[0].mxu0
        %v678 = vpop.f32.mrb[0].mxu0
        %v679 = vadd.f32 0.0, %v678
        %v680 = vpop.f32.mrb[0].mxu0
        %681 = vmatprep.mubr.bf16.mxu0 %v544
        %682 = vmatmul.mubr.bf16.gmra.mrb[0].mxu0 %v543
        %v683 = vpop.f32.mrb[0].mxu0
        %v684 = vadd.f32 0.0, %v683
        %v685 = vpop.f32.mrb[0].mxu0
        %v686 = vpop.f32.mrb[0].mxu0
        %v687 = vadd.f32 0.0, %v686
        %v688 = vpop.f32.mrb[0].mxu0
        %689 = vmatprep.mubr.bf16.mxu0 %v546
        %690 = vmatmul.mubr.bf16.gmra.mrb[0].mxu0 %v545
        %v691 = vpop.f32.mrb[0].mxu0
        %v692 = vadd.f32 0.0, %v691
        %v693 = vpop.f32.mrb[0].mxu0
        %v694 = vpop.f32.mrb[0].mxu0
        %v695 = vadd.f32 0.0, %v694
        %v696 = vpop.f32.mrb[0].mxu0
        %697 = vmatprep.mubr.bf16.mxu0 %v548
        %698 = vmatmul.mubr.bf16.gmra.mrb[0].mxu0 %v547
        %v699 = vpop.f32.mrb[0].mxu0
        %v700 = vadd.f32 0.0, %v699
        %v701 = vpop.f32.mrb[0].mxu0
        %v702 = vpop.f32.mrb[0].mxu0
        %v703 = vadd.f32 0.0, %v702
        %v704 = vpop.f32.mrb[0].mxu0
        %705 = vmatprep.mubr.bf16.mxu0 %v550
        %706 = vmatmul.mubr.bf16.gmra.mrb[0].mxu0 %v549
        %v707 = vpop.f32.mrb[0].mxu0
        %v708 = vadd.f32 0.0, %v707
        %v709 = vpop.f32.mrb[0].mxu0
        %v710 = vpop.f32.mrb[0].mxu0
        %v711 = vadd.f32 0.0, %v710
        %v712 = vpop.f32.mrb[0].mxu0
        %713 = vmatprep.mubr.bf16.mxu0 %v552
        %714 = vmatmul.mubr.bf16.gmra.mrb[0].mxu0 %v551
        %v715 = vpop.f32.mrb[0].mxu0
        %v716 = vadd.f32 0.0, %v715
        %v717 = vpop.f32.mrb[0].mxu0
        %v718 = vpop.f32.mrb[0].mxu0
        %v719 = vadd.f32 0.0, %v718
        %v720 = vpop.f32.mrb[0].mxu0
        %721 = vmatprep.mubr.bf16.mxu0 %v554
        %722 = vmatmul.mubr.bf16.gmra.mrb[0].mxu0 %v553
        %v723 = vpop.f32.mrb[0].mxu0
        %v724 = vadd.f32 0.0, %v723
        %v725 = vpop.f32.mrb[0].mxu0
        %v726 = vpop.f32.mrb[0].mxu0
        %v727 = vadd.f32 0.0, %v726
        %v728 = vpop.f32.mrb[0].mxu0
        %729 = vmatprep.mubr.bf16.mxu0 %v556
        %730 = vmatmul.mubr.bf16.gmra.mrb[0].mxu0 %v555
        %v731 = vpop.f32.mrb[0].mxu0
        %v732 = vadd.f32 0.0, %v731
        %v733 = vpop.f32.mrb[0].mxu0
        %v734 = vpop.f32.mrb[0].mxu0
        %v735 = vadd.f32 0.0, %v734
        %v736 = vpop.f32.mrb[0].mxu0
        %737 = vmatprep.mubr.bf16.mxu0 %v558
        %738 = vmatmul.mubr.bf16.gmra.mrb[0].mxu0 %v557
        %v739 = vpop.f32.mrb[0].mxu0
        %v740 = vadd.f32 0.0, %v739
        %v741 = vpop.f32.mrb[0].mxu0
        %v742 = vpop.f32.mrb[0].mxu0
        %v743 = vadd.f32 0.0, %v742
        %v744 = vpop.f32.mrb[0].mxu0
        %745 = vmatprep.mubr.bf16.mxu0 %v560
        %746 = vmatmul.mubr.bf16.gmra.mrb[0].mxu0 %v559
        %v747 = vpop.f32.mrb[0].mxu0
        %v748 = vadd.f32 0.0, %v747
        %v749 = vpop.f32.mrb[0].mxu0
        %v750 = vpop.f32.mrb[0].mxu0
        %v751 = vadd.f32 0.0, %v750
        %v752 = vpop.f32.mrb[0].mxu0
        %753 = vdwg.mxu0
        %v754 = vld [vmem:[%s175] sm:$0xff]
        %v755 = vld [vmem:[%s175 + $0x8] sm:$0xff]
        %v756 = vld [vmem:[%s175 + $0x10] sm:$0xff]
        %v757 = vld [vmem:[%s175 + $0x18] sm:$0xff]
        %v758 = vld [vmem:[%s175 + $0x20] sm:$0xff]
        %v759 = vld [vmem:[%s175 + $0x28] sm:$0xff]
        %v760 = vld [vmem:[%s175 + $0x30] sm:$0xff]
        %v761 = vld [vmem:[%s175 + $0x38] sm:$0xff]
        %v762 = vld [vmem:[%s175 + $0x40] sm:$0xff]
        %v763 = vld [vmem:[%s175 + $0x48] sm:$0xff]
        %v764 = vld [vmem:[%s175 + $0x50] sm:$0xff]
        %v765 = vld [vmem:[%s175 + $0x58] sm:$0xff]
        %v766 = vld [vmem:[%s175 + $0x60] sm:$0xff]
        %v767 = vld [vmem:[%s175 + $0x68] sm:$0xff]
        %v768 = vld [vmem:[%s175 + $0x70] sm:$0xff]
        %v769 = vld [vmem:[%s175 + $0x78] sm:$0xff]
        %v770 = vld [vmem:[%s175 + $0x80] sm:$0xff]
        %v771 = vld [vmem:[%s175 + $0x88] sm:$0xff]
        %v772 = vld [vmem:[%s175 + $0x90] sm:$0xff]
        %v773 = vld [vmem:[%s175 + $0x98] sm:$0xff]
        %v774 = vld [vmem:[%s175 + $0xa0] sm:$0xff]
        %v775 = vld [vmem:[%s175 + $0xa8] sm:$0xff]
        %v776 = vld [vmem:[%s175 + $0xb0] sm:$0xff]
        %v777 = vld [vmem:[%s175 + $0xb8] sm:$0xff]
        %v778 = vld [vmem:[%s175 + $0xc0] sm:$0xff]
        %v779 = vld [vmem:[%s175 + $0xc8] sm:$0xff]
        %v780 = vld [vmem:[%s175 + $0xd0] sm:$0xff]
        %v781 = vld [vmem:[%s175 + $0xd8] sm:$0xff]
        %v782 = vld [vmem:[%s175 + $0xe0] sm:$0xff]
        %v783 = vld [vmem:[%s175 + $0xe8] sm:$0xff]
        %v784 = vld [vmem:[%s175 + $0xf0] sm:$0xff]
        %v785 = vld [vmem:[%s175 + $0xf8] sm:$0xff]
        %v786 = vadd.f32 %v754, %v628
        %v787 = vadd.f32 %v755, %v631
        %v788 = vadd.f32 %v756, %v636
        %v789 = vadd.f32 %v757, %v639
        %v790 = vadd.f32 %v758, %v644
        %v791 = vadd.f32 %v759, %v647
        %v792 = vadd.f32 %v760, %v652
        %v793 = vadd.f32 %v761, %v655
        %v794 = vadd.f32 %v762, %v660
        %v795 = vadd.f32 %v763, %v663
        %v796 = vadd.f32 %v764, %v668
        %v797 = vadd.f32 %v765, %v671
        %v798 = vadd.f32 %v766, %v676
        %v799 = vadd.f32 %v767, %v679
        %v800 = vadd.f32 %v768, %v684
        %v801 = vadd.f32 %v769, %v687
        %v802 = vadd.f32 %v770, %v692
        %v803 = vadd.f32 %v771, %v695
        %v804 = vadd.f32 %v772, %v700
        %v805 = vadd.f32 %v773, %v703
        %v806 = vadd.f32 %v774, %v708
        %v807 = vadd.f32 %v775, %v711
        %v808 = vadd.f32 %v776, %v716
        %v809 = vadd.f32 %v777, %v719
        %v810 = vadd.f32 %v778, %v724
        %v811 = vadd.f32 %v779, %v727
        %v812 = vadd.f32 %v780, %v732
        %v813 = vadd.f32 %v781, %v735
        %v814 = vadd.f32 %v782, %v740
        %v815 = vadd.f32 %v783, %v743
        %v816 = vadd.f32 %v784, %v748
        %v817 = vadd.f32 %v785, %v751
        %818 = vst [vmem:[%s175] sm:$0xff] %v786
        %819 = vst [vmem:[%s175 + $0x8] sm:$0xff] %v787
        %820 = vst [vmem:[%s175 + $0x10] sm:$0xff] %v788
        %821 = vst [vmem:[%s175 + $0x18] sm:$0xff] %v789
        %822 = vst [vmem:[%s175 + $0x20] sm:$0xff] %v790
        %823 = vst [vmem:[%s175 + $0x28] sm:$0xff] %v791
        %824 = vst [vmem:[%s175 + $0x30] sm:$0xff] %v792
        %825 = vst [vmem:[%s175 + $0x38] sm:$0xff] %v793
        %826 = vst [vmem:[%s175 + $0x40] sm:$0xff] %v794
        %827 = vst [vmem:[%s175 + $0x48] sm:$0xff] %v795
        %828 = vst [vmem:[%s175 + $0x50] sm:$0xff] %v796
        %829 = vst [vmem:[%s175 + $0x58] sm:$0xff] %v797
        %830 = vst [vmem:[%s175 + $0x60] sm:$0xff] %v798
        %831 = vst [vmem:[%s175 + $0x68] sm:$0xff] %v799
        %832 = vst [vmem:[%s175 + $0x70] sm:$0xff] %v800
        %833 = vst [vmem:[%s175 + $0x78] sm:$0xff] %v801
        %834 = vst [vmem:[%s175 + $0x80] sm:$0xff] %v802
        %835 = vst [vmem:[%s175 + $0x88] sm:$0xff] %v803
        %836 = vst [vmem:[%s175 + $0x90] sm:$0xff] %v804
        %837 = vst [vmem:[%s175 + $0x98] sm:$0xff] %v805
        %838 = vst [vmem:[%s175 + $0xa0] sm:$0xff] %v806
        %839 = vst [vmem:[%s175 + $0xa8] sm:$0xff] %v807
        %840 = vst [vmem:[%s175 + $0xb0] sm:$0xff] %v808
        %841 = vst [vmem:[%s175 + $0xb8] sm:$0xff] %v809
        %842 = vst [vmem:[%s175 + $0xc0] sm:$0xff] %v810
        %843 = vst [vmem:[%s175 + $0xc8] sm:$0xff] %v811
        %844 = vst [vmem:[%s175 + $0xd0] sm:$0xff] %v812
        %845 = vst [vmem:[%s175 + $0xd8] sm:$0xff] %v813
        %846 = vst [vmem:[%s175 + $0xe0] sm:$0xff] %v814
        %847 = vst [vmem:[%s175 + $0xe8] sm:$0xff] %v815
        %848 = vst [vmem:[%s175 + $0xf0] sm:$0xff] %v816
        %849 = vst [vmem:[%s175 + $0xf8] sm:$0xff] %v817
        %v850 = vpack.c.bf16 %v631, %v628
        %v851 = vpack.c.bf16 %v639, %v636
        %v852 = vpack.c.bf16 %v647, %v644
        %v853 = vpack.c.bf16 %v655, %v652
        %v854 = vpack.c.bf16 %v663, %v660
        %v855 = vpack.c.bf16 %v671, %v668
        %v856 = vpack.c.bf16 %v679, %v676
        %v857 = vpack.c.bf16 %v687, %v684
        %v858 = vpack.c.bf16 %v695, %v692
        %v859 = vpack.c.bf16 %v703, %v700
        %v860 = vpack.c.bf16 %v711, %v708
        %v861 = vpack.c.bf16 %v719, %v716
        %v862 = vpack.c.bf16 %v727, %v724
        %v863 = vpack.c.bf16 %v735, %v732
        %v864 = vpack.c.bf16 %v743, %v740
        %v865 = vpack.c.bf16 %v751, %v748
        %866 = vst [vmem:[#allocation2] sm:$0xff] %v850
        %867 = vst [vmem:[#allocation2 + $0x8] sm:$0xff] %v851
        %868 = vst [vmem:[#allocation2 + $0x10] sm:$0xff] %v852
        %869 = vst [vmem:[#allocation2 + $0x18] sm:$0xff] %v853
        %870 = vst [vmem:[#allocation2 + $0x20] sm:$0xff] %v854
        %871 = vst [vmem:[#allocation2 + $0x28] sm:$0xff] %v855
        %872 = vst [vmem:[#allocation2 + $0x30] sm:$0xff] %v856
        %873 = vst [vmem:[#allocation2 + $0x38] sm:$0xff] %v857
        %874 = vst [vmem:[#allocation2 + $0x40] sm:$0xff] %v858
        %875 = vst [vmem:[#allocation2 + $0x48] sm:$0xff] %v859
        %876 = vst [vmem:[#allocation2 + $0x50] sm:$0xff] %v860
        %877 = vst [vmem:[#allocation2 + $0x58] sm:$0xff] %v861
        %878 = vst [vmem:[#allocation2 + $0x60] sm:$0xff] %v862
        %879 = vst [vmem:[#allocation2 + $0x68] sm:$0xff] %v863
        %880 = vst [vmem:[#allocation2 + $0x70] sm:$0xff] %v864
        %881 = vst [vmem:[#allocation2 + $0x78] sm:$0xff] %v865
        %v882 = vld [vmem:[#allocation3] sm:$0xff]
        %v883 = vld [vmem:[#allocation3 + $0x8] sm:$0xff]
        %v884 = vld [vmem:[#allocation3 + $0x10] sm:$0xff]
        %v885 = vld [vmem:[#allocation3 + $0x18] sm:$0xff]
        %v886 = vld [vmem:[#allocation3 + $0x20] sm:$0xff]
        %v887 = vld [vmem:[#allocation3 + $0x28] sm:$0xff]
        %v888 = vld [vmem:[#allocation3 + $0x30] sm:$0xff]
        %v889 = vld [vmem:[#allocation3 + $0x38] sm:$0xff]
        %v890 = vld [vmem:[#allocation3 + $0x40] sm:$0xff]
        %v891 = vld [vmem:[#allocation3 + $0x48] sm:$0xff]
        %v892 = vld [vmem:[#allocation3 + $0x50] sm:$0xff]
        %v893 = vld [vmem:[#allocation3 + $0x58] sm:$0xff]
        %v894 = vld [vmem:[#allocation3 + $0x60] sm:$0xff]
        %v895 = vld [vmem:[#allocation3 + $0x68] sm:$0xff]
        %v896 = vld [vmem:[#allocation3 + $0x70] sm:$0xff]
        %v897 = vld [vmem:[#allocation3 + $0x78] sm:$0xff]
        %v898 = vld [vmem:[#allocation3 + $0x80] sm:$0xff]
        %v899 = vld [vmem:[#allocation3 + $0x88] sm:$0xff]
        %v900 = vld [vmem:[#allocation3 + $0x90] sm:$0xff]
        %v901 = vld [vmem:[#allocation3 + $0x98] sm:$0xff]
        %v902 = vld [vmem:[#allocation3 + $0xa0] sm:$0xff]
        %v903 = vld [vmem:[#allocation3 + $0xa8] sm:$0xff]
        %v904 = vld [vmem:[#allocation3 + $0xb0] sm:$0xff]
        %v905 = vld [vmem:[#allocation3 + $0xb8] sm:$0xff]
        %v906 = vld [vmem:[#allocation3 + $0xc0] sm:$0xff]
        %v907 = vld [vmem:[#allocation3 + $0xc8] sm:$0xff]
        %v908 = vld [vmem:[#allocation3 + $0xd0] sm:$0xff]
        %v909 = vld [vmem:[#allocation3 + $0xd8] sm:$0xff]
        %v910 = vld [vmem:[#allocation3 + $0xe0] sm:$0xff]
        %v911 = vld [vmem:[#allocation3 + $0xe8] sm:$0xff]
        %v912 = vld [vmem:[#allocation3 + $0xf0] sm:$0xff]
        %v913 = vld [vmem:[#allocation3 + $0xf8] sm:$0xff]
        %v914 = vld [vmem:[#allocation2] sm:$0xff]
        %v915 = vld [vmem:[#allocation2 + $0x8] sm:$0xff]
        %v916 = vld [vmem:[#allocation2 + $0x10] sm:$0xff]
        %v917 = vld [vmem:[#allocation2 + $0x18] sm:$0xff]
        %v918 = vld [vmem:[#allocation2 + $0x20] sm:$0xff]
        %v919 = vld [vmem:[#allocation2 + $0x28] sm:$0xff]
        %v920 = vld [vmem:[#allocation2 + $0x30] sm:$0xff]
        %v921 = vld [vmem:[#allocation2 + $0x38] sm:$0xff]
        %v922 = vld [vmem:[#allocation2 + $0x40] sm:$0xff]
        %v923 = vld [vmem:[#allocation2 + $0x48] sm:$0xff]
        %v924 = vld [vmem:[#allocation2 + $0x50] sm:$0xff]
        %v925 = vld [vmem:[#allocation2 + $0x58] sm:$0xff]
        %v926 = vld [vmem:[#allocation2 + $0x60] sm:$0xff]
        %v927 = vld [vmem:[#allocation2 + $0x68] sm:$0xff]
        %v928 = vld [vmem:[#allocation2 + $0x70] sm:$0xff]
        %v929 = vld [vmem:[#allocation2 + $0x78] sm:$0xff]
        %v962 = vunpack.c.l.b16 %v882
        %v963 = vunpack.c.h.b16 %v882
        %v964 = vunpack.c.l.b16 %v883
        %v965 = vunpack.c.h.b16 %v883
        %v966 = vunpack.c.l.b16 %v884
        %v967 = vunpack.c.h.b16 %v884
        %v968 = vunpack.c.l.b16 %v885
        %v969 = vunpack.c.h.b16 %v885
        %v970 = vunpack.c.l.b16 %v886
        %v971 = vunpack.c.h.b16 %v886
        %v972 = vunpack.c.l.b16 %v887
        %v973 = vunpack.c.h.b16 %v887
        %v974 = vunpack.c.l.b16 %v888
        %v975 = vunpack.c.h.b16 %v888
        %v976 = vunpack.c.l.b16 %v889
        %v977 = vunpack.c.h.b16 %v889
        %v978 = vunpack.c.l.b16 %v890
        %v979 = vunpack.c.h.b16 %v890
        %v980 = vunpack.c.l.b16 %v891
        %v981 = vunpack.c.h.b16 %v891
        %v982 = vunpack.c.l.b16 %v892
        %v983 = vunpack.c.h.b16 %v892
        %v984 = vunpack.c.l.b16 %v893
        %v985 = vunpack.c.h.b16 %v893
        %v986 = vunpack.c.l.b16 %v894
        %v987 = vunpack.c.h.b16 %v894
        %v988 = vunpack.c.l.b16 %v895
        %v989 = vunpack.c.h.b16 %v895
        %v990 = vunpack.c.l.b16 %v896
        %v991 = vunpack.c.h.b16 %v896
        %v992 = vunpack.c.l.b16 %v897
        %v993 = vunpack.c.h.b16 %v897
        %v994 = vunpack.c.l.b16 %v898
        %v995 = vunpack.c.h.b16 %v898
        %v996 = vunpack.c.l.b16 %v899
        %v997 = vunpack.c.h.b16 %v899
        %v998 = vunpack.c.l.b16 %v900
        %v999 = vunpack.c.h.b16 %v900
        %v1000 = vunpack.c.l.b16 %v901
        %v1001 = vunpack.c.h.b16 %v901
        %v1002 = vunpack.c.l.b16 %v902
        %v1003 = vunpack.c.h.b16 %v902
        %v1004 = vunpack.c.l.b16 %v903
        %v1005 = vunpack.c.h.b16 %v903
        %v1006 = vunpack.c.l.b16 %v904
        %v1007 = vunpack.c.h.b16 %v904
        %v1008 = vunpack.c.l.b16 %v905
        %v1009 = vunpack.c.h.b16 %v905
        %v1010 = vunpack.c.l.b16 %v906
        %v1011 = vunpack.c.h.b16 %v906
        %v1012 = vunpack.c.l.b16 %v907
        %v1013 = vunpack.c.h.b16 %v907
        %v1014 = vunpack.c.l.b16 %v908
        %v1015 = vunpack.c.h.b16 %v908
        %v1016 = vunpack.c.l.b16 %v909
        %v1017 = vunpack.c.h.b16 %v909
        %v1018 = vunpack.c.l.b16 %v910
        %v1019 = vunpack.c.h.b16 %v910
        %v1020 = vunpack.c.l.b16 %v911
        %v1021 = vunpack.c.h.b16 %v911
        %v1022 = vunpack.c.l.b16 %v912
        %v1023 = vunpack.c.h.b16 %v912
        %v1024 = vunpack.c.l.b16 %v913
        %v1025 = vunpack.c.h.b16 %v913
        %v1026 = vpack.c.b16 %v964, %v962
        %v1027 = vpack.c.b16 %v965, %v963
        %v1028 = vpack.c.b16 %v968, %v966
        %v1029 = vpack.c.b16 %v969, %v967
        %v1030 = vpack.c.b16 %v972, %v970
        %v1031 = vpack.c.b16 %v973, %v971
        %v1032 = vpack.c.b16 %v976, %v974
        %v1033 = vpack.c.b16 %v977, %v975
        %v1034 = vpack.c.b16 %v980, %v978
        %v1035 = vpack.c.b16 %v981, %v979
        %v1036 = vpack.c.b16 %v984, %v982
        %v1037 = vpack.c.b16 %v985, %v983
        %v1038 = vpack.c.b16 %v988, %v986
        %v1039 = vpack.c.b16 %v989, %v987
        %v1040 = vpack.c.b16 %v992, %v990
        %v1041 = vpack.c.b16 %v993, %v991
        %v1042 = vpack.c.b16 %v996, %v994
        %v1043 = vpack.c.b16 %v997, %v995
        %v1044 = vpack.c.b16 %v1000, %v998
        %v1045 = vpack.c.b16 %v1001, %v999
        %v1046 = vpack.c.b16 %v1004, %v1002
        %v1047 = vpack.c.b16 %v1005, %v1003
        %v1048 = vpack.c.b16 %v1008, %v1006
        %v1049 = vpack.c.b16 %v1009, %v1007
        %v1050 = vpack.c.b16 %v1012, %v1010
        %v1051 = vpack.c.b16 %v1013, %v1011
        %v1052 = vpack.c.b16 %v1016, %v1014
        %v1053 = vpack.c.b16 %v1017, %v1015
        %v1054 = vpack.c.b16 %v1020, %v1018
        %v1055 = vpack.c.b16 %v1021, %v1019
        %v1056 = vpack.c.b16 %v1024, %v1022
        %v1057 = vpack.c.b16 %v1025, %v1023
        %1090 = vmatprep.subr.bf16.mxu0 0
        %1091 = vmatpush1.bf16.msra.mxu0 %v914
        %1092 = vmatprep.subr.bf16.mxu0 0
        %1093 = vmatpush1.bf16.msra.mxu0 %v915
        %1094 = vmatprep.subr.bf16.mxu0 0
        %1095 = vmatpush1.bf16.msra.mxu0 %v916
        %1096 = vmatprep.subr.bf16.mxu0 0
        %1097 = vmatpush1.bf16.msra.mxu0 %v917
        %1098 = vmatprep.subr.bf16.mxu0 0
        %1099 = vmatpush1.bf16.msra.mxu0 %v918
        %1100 = vmatprep.subr.bf16.mxu0 0
        %1101 = vmatpush1.bf16.msra.mxu0 %v919
        %1102 = vmatprep.subr.bf16.mxu0 0
        %1103 = vmatpush1.bf16.msra.mxu0 %v920
        %1104 = vmatprep.subr.bf16.mxu0 0
        %1105 = vmatpush1.bf16.msra.mxu0 %v921
        %1106 = vmatprep.subr.bf16.mxu0 0
        %1107 = vmatpush1.bf16.msra.mxu0 %v922
        %1108 = vmatprep.subr.bf16.mxu0 0
        %1109 = vmatpush1.bf16.msra.mxu0 %v923
        %1110 = vmatprep.subr.bf16.mxu0 0
        %1111 = vmatpush1.bf16.msra.mxu0 %v924
        %1112 = vmatprep.subr.bf16.mxu0 0
        %1113 = vmatpush1.bf16.msra.mxu0 %v925
        %1114 = vmatprep.subr.bf16.mxu0 0
        %1115 = vmatpush1.bf16.msra.mxu0 %v926
        %1116 = vmatprep.subr.bf16.mxu0 0
        %1117 = vmatpush1.bf16.msra.mxu0 %v927
        %1118 = vmatprep.subr.bf16.mxu0 0
        %1119 = vmatpush1.bf16.msra.mxu0 %v928
        %1120 = vmatprep.subr.bf16.mxu0 0
        %1121 = vmatpush1.bf16.msra.mxu0 %v929
        %1122 = vmatprep.mubr.bf16.mxu0 %v1027
        %1123 = vmatmul.mubr.bf16.gmra.mrb[0].mxu0 %v1026
        %v1124 = vpop.f32.mrb[0].mxu0
        %v1125 = vadd.f32 0.0, %v1124
        %v1126 = vpop.f32.mrb[0].mxu0
        %v1127 = vpop.f32.mrb[0].mxu0
        %v1128 = vadd.f32 0.0, %v1127
        %v1129 = vpop.f32.mrb[0].mxu0
        %1130 = vmatprep.mubr.bf16.mxu0 %v1029
        %1131 = vmatmul.mubr.bf16.gmra.mrb[0].mxu0 %v1028
        %v1132 = vpop.f32.mrb[0].mxu0
        %v1133 = vadd.f32 0.0, %v1132
        %v1134 = vpop.f32.mrb[0].mxu0
        %v1135 = vpop.f32.mrb[0].mxu0
        %v1136 = vadd.f32 0.0, %v1135
        %v1137 = vpop.f32.mrb[0].mxu0
        %1138 = vmatprep.mubr.bf16.mxu0 %v1031
        %1139 = vmatmul.mubr.bf16.gmra.mrb[0].mxu0 %v1030
        %v1140 = vpop.f32.mrb[0].mxu0
        %v1141 = vadd.f32 0.0, %v1140
        %v1142 = vpop.f32.mrb[0].mxu0
        %v1143 = vpop.f32.mrb[0].mxu0
        %v1144 = vadd.f32 0.0, %v1143
        %v1145 = vpop.f32.mrb[0].mxu0
        %1146 = vmatprep.mubr.bf16.mxu0 %v1033
        %1147 = vmatmul.mubr.bf16.gmra.mrb[0].mxu0 %v1032
        %v1148 = vpop.f32.mrb[0].mxu0
        %v1149 = vadd.f32 0.0, %v1148
        %v1150 = vpop.f32.mrb[0].mxu0
        %v1151 = vpop.f32.mrb[0].mxu0
        %v1152 = vadd.f32 0.0, %v1151
        %v1153 = vpop.f32.mrb[0].mxu0
        %1154 = vmatprep.mubr.bf16.mxu0 %v1035
        %1155 = vmatmul.mubr.bf16.gmra.mrb[0].mxu0 %v1034
        %v1156 = vpop.f32.mrb[0].mxu0
        %v1157 = vadd.f32 0.0, %v1156
        %v1158 = vpop.f32.mrb[0].mxu0
        %v1159 = vpop.f32.mrb[0].mxu0
        %v1160 = vadd.f32 0.0, %v1159
        %v1161 = vpop.f32.mrb[0].mxu0
        %1162 = vmatprep.mubr.bf16.mxu0 %v1037
        %1163 = vmatmul.mubr.bf16.gmra.mrb[0].mxu0 %v1036
        %v1164 = vpop.f32.mrb[0].mxu0
        %v1165 = vadd.f32 0.0, %v1164
        %v1166 = vpop.f32.mrb[0].mxu0
        %v1167 = vpop.f32.mrb[0].mxu0
        %v1168 = vadd.f32 0.0, %v1167
        %v1169 = vpop.f32.mrb[0].mxu0
        %1170 = vmatprep.mubr.bf16.mxu0 %v1039
        %1171 = vmatmul.mubr.bf16.gmra.mrb[0].mxu0 %v1038
        %v1172 = vpop.f32.mrb[0].mxu0
        %v1173 = vadd.f32 0.0, %v1172
        %v1174 = vpop.f32.mrb[0].mxu0
        %v1175 = vpop.f32.mrb[0].mxu0
        %v1176 = vadd.f32 0.0, %v1175
        %v1177 = vpop.f32.mrb[0].mxu0
        %1178 = vmatprep.mubr.bf16.mxu0 %v1041
        %1179 = vmatmul.mubr.bf16.gmra.mrb[0].mxu0 %v1040
        %v1180 = vpop.f32.mrb[0].mxu0
        %v1181 = vadd.f32 0.0, %v1180
        %v1182 = vpop.f32.mrb[0].mxu0
        %v1183 = vpop.f32.mrb[0].mxu0
        %v1184 = vadd.f32 0.0, %v1183
        %v1185 = vpop.f32.mrb[0].mxu0
        %1186 = vmatprep.mubr.bf16.mxu0 %v1043
        %1187 = vmatmul.mubr.bf16.gmra.mrb[0].mxu0 %v1042
        %v1188 = vpop.f32.mrb[0].mxu0
        %v1189 = vadd.f32 0.0, %v1188
        %v1190 = vpop.f32.mrb[0].mxu0
        %v1191 = vpop.f32.mrb[0].mxu0
        %v1192 = vadd.f32 0.0, %v1191
        %v1193 = vpop.f32.mrb[0].mxu0
        %1194 = vmatprep.mubr.bf16.mxu0 %v1045
        %1195 = vmatmul.mubr.bf16.gmra.mrb[0].mxu0 %v1044
        %v1196 = vpop.f32.mrb[0].mxu0
        %v1197 = vadd.f32 0.0, %v1196
        %v1198 = vpop.f32.mrb[0].mxu0
        %v1199 = vpop.f32.mrb[0].mxu0
        %v1200 = vadd.f32 0.0, %v1199
        %v1201 = vpop.f32.mrb[0].mxu0
        %1202 = vmatprep.mubr.bf16.mxu0 %v1047
        %1203 = vmatmul.mubr.bf16.gmra.mrb[0].mxu0 %v1046
        %v1204 = vpop.f32.mrb[0].mxu0
        %v1205 = vadd.f32 0.0, %v1204
        %v1206 = vpop.f32.mrb[0].mxu0
        %v1207 = vpop.f32.mrb[0].mxu0
        %v1208 = vadd.f32 0.0, %v1207
        %v1209 = vpop.f32.mrb[0].mxu0
        %1210 = vmatprep.mubr.bf16.mxu0 %v1049
        %1211 = vmatmul.mubr.bf16.gmra.mrb[0].mxu0 %v1048
        %v1212 = vpop.f32.mrb[0].mxu0
        %v1213 = vadd.f32 0.0, %v1212
        %v1214 = vpop.f32.mrb[0].mxu0
        %v1215 = vpop.f32.mrb[0].mxu0
        %v1216 = vadd.f32 0.0, %v1215
        %v1217 = vpop.f32.mrb[0].mxu0
        %1218 = vmatprep.mubr.bf16.mxu0 %v1051
        %1219 = vmatmul.mubr.bf16.gmra.mrb[0].mxu0 %v1050
        %v1220 = vpop.f32.mrb[0].mxu0
        %v1221 = vadd.f32 0.0, %v1220
        %v1222 = vpop.f32.mrb[0].mxu0
        %v1223 = vpop.f32.mrb[0].mxu0
        %v1224 = vadd.f32 0.0, %v1223
        %v1225 = vpop.f32.mrb[0].mxu0
        %1226 = vmatprep.mubr.bf16.mxu0 %v1053
        %1227 = vmatmul.mubr.bf16.gmra.mrb[0].mxu0 %v1052
        %v1228 = vpop.f32.mrb[0].mxu0
        %v1229 = vadd.f32 0.0, %v1228
        %v1230 = vpop.f32.mrb[0].mxu0
        %v1231 = vpop.f32.mrb[0].mxu0
        %v1232 = vadd.f32 0.0, %v1231
        %v1233 = vpop.f32.mrb[0].mxu0
        %1234 = vmatprep.mubr.bf16.mxu0 %v1055
        %1235 = vmatmul.mubr.bf16.gmra.mrb[0].mxu0 %v1054
        %v1236 = vpop.f32.mrb[0].mxu0
        %v1237 = vadd.f32 0.0, %v1236
        %v1238 = vpop.f32.mrb[0].mxu0
        %v1239 = vpop.f32.mrb[0].mxu0
        %v1240 = vadd.f32 0.0, %v1239
        %v1241 = vpop.f32.mrb[0].mxu0
        %1242 = vmatprep.mubr.bf16.mxu0 %v1057
        %1243 = vmatmul.mubr.bf16.gmra.mrb[0].mxu0 %v1056
        %v1244 = vpop.f32.mrb[0].mxu0
        %v1245 = vadd.f32 0.0, %v1244
        %v1246 = vpop.f32.mrb[0].mxu0
        %v1247 = vpop.f32.mrb[0].mxu0
        %v1248 = vadd.f32 0.0, %v1247
        %v1249 = vpop.f32.mrb[0].mxu0
        %1250 = vdwg.mxu0
        %v1251 = vld [vmem:[%s175] sm:$0xff]
        %v1252 = vld [vmem:[%s175 + $0x8] sm:$0xff]
        %v1253 = vld [vmem:[%s175 + $0x10] sm:$0xff]
        %v1254 = vld [vmem:[%s175 + $0x18] sm:$0xff]
        %v1255 = vld [vmem:[%s175 + $0x20] sm:$0xff]
        %v1256 = vld [vmem:[%s175 + $0x28] sm:$0xff]
        %v1257 = vld [vmem:[%s175 + $0x30] sm:$0xff]
        %v1258 = vld [vmem:[%s175 + $0x38] sm:$0xff]
        %v1259 = vld [vmem:[%s175 + $0x40] sm:$0xff]
        %v1260 = vld [vmem:[%s175 + $0x48] sm:$0xff]
        %v1261 = vld [vmem:[%s175 + $0x50] sm:$0xff]
        %v1262 = vld [vmem:[%s175 + $0x58] sm:$0xff]
        %v1263 = vld [vmem:[%s175 + $0x60] sm:$0xff]
        %v1264 = vld [vmem:[%s175 + $0x68] sm:$0xff]
        %v1265 = vld [vmem:[%s175 + $0x70] sm:$0xff]
        %v1266 = vld [vmem:[%s175 + $0x78] sm:$0xff]
        %v1267 = vld [vmem:[%s175 + $0x80] sm:$0xff]
        %v1268 = vld [vmem:[%s175 + $0x88] sm:$0xff]
        %v1269 = vld [vmem:[%s175 + $0x90] sm:$0xff]
        %v1270 = vld [vmem:[%s175 + $0x98] sm:$0xff]
        %v1271 = vld [vmem:[%s175 + $0xa0] sm:$0xff]
        %v1272 = vld [vmem:[%s175 + $0xa8] sm:$0xff]
        %v1273 = vld [vmem:[%s175 + $0xb0] sm:$0xff]
        %v1274 = vld [vmem:[%s175 + $0xb8] sm:$0xff]
        %v1275 = vld [vmem:[%s175 + $0xc0] sm:$0xff]
        %v1276 = vld [vmem:[%s175 + $0xc8] sm:$0xff]
        %v1277 = vld [vmem:[%s175 + $0xd0] sm:$0xff]
        %v1278 = vld [vmem:[%s175 + $0xd8] sm:$0xff]
        %v1279 = vld [vmem:[%s175 + $0xe0] sm:$0xff]
        %v1280 = vld [vmem:[%s175 + $0xe8] sm:$0xff]
        %v1281 = vld [vmem:[%s175 + $0xf0] sm:$0xff]
        %v1282 = vld [vmem:[%s175 + $0xf8] sm:$0xff]
        %v1283 = vadd.f32 %v1251, %v1125
        %v1284 = vadd.f32 %v1252, %v1128
        %v1285 = vadd.f32 %v1253, %v1133
        %v1286 = vadd.f32 %v1254, %v1136
        %v1287 = vadd.f32 %v1255, %v1141
        %v1288 = vadd.f32 %v1256, %v1144
        %v1289 = vadd.f32 %v1257, %v1149
        %v1290 = vadd.f32 %v1258, %v1152
        %v1291 = vadd.f32 %v1259, %v1157
        %v1292 = vadd.f32 %v1260, %v1160
        %v1293 = vadd.f32 %v1261, %v1165
        %v1294 = vadd.f32 %v1262, %v1168
        %v1295 = vadd.f32 %v1263, %v1173
        %v1296 = vadd.f32 %v1264, %v1176
        %v1297 = vadd.f32 %v1265, %v1181
        %v1298 = vadd.f32 %v1266, %v1184
        %v1299 = vadd.f32 %v1267, %v1189
        %v1300 = vadd.f32 %v1268, %v1192
        %v1301 = vadd.f32 %v1269, %v1197
        %v1302 = vadd.f32 %v1270, %v1200
        %v1303 = vadd.f32 %v1271, %v1205
        %v1304 = vadd.f32 %v1272, %v1208
        %v1305 = vadd.f32 %v1273, %v1213
        %v1306 = vadd.f32 %v1274, %v1216
        %v1307 = vadd.f32 %v1275, %v1221
        %v1308 = vadd.f32 %v1276, %v1224
        %v1309 = vadd.f32 %v1277, %v1229
        %v1310 = vadd.f32 %v1278, %v1232
        %v1311 = vadd.f32 %v1279, %v1237
        %v1312 = vadd.f32 %v1280, %v1240
        %v1313 = vadd.f32 %v1281, %v1245
        %v1314 = vadd.f32 %v1282, %v1248
        %1315 = vst [vmem:[%s175] sm:$0xff] %v1283
        %1316 = vst [vmem:[%s175 + $0x8] sm:$0xff] %v1284
        %1317 = vst [vmem:[%s175 + $0x10] sm:$0xff] %v1285
        %1318 = vst [vmem:[%s175 + $0x18] sm:$0xff] %v1286
        %1319 = vst [vmem:[%s175 + $0x20] sm:$0xff] %v1287
        %1320 = vst [vmem:[%s175 + $0x28] sm:$0xff] %v1288
        %1321 = vst [vmem:[%s175 + $0x30] sm:$0xff] %v1289
        %1322 = vst [vmem:[%s175 + $0x38] sm:$0xff] %v1290
        %1323 = vst [vmem:[%s175 + $0x40] sm:$0xff] %v1291
        %1324 = vst [vmem:[%s175 + $0x48] sm:$0xff] %v1292
        %1325 = vst [vmem:[%s175 + $0x50] sm:$0xff] %v1293
        %1326 = vst [vmem:[%s175 + $0x58] sm:$0xff] %v1294
        %1327 = vst [vmem:[%s175 + $0x60] sm:$0xff] %v1295
        %1328 = vst [vmem:[%s175 + $0x68] sm:$0xff] %v1296
        %1329 = vst [vmem:[%s175 + $0x70] sm:$0xff] %v1297
        %1330 = vst [vmem:[%s175 + $0x78] sm:$0xff] %v1298
        %1331 = vst [vmem:[%s175 + $0x80] sm:$0xff] %v1299
        %1332 = vst [vmem:[%s175 + $0x88] sm:$0xff] %v1300
        %1333 = vst [vmem:[%s175 + $0x90] sm:$0xff] %v1301
        %1334 = vst [vmem:[%s175 + $0x98] sm:$0xff] %v1302
        %1335 = vst [vmem:[%s175 + $0xa0] sm:$0xff] %v1303
        %1336 = vst [vmem:[%s175 + $0xa8] sm:$0xff] %v1304
        %1337 = vst [vmem:[%s175 + $0xb0] sm:$0xff] %v1305
        %1338 = vst [vmem:[%s175 + $0xb8] sm:$0xff] %v1306
        %1339 = vst [vmem:[%s175 + $0xc0] sm:$0xff] %v1307
        %1340 = vst [vmem:[%s175 + $0xc8] sm:$0xff] %v1308
        %1341 = vst [vmem:[%s175 + $0xd0] sm:$0xff] %v1309
        %1342 = vst [vmem:[%s175 + $0xd8] sm:$0xff] %v1310
        %1343 = vst [vmem:[%s175 + $0xe0] sm:$0xff] %v1311
        %1344 = vst [vmem:[%s175 + $0xe8] sm:$0xff] %v1312
        %1345 = vst [vmem:[%s175 + $0xf0] sm:$0xff] %v1313
        %1346 = vst [vmem:[%s175 + $0xf8] sm:$0xff] %v1314
        %v1347 = vpack.c.bf16 %v1128, %v1125
        %v1348 = vpack.c.bf16 %v1136, %v1133
        %v1349 = vpack.c.bf16 %v1144, %v1141
        %v1350 = vpack.c.bf16 %v1152, %v1149
        %v1351 = vpack.c.bf16 %v1160, %v1157
        %v1352 = vpack.c.bf16 %v1168, %v1165
        %v1353 = vpack.c.bf16 %v1176, %v1173
        %v1354 = vpack.c.bf16 %v1184, %v1181
        %v1355 = vpack.c.bf16 %v1192, %v1189
        %v1356 = vpack.c.bf16 %v1200, %v1197
        %v1357 = vpack.c.bf16 %v1208, %v1205
        %v1358 = vpack.c.bf16 %v1216, %v1213
        %v1359 = vpack.c.bf16 %v1224, %v1221
        %v1360 = vpack.c.bf16 %v1232, %v1229
        %v1361 = vpack.c.bf16 %v1240, %v1237
        %v1362 = vpack.c.bf16 %v1248, %v1245
        %1363 = vst [vmem:[#allocation2] sm:$0xff] %v1347
        %1364 = vst [vmem:[#allocation2 + $0x8] sm:$0xff] %v1348
        %1365 = vst [vmem:[#allocation2 + $0x10] sm:$0xff] %v1349
        %1366 = vst [vmem:[#allocation2 + $0x18] sm:$0xff] %v1350
        %1367 = vst [vmem:[#allocation2 + $0x20] sm:$0xff] %v1351
        %1368 = vst [vmem:[#allocation2 + $0x28] sm:$0xff] %v1352
        %1369 = vst [vmem:[#allocation2 + $0x30] sm:$0xff] %v1353
        %1370 = vst [vmem:[#allocation2 + $0x38] sm:$0xff] %v1354
        %1371 = vst [vmem:[#allocation2 + $0x40] sm:$0xff] %v1355
        %1372 = vst [vmem:[#allocation2 + $0x48] sm:$0xff] %v1356
        %1373 = vst [vmem:[#allocation2 + $0x50] sm:$0xff] %v1357
        %1374 = vst [vmem:[#allocation2 + $0x58] sm:$0xff] %v1358
        %1375 = vst [vmem:[#allocation2 + $0x60] sm:$0xff] %v1359
        %1376 = vst [vmem:[#allocation2 + $0x68] sm:$0xff] %v1360
        %1377 = vst [vmem:[#allocation2 + $0x70] sm:$0xff] %v1361
        %1378 = vst [vmem:[#allocation2 + $0x78] sm:$0xff] %v1362
        %v1379 = vld [vmem:[#allocation3] sm:$0xff]
        %v1380 = vld [vmem:[#allocation3 + $0x8] sm:$0xff]
        %v1381 = vld [vmem:[#allocation3 + $0x10] sm:$0xff]
        %v1382 = vld [vmem:[#allocation3 + $0x18] sm:$0xff]
        %v1383 = vld [vmem:[#allocation3 + $0x20] sm:$0xff]
        %v1384 = vld [vmem:[#allocation3 + $0x28] sm:$0xff]
        %v1385 = vld [vmem:[#allocation3 + $0x30] sm:$0xff]
        %v1386 = vld [vmem:[#allocation3 + $0x38] sm:$0xff]
        %v1387 = vld [vmem:[#allocation3 + $0x40] sm:$0xff]
        %v1388 = vld [vmem:[#allocation3 + $0x48] sm:$0xff]
        %v1389 = vld [vmem:[#allocation3 + $0x50] sm:$0xff]
        %v1390 = vld [vmem:[#allocation3 + $0x58] sm:$0xff]
        %v1391 = vld [vmem:[#allocation3 + $0x60] sm:$0xff]
        %v1392 = vld [vmem:[#allocation3 + $0x68] sm:$0xff]
        %v1393 = vld [vmem:[#allocation3 + $0x70] sm:$0xff]
        %v1394 = vld [vmem:[#allocation3 + $0x78] sm:$0xff]
        %v1395 = vld [vmem:[#allocation3 + $0x80] sm:$0xff]
        %v1396 = vld [vmem:[#allocation3 + $0x88] sm:$0xff]
        %v1397 = vld [vmem:[#allocation3 + $0x90] sm:$0xff]
        %v1398 = vld [vmem:[#allocation3 + $0x98] sm:$0xff]
        %v1399 = vld [vmem:[#allocation3 + $0xa0] sm:$0xff]
        %v1400 = vld [vmem:[#allocation3 + $0xa8] sm:$0xff]
        %v1401 = vld [vmem:[#allocation3 + $0xb0] sm:$0xff]
        %v1402 = vld [vmem:[#allocation3 + $0xb8] sm:$0xff]
        %v1403 = vld [vmem:[#allocation3 + $0xc0] sm:$0xff]
        %v1404 = vld [vmem:[#allocation3 + $0xc8] sm:$0xff]
        %v1405 = vld [vmem:[#allocation3 + $0xd0] sm:$0xff]
        %v1406 = vld [vmem:[#allocation3 + $0xd8] sm:$0xff]
        %v1407 = vld [vmem:[#allocation3 + $0xe0] sm:$0xff]
        %v1408 = vld [vmem:[#allocation3 + $0xe8] sm:$0xff]
        %v1409 = vld [vmem:[#allocation3 + $0xf0] sm:$0xff]
        %v1410 = vld [vmem:[#allocation3 + $0xf8] sm:$0xff]
        %v1411 = vld [vmem:[#allocation2] sm:$0xff]
        %v1412 = vld [vmem:[#allocation2 + $0x8] sm:$0xff]
        %v1413 = vld [vmem:[#allocation2 + $0x10] sm:$0xff]
        %v1414 = vld [vmem:[#allocation2 + $0x18] sm:$0xff]
        %v1415 = vld [vmem:[#allocation2 + $0x20] sm:$0xff]
        %v1416 = vld [vmem:[#allocation2 + $0x28] sm:$0xff]
        %v1417 = vld [vmem:[#allocation2 + $0x30] sm:$0xff]
        %v1418 = vld [vmem:[#allocation2 + $0x38] sm:$0xff]
        %v1419 = vld [vmem:[#allocation2 + $0x40] sm:$0xff]
        %v1420 = vld [vmem:[#allocation2 + $0x48] sm:$0xff]
        %v1421 = vld [vmem:[#allocation2 + $0x50] sm:$0xff]
        %v1422 = vld [vmem:[#allocation2 + $0x58] sm:$0xff]
        %v1423 = vld [vmem:[#allocation2 + $0x60] sm:$0xff]
        %v1424 = vld [vmem:[#allocation2 + $0x68] sm:$0xff]
        %v1425 = vld [vmem:[#allocation2 + $0x70] sm:$0xff]
        %v1426 = vld [vmem:[#allocation2 + $0x78] sm:$0xff]
        %v1459 = vunpack.c.l.b16 %v1379
        %v1460 = vunpack.c.h.b16 %v1379
        %v1461 = vunpack.c.l.b16 %v1380
        %v1462 = vunpack.c.h.b16 %v1380
        %v1463 = vunpack.c.l.b16 %v1381
        %v1464 = vunpack.c.h.b16 %v1381
        %v1465 = vunpack.c.l.b16 %v1382
        %v1466 = vunpack.c.h.b16 %v1382
        %v1467 = vunpack.c.l.b16 %v1383
        %v1468 = vunpack.c.h.b16 %v1383
        %v1469 = vunpack.c.l.b16 %v1384
        %v1470 = vunpack.c.h.b16 %v1384
        %v1471 = vunpack.c.l.b16 %v1385
        %v1472 = vunpack.c.h.b16 %v1385
        %v1473 = vunpack.c.l.b16 %v1386
        %v1474 = vunpack.c.h.b16 %v1386
        %v1475 = vunpack.c.l.b16 %v1387
        %v1476 = vunpack.c.h.b16 %v1387
        %v1477 = vunpack.c.l.b16 %v1388
        %v1478 = vunpack.c.h.b16 %v1388
        %v1479 = vunpack.c.l.b16 %v1389
        %v1480 = vunpack.c.h.b16 %v1389
        %v1481 = vunpack.c.l.b16 %v1390
        %v1482 = vunpack.c.h.b16 %v1390
        %v1483 = vunpack.c.l.b16 %v1391
        %v1484 = vunpack.c.h.b16 %v1391
        %v1485 = vunpack.c.l.b16 %v1392
        %v1486 = vunpack.c.h.b16 %v1392
        %v1487 = vunpack.c.l.b16 %v1393
        %v1488 = vunpack.c.h.b16 %v1393
        %v1489 = vunpack.c.l.b16 %v1394
        %v1490 = vunpack.c.h.b16 %v1394
        %v1491 = vunpack.c.l.b16 %v1395
        %v1492 = vunpack.c.h.b16 %v1395
        %v1493 = vunpack.c.l.b16 %v1396
        %v1494 = vunpack.c.h.b16 %v1396
        %v1495 = vunpack.c.l.b16 %v1397
        %v1496 = vunpack.c.h.b16 %v1397
        %v1497 = vunpack.c.l.b16 %v1398
        %v1498 = vunpack.c.h.b16 %v1398
        %v1499 = vunpack.c.l.b16 %v1399
        %v1500 = vunpack.c.h.b16 %v1399
        %v1501 = vunpack.c.l.b16 %v1400
        %v1502 = vunpack.c.h.b16 %v1400
        %v1503 = vunpack.c.l.b16 %v1401
        %v1504 = vunpack.c.h.b16 %v1401
        %v1505 = vunpack.c.l.b16 %v1402
        %v1506 = vunpack.c.h.b16 %v1402
        %v1507 = vunpack.c.l.b16 %v1403
        %v1508 = vunpack.c.h.b16 %v1403
        %v1509 = vunpack.c.l.b16 %v1404
        %v1510 = vunpack.c.h.b16 %v1404
        %v1511 = vunpack.c.l.b16 %v1405
        %v1512 = vunpack.c.h.b16 %v1405
        %v1513 = vunpack.c.l.b16 %v1406
        %v1514 = vunpack.c.h.b16 %v1406
        %v1515 = vunpack.c.l.b16 %v1407
        %v1516 = vunpack.c.h.b16 %v1407
        %v1517 = vunpack.c.l.b16 %v1408
        %v1518 = vunpack.c.h.b16 %v1408
        %v1519 = vunpack.c.l.b16 %v1409
        %v1520 = vunpack.c.h.b16 %v1409
        %v1521 = vunpack.c.l.b16 %v1410
        %v1522 = vunpack.c.h.b16 %v1410
        %v1523 = vpack.c.b16 %v1461, %v1459
        %v1524 = vpack.c.b16 %v1462, %v1460
        %v1525 = vpack.c.b16 %v1465, %v1463
        %v1526 = vpack.c.b16 %v1466, %v1464
        %v1527 = vpack.c.b16 %v1469, %v1467
        %v1528 = vpack.c.b16 %v1470, %v1468
        %v1529 = vpack.c.b16 %v1473, %v1471
        %v1530 = vpack.c.b16 %v1474, %v1472
        %v1531 = vpack.c.b16 %v1477, %v1475
        %v1532 = vpack.c.b16 %v1478, %v1476
        %v1533 = vpack.c.b16 %v1481, %v1479
        %v1534 = vpack.c.b16 %v1482, %v1480
        %v1535 = vpack.c.b16 %v1485, %v1483
        %v1536 = vpack.c.b16 %v1486, %v1484
        %v1537 = vpack.c.b16 %v1489, %v1487
        %v1538 = vpack.c.b16 %v1490, %v1488
        %v1539 = vpack.c.b16 %v1493, %v1491
        %v1540 = vpack.c.b16 %v1494, %v1492
        %v1541 = vpack.c.b16 %v1497, %v1495
        %v1542 = vpack.c.b16 %v1498, %v1496
        %v1543 = vpack.c.b16 %v1501, %v1499
        %v1544 = vpack.c.b16 %v1502, %v1500
        %v1545 = vpack.c.b16 %v1505, %v1503
        %v1546 = vpack.c.b16 %v1506, %v1504
        %v1547 = vpack.c.b16 %v1509, %v1507
        %v1548 = vpack.c.b16 %v1510, %v1508
        %v1549 = vpack.c.b16 %v1513, %v1511
        %v1550 = vpack.c.b16 %v1514, %v1512
        %v1551 = vpack.c.b16 %v1517, %v1515
        %v1552 = vpack.c.b16 %v1518, %v1516
        %v1553 = vpack.c.b16 %v1521, %v1519
        %v1554 = vpack.c.b16 %v1522, %v1520
        %1587 = vmatprep.subr.bf16.mxu0 0
        %1588 = vmatpush1.bf16.msra.mxu0 %v1411
        %1589 = vmatprep.subr.bf16.mxu0 0
        %1590 = vmatpush1.bf16.msra.mxu0 %v1412
        %1591 = vmatprep.subr.bf16.mxu0 0
        %1592 = vmatpush1.bf16.msra.mxu0 %v1413
        %1593 = vmatprep.subr.bf16.mxu0 0
        %1594 = vmatpush1.bf16.msra.mxu0 %v1414
        %1595 = vmatprep.subr.bf16.mxu0 0
        %1596 = vmatpush1.bf16.msra.mxu0 %v1415
        %1597 = vmatprep.subr.bf16.mxu0 0
        %1598 = vmatpush1.bf16.msra.mxu0 %v1416
        %1599 = vmatprep.subr.bf16.mxu0 0
        %1600 = vmatpush1.bf16.msra.mxu0 %v1417
        %1601 = vmatprep.subr.bf16.mxu0 0
        %1602 = vmatpush1.bf16.msra.mxu0 %v1418
        %1603 = vmatprep.subr.bf16.mxu0 0
        %1604 = vmatpush1.bf16.msra.mxu0 %v1419
        %1605 = vmatprep.subr.bf16.mxu0 0
        %1606 = vmatpush1.bf16.msra.mxu0 %v1420
        %1607 = vmatprep.subr.bf16.mxu0 0
        %1608 = vmatpush1.bf16.msra.mxu0 %v1421
        %1609 = vmatprep.subr.bf16.mxu0 0
        %1610 = vmatpush1.bf16.msra.mxu0 %v1422
        %1611 = vmatprep.subr.bf16.mxu0 0
        %1612 = vmatpush1.bf16.msra.mxu0 %v1423
        %1613 = vmatprep.subr.bf16.mxu0 0
        %1614 = vmatpush1.bf16.msra.mxu0 %v1424
        %1615 = vmatprep.subr.bf16.mxu0 0
        %1616 = vmatpush1.bf16.msra.mxu0 %v1425
        %1617 = vmatprep.subr.bf16.mxu0 0
        %1618 = vmatpush1.bf16.msra.mxu0 %v1426
        %1619 = vmatprep.mubr.bf16.mxu0 %v1524
        %1620 = vmatmul.mubr.bf16.gmra.mrb[0].mxu0 %v1523
        %v1621 = vpop.f32.mrb[0].mxu0
        %v1622 = vadd.f32 0.0, %v1621
        %v1623 = vpop.f32.mrb[0].mxu0
        %v1624 = vpop.f32.mrb[0].mxu0
        %v1625 = vadd.f32 0.0, %v1624
        %v1626 = vpop.f32.mrb[0].mxu0
        %1627 = vmatprep.mubr.bf16.mxu0 %v1526
        %1628 = vmatmul.mubr.bf16.gmra.mrb[0].mxu0 %v1525
        %v1629 = vpop.f32.mrb[0].mxu0
        %v1630 = vadd.f32 0.0, %v1629
        %v1631 = vpop.f32.mrb[0].mxu0
        %v1632 = vpop.f32.mrb[0].mxu0
        %v1633 = vadd.f32 0.0, %v1632
        %v1634 = vpop.f32.mrb[0].mxu0
        %1635 = vmatprep.mubr.bf16.mxu0 %v1528
        %1636 = vmatmul.mubr.bf16.gmra.mrb[0].mxu0 %v1527
        %v1637 = vpop.f32.mrb[0].mxu0
        %v1638 = vadd.f32 0.0, %v1637
        %v1639 = vpop.f32.mrb[0].mxu0
        %v1640 = vpop.f32.mrb[0].mxu0
        %v1641 = vadd.f32 0.0, %v1640
        %v1642 = vpop.f32.mrb[0].mxu0
        %1643 = vmatprep.mubr.bf16.mxu0 %v1530
        %1644 = vmatmul.mubr.bf16.gmra.mrb[0].mxu0 %v1529
        %v1645 = vpop.f32.mrb[0].mxu0
        %v1646 = vadd.f32 0.0, %v1645
        %v1647 = vpop.f32.mrb[0].mxu0
        %v1648 = vpop.f32.mrb[0].mxu0
        %v1649 = vadd.f32 0.0, %v1648
        %v1650 = vpop.f32.mrb[0].mxu0
        %1651 = vmatprep.mubr.bf16.mxu0 %v1532
        %1652 = vmatmul.mubr.bf16.gmra.mrb[0].mxu0 %v1531
        %v1653 = vpop.f32.mrb[0].mxu0
        %v1654 = vadd.f32 0.0, %v1653
        %v1655 = vpop.f32.mrb[0].mxu0
        %v1656 = vpop.f32.mrb[0].mxu0
        %v1657 = vadd.f32 0.0, %v1656
        %v1658 = vpop.f32.mrb[0].mxu0
        %1659 = vmatprep.mubr.bf16.mxu0 %v1534
        %1660 = vmatmul.mubr.bf16.gmra.mrb[0].mxu0 %v1533
        %v1661 = vpop.f32.mrb[0].mxu0
        %v1662 = vadd.f32 0.0, %v1661
        %v1663 = vpop.f32.mrb[0].mxu0
        %v1664 = vpop.f32.mrb[0].mxu0
        %v1665 = vadd.f32 0.0, %v1664
        %v1666 = vpop.f32.mrb[0].mxu0
        %1667 = vmatprep.mubr.bf16.mxu0 %v1536
        %1668 = vmatmul.mubr.bf16.gmra.mrb[0].mxu0 %v1535
        %v1669 = vpop.f32.mrb[0].mxu0
        %v1670 = vadd.f32 0.0, %v1669
        %v1671 = vpop.f32.mrb[0].mxu0
        %v1672 = vpop.f32.mrb[0].mxu0
        %v1673 = vadd.f32 0.0, %v1672
        %v1674 = vpop.f32.mrb[0].mxu0
        %1675 = vmatprep.mubr.bf16.mxu0 %v1538
        %1676 = vmatmul.mubr.bf16.gmra.mrb[0].mxu0 %v1537
        %v1677 = vpop.f32.mrb[0].mxu0
        %v1678 = vadd.f32 0.0, %v1677
        %v1679 = vpop.f32.mrb[0].mxu0
        %v1680 = vpop.f32.mrb[0].mxu0
        %v1681 = vadd.f32 0.0, %v1680
        %v1682 = vpop.f32.mrb[0].mxu0
        %1683 = vmatprep.mubr.bf16.mxu0 %v1540
        %1684 = vmatmul.mubr.bf16.gmra.mrb[0].mxu0 %v1539
        %v1685 = vpop.f32.mrb[0].mxu0
        %v1686 = vadd.f32 0.0, %v1685
        %v1687 = vpop.f32.mrb[0].mxu0
        %v1688 = vpop.f32.mrb[0].mxu0
        %v1689 = vadd.f32 0.0, %v1688
        %v1690 = vpop.f32.mrb[0].mxu0
        %1691 = vmatprep.mubr.bf16.mxu0 %v1542
        %1692 = vmatmul.mubr.bf16.gmra.mrb[0].mxu0 %v1541
        %v1693 = vpop.f32.mrb[0].mxu0
        %v1694 = vadd.f32 0.0, %v1693
        %v1695 = vpop.f32.mrb[0].mxu0
        %v1696 = vpop.f32.mrb[0].mxu0
        %v1697 = vadd.f32 0.0, %v1696
        %v1698 = vpop.f32.mrb[0].mxu0
        %1699 = vmatprep.mubr.bf16.mxu0 %v1544
        %1700 = vmatmul.mubr.bf16.gmra.mrb[0].mxu0 %v1543
        %v1701 = vpop.f32.mrb[0].mxu0
        %v1702 = vadd.f32 0.0, %v1701
        %v1703 = vpop.f32.mrb[0].mxu0
        %v1704 = vpop.f32.mrb[0].mxu0
        %v1705 = vadd.f32 0.0, %v1704
        %v1706 = vpop.f32.mrb[0].mxu0
        %1707 = vmatprep.mubr.bf16.mxu0 %v1546
        %1708 = vmatmul.mubr.bf16.gmra.mrb[0].mxu0 %v1545
        %v1709 = vpop.f32.mrb[0].mxu0
        %v1710 = vadd.f32 0.0, %v1709
        %v1711 = vpop.f32.mrb[0].mxu0
        %v1712 = vpop.f32.mrb[0].mxu0
        %v1713 = vadd.f32 0.0, %v1712
        %v1714 = vpop.f32.mrb[0].mxu0
        %1715 = vmatprep.mubr.bf16.mxu0 %v1548
        %1716 = vmatmul.mubr.bf16.gmra.mrb[0].mxu0 %v1547
        %v1717 = vpop.f32.mrb[0].mxu0
        %v1718 = vadd.f32 0.0, %v1717
        %v1719 = vpop.f32.mrb[0].mxu0
        %v1720 = vpop.f32.mrb[0].mxu0
        %v1721 = vadd.f32 0.0, %v1720
        %v1722 = vpop.f32.mrb[0].mxu0
        %1723 = vmatprep.mubr.bf16.mxu0 %v1550
        %1724 = vmatmul.mubr.bf16.gmra.mrb[0].mxu0 %v1549
        %v1725 = vpop.f32.mrb[0].mxu0
        %v1726 = vadd.f32 0.0, %v1725
        %v1727 = vpop.f32.mrb[0].mxu0
        %v1728 = vpop.f32.mrb[0].mxu0
        %v1729 = vadd.f32 0.0, %v1728
        %v1730 = vpop.f32.mrb[0].mxu0
        %1731 = vmatprep.mubr.bf16.mxu0 %v1552
        %1732 = vmatmul.mubr.bf16.gmra.mrb[0].mxu0 %v1551
        %v1733 = vpop.f32.mrb[0].mxu0
        %v1734 = vadd.f32 0.0, %v1733
        %v1735 = vpop.f32.mrb[0].mxu0
        %v1736 = vpop.f32.mrb[0].mxu0
        %v1737 = vadd.f32 0.0, %v1736
        %v1738 = vpop.f32.mrb[0].mxu0
        %1739 = vmatprep.mubr.bf16.mxu0 %v1554
        %1740 = vmatmul.mubr.bf16.gmra.mrb[0].mxu0 %v1553
        %v1741 = vpop.f32.mrb[0].mxu0
        %v1742 = vadd.f32 0.0, %v1741
        %v1743 = vpop.f32.mrb[0].mxu0
        %v1744 = vpop.f32.mrb[0].mxu0
        %v1745 = vadd.f32 0.0, %v1744
        %v1746 = vpop.f32.mrb[0].mxu0
        %1747 = vdwg.mxu0
        %v1748 = vld [vmem:[%s175] sm:$0xff]
        %v1749 = vld [vmem:[%s175 + $0x8] sm:$0xff]
        %v1750 = vld [vmem:[%s175 + $0x10] sm:$0xff]
        %v1751 = vld [vmem:[%s175 + $0x18] sm:$0xff]
        %v1752 = vld [vmem:[%s175 + $0x20] sm:$0xff]
        %v1753 = vld [vmem:[%s175 + $0x28] sm:$0xff]
        %v1754 = vld [vmem:[%s175 + $0x30] sm:$0xff]
        %v1755 = vld [vmem:[%s175 + $0x38] sm:$0xff]
        %v1756 = vld [vmem:[%s175 + $0x40] sm:$0xff]
        %v1757 = vld [vmem:[%s175 + $0x48] sm:$0xff]
        %v1758 = vld [vmem:[%s175 + $0x50] sm:$0xff]
        %v1759 = vld [vmem:[%s175 + $0x58] sm:$0xff]
        %v1760 = vld [vmem:[%s175 + $0x60] sm:$0xff]
        %v1761 = vld [vmem:[%s175 + $0x68] sm:$0xff]
        %v1762 = vld [vmem:[%s175 + $0x70] sm:$0xff]
        %v1763 = vld [vmem:[%s175 + $0x78] sm:$0xff]
        %v1764 = vld [vmem:[%s175 + $0x80] sm:$0xff]
        %v1765 = vld [vmem:[%s175 + $0x88] sm:$0xff]
        %v1766 = vld [vmem:[%s175 + $0x90] sm:$0xff]
        %v1767 = vld [vmem:[%s175 + $0x98] sm:$0xff]
        %v1768 = vld [vmem:[%s175 + $0xa0] sm:$0xff]
        %v1769 = vld [vmem:[%s175 + $0xa8] sm:$0xff]
        %v1770 = vld [vmem:[%s175 + $0xb0] sm:$0xff]
        %v1771 = vld [vmem:[%s175 + $0xb8] sm:$0xff]
        %v1772 = vld [vmem:[%s175 + $0xc0] sm:$0xff]
        %v1773 = vld [vmem:[%s175 + $0xc8] sm:$0xff]
        %v1774 = vld [vmem:[%s175 + $0xd0] sm:$0xff]
        %v1775 = vld [vmem:[%s175 + $0xd8] sm:$0xff]
        %v1776 = vld [vmem:[%s175 + $0xe0] sm:$0xff]
        %v1777 = vld [vmem:[%s175 + $0xe8] sm:$0xff]
        %v1778 = vld [vmem:[%s175 + $0xf0] sm:$0xff]
        %v1779 = vld [vmem:[%s175 + $0xf8] sm:$0xff]
        %v1780 = vadd.f32 %v1748, %v1622
        %v1781 = vadd.f32 %v1749, %v1625
        %v1782 = vadd.f32 %v1750, %v1630
        %v1783 = vadd.f32 %v1751, %v1633
        %v1784 = vadd.f32 %v1752, %v1638
        %v1785 = vadd.f32 %v1753, %v1641
        %v1786 = vadd.f32 %v1754, %v1646
        %v1787 = vadd.f32 %v1755, %v1649
        %v1788 = vadd.f32 %v1756, %v1654
        %v1789 = vadd.f32 %v1757, %v1657
        %v1790 = vadd.f32 %v1758, %v1662
        %v1791 = vadd.f32 %v1759, %v1665
        %v1792 = vadd.f32 %v1760, %v1670
        %v1793 = vadd.f32 %v1761, %v1673
        %v1794 = vadd.f32 %v1762, %v1678
        %v1795 = vadd.f32 %v1763, %v1681
        %v1796 = vadd.f32 %v1764, %v1686
        %v1797 = vadd.f32 %v1765, %v1689
        %v1798 = vadd.f32 %v1766, %v1694
        %v1799 = vadd.f32 %v1767, %v1697
        %v1800 = vadd.f32 %v1768, %v1702
        %v1801 = vadd.f32 %v1769, %v1705
        %v1802 = vadd.f32 %v1770, %v1710
        %v1803 = vadd.f32 %v1771, %v1713
        %v1804 = vadd.f32 %v1772, %v1718
        %v1805 = vadd.f32 %v1773, %v1721
        %v1806 = vadd.f32 %v1774, %v1726
        %v1807 = vadd.f32 %v1775, %v1729
        %v1808 = vadd.f32 %v1776, %v1734
        %v1809 = vadd.f32 %v1777, %v1737
        %v1810 = vadd.f32 %v1778, %v1742
        %v1811 = vadd.f32 %v1779, %v1745
        %1812 = vst [vmem:[%s175] sm:$0xff] %v1780
        %1813 = vst [vmem:[%s175 + $0x8] sm:$0xff] %v1781
        %1814 = vst [vmem:[%s175 + $0x10] sm:$0xff] %v1782
        %1815 = vst [vmem:[%s175 + $0x18] sm:$0xff] %v1783
        %1816 = vst [vmem:[%s175 + $0x20] sm:$0xff] %v1784
        %1817 = vst [vmem:[%s175 + $0x28] sm:$0xff] %v1785
        %1818 = vst [vmem:[%s175 + $0x30] sm:$0xff] %v1786
        %1819 = vst [vmem:[%s175 + $0x38] sm:$0xff] %v1787
        %1820 = vst [vmem:[%s175 + $0x40] sm:$0xff] %v1788
        %1821 = vst [vmem:[%s175 + $0x48] sm:$0xff] %v1789
        %1822 = vst [vmem:[%s175 + $0x50] sm:$0xff] %v1790
        %1823 = vst [vmem:[%s175 + $0x58] sm:$0xff] %v1791
        %1824 = vst [vmem:[%s175 + $0x60] sm:$0xff] %v1792
        %1825 = vst [vmem:[%s175 + $0x68] sm:$0xff] %v1793
        %1826 = vst [vmem:[%s175 + $0x70] sm:$0xff] %v1794
        %1827 = vst [vmem:[%s175 + $0x78] sm:$0xff] %v1795
        %1828 = vst [vmem:[%s175 + $0x80] sm:$0xff] %v1796
        %1829 = vst [vmem:[%s175 + $0x88] sm:$0xff] %v1797
        %1830 = vst [vmem:[%s175 + $0x90] sm:$0xff] %v1798
        %1831 = vst [vmem:[%s175 + $0x98] sm:$0xff] %v1799
        %1832 = vst [vmem:[%s175 + $0xa0] sm:$0xff] %v1800
        %1833 = vst [vmem:[%s175 + $0xa8] sm:$0xff] %v1801
        %1834 = vst [vmem:[%s175 + $0xb0] sm:$0xff] %v1802
        %1835 = vst [vmem:[%s175 + $0xb8] sm:$0xff] %v1803
        %1836 = vst [vmem:[%s175 + $0xc0] sm:$0xff] %v1804
        %1837 = vst [vmem:[%s175 + $0xc8] sm:$0xff] %v1805
        %1838 = vst [vmem:[%s175 + $0xd0] sm:$0xff] %v1806
        %1839 = vst [vmem:[%s175 + $0xd8] sm:$0xff] %v1807
        %1840 = vst [vmem:[%s175 + $0xe0] sm:$0xff] %v1808
        %1841 = vst [vmem:[%s175 + $0xe8] sm:$0xff] %v1809
        %1842 = vst [vmem:[%s175 + $0xf0] sm:$0xff] %v1810
        %1843 = vst [vmem:[%s175 + $0xf8] sm:$0xff] %v1811
        %v1844 = vpack.c.bf16 %v1625, %v1622
        %v1845 = vpack.c.bf16 %v1633, %v1630
        %v1846 = vpack.c.bf16 %v1641, %v1638
        %v1847 = vpack.c.bf16 %v1649, %v1646
        %v1848 = vpack.c.bf16 %v1657, %v1654
        %v1849 = vpack.c.bf16 %v1665, %v1662
        %v1850 = vpack.c.bf16 %v1673, %v1670
        %v1851 = vpack.c.bf16 %v1681, %v1678
        %v1852 = vpack.c.bf16 %v1689, %v1686
        %v1853 = vpack.c.bf16 %v1697, %v1694
        %v1854 = vpack.c.bf16 %v1705, %v1702
        %v1855 = vpack.c.bf16 %v1713, %v1710
        %v1856 = vpack.c.bf16 %v1721, %v1718
        %v1857 = vpack.c.bf16 %v1729, %v1726
        %v1858 = vpack.c.bf16 %v1737, %v1734
        %v1859 = vpack.c.bf16 %v1745, %v1742
        %1860 = vst [vmem:[#allocation2] sm:$0xff] %v1844
        %1861 = vst [vmem:[#allocation2 + $0x8] sm:$0xff] %v1845
        %1862 = vst [vmem:[#allocation2 + $0x10] sm:$0xff] %v1846
        %1863 = vst [vmem:[#allocation2 + $0x18] sm:$0xff] %v1847
        %1864 = vst [vmem:[#allocation2 + $0x20] sm:$0xff] %v1848
        %1865 = vst [vmem:[#allocation2 + $0x28] sm:$0xff] %v1849
        %1866 = vst [vmem:[#allocation2 + $0x30] sm:$0xff] %v1850
        %1867 = vst [vmem:[#allocation2 + $0x38] sm:$0xff] %v1851
        %1868 = vst [vmem:[#allocation2 + $0x40] sm:$0xff] %v1852
        %1869 = vst [vmem:[#allocation2 + $0x48] sm:$0xff] %v1853
        %1870 = vst [vmem:[#allocation2 + $0x50] sm:$0xff] %v1854
        %1871 = vst [vmem:[#allocation2 + $0x58] sm:$0xff] %v1855
        %1872 = vst [vmem:[#allocation2 + $0x60] sm:$0xff] %v1856
        %1873 = vst [vmem:[#allocation2 + $0x68] sm:$0xff] %v1857
        %1874 = vst [vmem:[#allocation2 + $0x70] sm:$0xff] %v1858
        %1875 = vst [vmem:[#allocation2 + $0x78] sm:$0xff] %v1859
        %v1876 = vld [vmem:[%s175] sm:$0xff]
        %v1877 = vld [vmem:[%s175 + $0x8] sm:$0xff]
        %v1878 = vld [vmem:[%s175 + $0x10] sm:$0xff]
        %v1879 = vld [vmem:[%s175 + $0x18] sm:$0xff]
        %v1880 = vld [vmem:[%s175 + $0x20] sm:$0xff]
        %v1881 = vld [vmem:[%s175 + $0x28] sm:$0xff]
        %v1882 = vld [vmem:[%s175 + $0x30] sm:$0xff]
        %v1883 = vld [vmem:[%s175 + $0x38] sm:$0xff]
        %v1884 = vld [vmem:[%s175 + $0x40] sm:$0xff]
        %v1885 = vld [vmem:[%s175 + $0x48] sm:$0xff]
        %v1886 = vld [vmem:[%s175 + $0x50] sm:$0xff]
        %v1887 = vld [vmem:[%s175 + $0x58] sm:$0xff]
        %v1888 = vld [vmem:[%s175 + $0x60] sm:$0xff]
        %v1889 = vld [vmem:[%s175 + $0x68] sm:$0xff]
        %v1890 = vld [vmem:[%s175 + $0x70] sm:$0xff]
        %v1891 = vld [vmem:[%s175 + $0x78] sm:$0xff]
        %v1892 = vld [vmem:[%s175 + $0x80] sm:$0xff]
        %v1893 = vld [vmem:[%s175 + $0x88] sm:$0xff]
        %v1894 = vld [vmem:[%s175 + $0x90] sm:$0xff]
        %v1895 = vld [vmem:[%s175 + $0x98] sm:$0xff]
        %v1896 = vld [vmem:[%s175 + $0xa0] sm:$0xff]
        %v1897 = vld [vmem:[%s175 + $0xa8] sm:$0xff]
        %v1898 = vld [vmem:[%s175 + $0xb0] sm:$0xff]
        %v1899 = vld [vmem:[%s175 + $0xb8] sm:$0xff]
        %v1900 = vld [vmem:[%s175 + $0xc0] sm:$0xff]
        %v1901 = vld [vmem:[%s175 + $0xc8] sm:$0xff]
        %v1902 = vld [vmem:[%s175 + $0xd0] sm:$0xff]
        %v1903 = vld [vmem:[%s175 + $0xd8] sm:$0xff]
        %v1904 = vld [vmem:[%s175 + $0xe0] sm:$0xff]
        %v1905 = vld [vmem:[%s175 + $0xe8] sm:$0xff]
        %v1906 = vld [vmem:[%s175 + $0xf0] sm:$0xff]
        %v1907 = vld [vmem:[%s175 + $0xf8] sm:$0xff]
        %v1908 = vmul.f32 %v1876, 0.25
        %v1909 = vmul.f32 %v1877, 0.25
        %v1910 = vmul.f32 %v1878, 0.25
        %v1911 = vmul.f32 %v1879, 0.25
        %v1912 = vmul.f32 %v1880, 0.25
        %v1913 = vmul.f32 %v1881, 0.25
        %v1914 = vmul.f32 %v1882, 0.25
        %v1915 = vmul.f32 %v1883, 0.25
        %v1916 = vmul.f32 %v1884, 0.25
        %v1917 = vmul.f32 %v1885, 0.25
        %v1918 = vmul.f32 %v1886, 0.25
        %v1919 = vmul.f32 %v1887, 0.25
        %v1920 = vmul.f32 %v1888, 0.25
        %v1921 = vmul.f32 %v1889, 0.25
        %v1922 = vmul.f32 %v1890, 0.25
        %v1923 = vmul.f32 %v1891, 0.25
        %v1924 = vmul.f32 %v1892, 0.25
        %v1925 = vmul.f32 %v1893, 0.25
        %v1926 = vmul.f32 %v1894, 0.25
        %v1927 = vmul.f32 %v1895, 0.25
        %v1928 = vmul.f32 %v1896, 0.25
        %v1929 = vmul.f32 %v1897, 0.25
        %v1930 = vmul.f32 %v1898, 0.25
        %v1931 = vmul.f32 %v1899, 0.25
        %v1932 = vmul.f32 %v1900, 0.25
        %v1933 = vmul.f32 %v1901, 0.25
        %v1934 = vmul.f32 %v1902, 0.25
        %v1935 = vmul.f32 %v1903, 0.25
        %v1936 = vmul.f32 %v1904, 0.25
        %v1937 = vmul.f32 %v1905, 0.25
        %v1938 = vmul.f32 %v1906, 0.25
        %v1939 = vmul.f32 %v1907, 0.25
        %1940 = vst [vmem:[%s175] sm:$0xff] %v1908
        %1941 = vst [vmem:[%s175 + $0x8] sm:$0xff] %v1909
        %1942 = vst [vmem:[%s175 + $0x10] sm:$0xff] %v1910
        %1943 = vst [vmem:[%s175 + $0x18] sm:$0xff] %v1911
        %1944 = vst [vmem:[%s175 + $0x20] sm:$0xff] %v1912
        %1945 = vst [vmem:[%s175 + $0x28] sm:$0xff] %v1913
        %1946 = vst [vmem:[%s175 + $0x30] sm:$0xff] %v1914
        %1947 = vst [vmem:[%s175 + $0x38] sm:$0xff] %v1915
        %1948 = vst [vmem:[%s175 + $0x40] sm:$0xff] %v1916
        %1949 = vst [vmem:[%s175 + $0x48] sm:$0xff] %v1917
        %1950 = vst [vmem:[%s175 + $0x50] sm:$0xff] %v1918
        %1951 = vst [vmem:[%s175 + $0x58] sm:$0xff] %v1919
        %1952 = vst [vmem:[%s175 + $0x60] sm:$0xff] %v1920
        %1953 = vst [vmem:[%s175 + $0x68] sm:$0xff] %v1921
        %1954 = vst [vmem:[%s175 + $0x70] sm:$0xff] %v1922
        %1955 = vst [vmem:[%s175 + $0x78] sm:$0xff] %v1923
        %1956 = vst [vmem:[%s175 + $0x80] sm:$0xff] %v1924
        %1957 = vst [vmem:[%s175 + $0x88] sm:$0xff] %v1925
        %1958 = vst [vmem:[%s175 + $0x90] sm:$0xff] %v1926
        %1959 = vst [vmem:[%s175 + $0x98] sm:$0xff] %v1927
        %1960 = vst [vmem:[%s175 + $0xa0] sm:$0xff] %v1928
        %1961 = vst [vmem:[%s175 + $0xa8] sm:$0xff] %v1929
        %1962 = vst [vmem:[%s175 + $0xb0] sm:$0xff] %v1930
        %1963 = vst [vmem:[%s175 + $0xb8] sm:$0xff] %v1931
        %1964 = vst [vmem:[%s175 + $0xc0] sm:$0xff] %v1932
        %1965 = vst [vmem:[%s175 + $0xc8] sm:$0xff] %v1933
        %1966 = vst [vmem:[%s175 + $0xd0] sm:$0xff] %v1934
        %1967 = vst [vmem:[%s175 + $0xd8] sm:$0xff] %v1935
        %1968 = vst [vmem:[%s175 + $0xe0] sm:$0xff] %v1936
        %1969 = vst [vmem:[%s175 + $0xe8] sm:$0xff] %v1937
        %1970 = vst [vmem:[%s175 + $0xf0] sm:$0xff] %v1938
        %1971 = vst [vmem:[%s175 + $0xf8] sm:$0xff] %v1939
        %s1972 = sand.u32 %s75, 1
        %s1973 = scalar_lea.sflag [#allocation5], %s1972
        %s1974 = sand.u32 %s75, 1
        %s1975 = smul.addr %s1974, 256
        %s1976 = scalar_lea.vmem [#allocation8], %s1975
        // Predicated region
        $region37: #{tpu_custom_call.1} parent=27 // pred_check
          %p1977 = pneg %p85
        $region38: #{tpu_custom_call.1} parent=27 // pred_check_branch
          %1979 = sbr.rel (%p1977) target = $region40
        $region39: #{tpu_custom_call.1} parent=27 // pred_region
          %s1981 = ssub.s32 4096, 4096
          %1982 = vsyncadd %s1973, %s1981
          %s1983 = smul.addr %s20, 128
          %s1984 = scalar_lea.hbm %s2, %s1983
          %s1985 = sshll.u32 %s1976, 4
          %s1986 = int_to_ptr.vmem [resolvable:$true] %s1985
          %1991 = dma.vmem_to_hbm [thread:$0]  %s1986, 4096, %s1984, %s1973, 128, 256, 8
        $region40: #{tpu_custom_call.1} parent=27 // pred_fallthru
          _
      $region28: #{tpu_custom_call.1} parent=5 // pred_fallthru
        _
      %p1992 = scmp.le.s32.totalorder 2, %s15
      // Predicated region
      $region41: #{tpu_custom_call.1} parent=5 // pred_check
        %p1993 = pneg %p1992
      $region42: #{tpu_custom_call.1} parent=5 // pred_check_branch
        %1995 = sbr.rel (%p1993) target = $region44
      $region43: #{tpu_custom_call.1} parent=5 // pred_region
        %s1996 = ssub.s32 %s15, 2
        // Predicated region
        $region45: #{tpu_custom_call.1} parent=43 // pred_check
          %p1997 = pneg %p91
        $region46: #{tpu_custom_call.1} parent=43 // pred_check_branch
          %1999 = sbr.rel (%p1997) target = $region48
        $region47: #{tpu_custom_call.1} parent=43 // pred_region
          %s2000 = sand.u32 %s76, 1
          %s2001 = scalar_lea.sflag [#allocation5], %s2000
          %s2002 = sand.u32 %s76, 1
          %s2003 = smul.addr %s2002, 256
          %s2004 = scalar_lea.vmem [#allocation8], %s2003
          %2005 = dma.done %s2001, 4096
        $region48: #{tpu_custom_call.1} parent=43 // pred_fallthru
          _
      $region44: #{tpu_custom_call.1} parent=5 // pred_fallthru
        _
    $region6: #{tpu_custom_call.1} parent=1 // loop_footer
      %s19 = sadd.s32 1, %s15
    $region7: #{tpu_custom_call.1} parent=1 // loop_footer_branch
      %14 = sbr.rel target = $region3
    $region8: #{tpu_custom_call.1} parent=1 // loop_exit
      _
    %2006 = vsyncpa [#allocation4], 1
    %s2007 = scalar_lea.sflag [#allocation4], 1
    %2008 = vsyncpa %s2007, 1
    %2009 = vsyncpa [#allocation7], 1
    %s2010 = scalar_lea.sflag [#allocation7], 1
    %2011 = vsyncpa %s2010, 1
    %2012 = vsyncpa [#allocation5], 1
    %s2013 = scalar_lea.sflag [#allocation5], 1
    %2014 = vsyncpa %s2013, 1

// kernel: tpu_custom_call.1
$region0: #{tpu_custom_call.1}
  #allocation0 [shape = 'u32[]', space=smem, size = 0x4, offset = 0x4, fixed_abs, tag = 'smem constant byte address 0x4 - core index']
  #allocation1 [shape = 'u32[144,128]{1,0:T(1,128)}', space=vmem, size = 0x12000, scoped, tag = 'internal scratch']
  #allocation2 [shape = 'bf16[256,128]{1,0:T(16,128)(2,1)}', space=vmem, size = 0x10000, scoped, tag = 'scratch operand']
  %s0 = inlined_call_operand.hbm [shape: bf16[256,256], index: 0, kind: input, shape index: {}]
  %s1 = inlined_call_operand.hbm [shape: bf16[256,256], index: 1, kind: input, shape index: {}]
  %s2 = inlined_call_operand.hbm [shape: f32[256,256], index: 2, kind: output, shape index: {}]
  %s3 = sld [smem:[#allocation0]]
  $region49: #{tpu_custom_call.1} parent=0
    _
  %s5 = ssub.s32 1, %s3
  %s6 = scalar_select 0, %s5, %s3
  $region1: #{tpu_custom_call.1} parent=0
    #allocation3 [shape = 'u8[131072]{0}', space=vmem, size = 0x20000, scoped, tag = 'input window, operand 0, single buffered']
    #allocation4 [shape = 's32[2]{0}', space=sflag, size = 0x8, scoped, tag = 'scoped memory for tpu_custom_call.1']
    #allocation5 [shape = 's32[2]{0}', space=sflag, size = 0x8, scoped, tag = 'scoped memory for tpu_custom_call.1']
    #allocation6 [shape = 'u8[131072]{0}', space=vmem, size = 0x20000, scoped, tag = 'input window, operand 1']
    #allocation7 [shape = 's32[2]{0}', space=sflag, size = 0x8, scoped, tag = 'scoped memory for tpu_custom_call.1']
    #allocation8 [shape = 'u8[262144]{0}', space=vmem, size = 0x40000, scoped, tag = 'output window, operand 0']
    %7 = vsyncpa [#allocation4], 0
    %8 = vsyncpa [#allocation7], 0
    %s9 = scalar_lea.sflag [#allocation7], 1
    %10 = vsyncpa %s9, 0
    %11 = vsyncpa [#allocation5], 0
    %s12 = scalar_lea.sflag [#allocation5], 1
    %13 = vsyncpa %s12, 0
    loop: start=0, step=1, limit=4
    $region2: #{tpu_custom_call.1} parent=1 // loop_pre_header
      _
    $region3: #{tpu_custom_call.1} parent=1 // loop_header
      %s15 = sphi 0, %s19
      %p16 = scmp.ge.s32.totalorder %s15, 4
      %s23 = sphi 0, %s23
      %s25 = sphi 0, %s23
      %s26 = sphi 0, %s25
      %s40 = sphi 0, %s26
      %s46 = sphi 0, %s48
      %s49 = sphi 0, %s46
      %s50 = sphi 0, %s49
      %s66 = sphi 0, %s50
      %s72 = sphi 0, %s74
      %s75 = sphi 0, %s72
      %s76 = sphi 0, %s75
      %s92 = sphi 0, %s76
    $region4: #{tpu_custom_call.1} parent=1 // loop_header_branch
      %18 = sbr.rel (%p16) target = $region8
    $region5: #{tpu_custom_call.1} parent=1 // loop_body
      %s20 = ssub.s32 %s15, 1
      %s21 = ssub.s32 %s15, 2
      %s22 = sadd.s32 %s15, 1
      %s24 = sadd.s32 %s23, 1
      %p27 = scmp.eq.s32.totalorder %s15, 1
      %p28 = scmp.ne.s32.totalorder %s23, %s25
      %p29 = scmp.eq.s32.totalorder %s15, 0
      %p30 = por %p28, %p29
      %p31 = scmp.ne.s32.totalorder %s23, %s25
      %p32 = scmp.eq.s32.totalorder %s20, 1
      %p33 = por %p31, %p32
      %p34 = scmp.ne.s32.totalorder %s25, %s26
      %p35 = scmp.eq.s32.totalorder %s20, 0
      %p36 = por %p34, %p35
      %p37 = scmp.ne.s32.totalorder %s25, %s26
      %p38 = scmp.eq.s32.totalorder %s21, 1
      %p39 = por %p37, %p38
      %p41 = scmp.ne.s32.totalorder %s26, %s40
      %p42 = scmp.eq.s32.totalorder %s21, 0
      %p43 = por %p41, %p42
      %s44 = ssub.s32 %s15, %s22
      %p45 = scmp.eq.s32.totalorder %s44, 0
      %s47 = sadd.s32 %s46, 1
      %s48 = scalar_select %p45, %s46, %s47
      %p51 = pneg %p45
      %p52 = scmp.eq.s32.totalorder %s15, 1
      %p53 = por %p51, %p52
      %p54 = scmp.ne.s32.totalorder %s46, %s49
      %p55 = scmp.eq.s32.totalorder %s15, 0
      %p56 = por %p54, %p55
      %p57 = scmp.ne.s32.totalorder %s46, %s49
      %p58 = scmp.eq.s32.totalorder %s20, 1
      %p59 = por %p57, %p58
      %p60 = scmp.ne.s32.totalorder %s49, %s50
      %p61 = scmp.eq.s32.totalorder %s20, 0
      %p62 = por %p60, %p61
      %p63 = scmp.ne.s32.totalorder %s49, %s50
      %p64 = scmp.eq.s32.totalorder %s21, 1
      %p65 = por %p63, %p64
      %p67 = scmp.ne.s32.totalorder %s50, %s66
      %p68 = scmp.eq.s32.totalorder %s21, 0
      %p69 = por %p67, %p68
      %s70 = ssub.s32 %s15, %s22
      %p71 = scmp.eq.s32.totalorder %s70, 0
      %s73 = sadd.s32 %s72, 1
      %s74 = scalar_select %p71, %s72, %s73
      %p77 = pneg %p71
      %p78 = scmp.eq.s32.totalorder %s15, 1
      %p79 = por %p77, %p78
      %p80 = scmp.ne.s32.totalorder %s72, %s75
      %p81 = scmp.eq.s32.totalorder %s15, 0
      %p82 = por %p80, %p81
      %p83 = scmp.ne.s32.totalorder %s72, %s75
      %p84 = scmp.eq.s32.totalorder %s20, 1
      %p85 = por %p83, %p84
      %p86 = scmp.ne.s32.totalorder %s75, %s76
      %p87 = scmp.eq.s32.totalorder %s20, 0
      %p88 = por %p86, %p87
      %p89 = scmp.ne.s32.totalorder %s75, %s76
      %p90 = scmp.eq.s32.totalorder %s21, 1
      %p91 = por %p89, %p90
      %p93 = scmp.ne.s32.totalorder %s76, %s92
      %p94 = scmp.eq.s32.totalorder %s21, 0
      %p95 = por %p93, %p94
      %p96 = scmp.le.s32.totalorder 1, %s15
      %p97 = scmp.lt.s32.totalorder %s15, 3
      %p98 = pnand %p96, %p97
      %p99 = pneg %p98
      // Predicated region
      $region9: #{tpu_custom_call.1} parent=5 // pred_check
        _
      $region10: #{tpu_custom_call.1} parent=5 // pred_check_branch
        %101 = sbr.rel (%p98) target = $region12
      $region11: #{tpu_custom_call.1} parent=5 // pred_region
        %s102 = ssub.s32 %s15, 1
        // Predicated region
        $region13: #{tpu_custom_call.1} parent=11 // pred_check
          %p103 = pneg %p36
        $region14: #{tpu_custom_call.1} parent=11 // pred_check_branch
          %105 = sbr.rel (%p103) target = $region16
        $region15: #{tpu_custom_call.1} parent=11 // pred_region
          %s107 = ssub.s32 4096, 4096
          %108 = vsyncadd [#allocation4], %s107
          %s109 = sshll.u32 [#allocation3], 4
          %s110 = int_to_ptr.vmem [resolvable:$true] %s109
          %115 = dma.hbm_to_vmem [thread:$0]  %s0, 4096, %s110, [#allocation4], 128, 128, 8
        $region16: #{tpu_custom_call.1} parent=11 // pred_fallthru
          _
      $region12: #{tpu_custom_call.1} parent=5 // pred_fallthru
        _
      %p116 = scmp.lt.s32.totalorder %s15, 2
      // Predicated region
      $region17: #{tpu_custom_call.1} parent=5 // pred_check
        %p117 = pneg %p116
      $region18: #{tpu_custom_call.1} parent=5 // pred_check_branch
        %119 = sbr.rel (%p117) target = $region20
      $region19: #{tpu_custom_call.1} parent=5 // pred_region
        // Predicated region
        $region21: #{tpu_custom_call.1} parent=19 // pred_check
          %p120 = pneg %p56
        $region22: #{tpu_custom_call.1} parent=19 // pred_check_branch
          %122 = sbr.rel (%p120) target = $region24
        $region23: #{tpu_custom_call.1} parent=19 // pred_region
          %s123 = sand.u32 %s46, 1
          %s124 = scalar_lea.sflag [#allocation7], %s123
          %s125 = sand.u32 %s46, 1
          %s126 = smul.addr %s125, 128
          %s127 = scalar_lea.vmem [#allocation6], %s126
          %s129 = ssub.s32 2048, 2048
          %130 = vsyncadd %s124, %s129
          %s131 = smul.addr %s15, 64
          %s132 = scalar_lea.hbm %s1, %s131
          %s133 = sshll.u32 %s127, 4
          %s134 = int_to_ptr.vmem [resolvable:$true] %s133
          %139 = dma.hbm_to_vmem [thread:$0]  %s132, 2048, %s134, %s124, 128, 64, 4
        $region24: #{tpu_custom_call.1} parent=19 // pred_fallthru
          _
      $region20: #{tpu_custom_call.1} parent=5 // pred_fallthru
        _
      %p140 = scmp.le.s32.totalorder 1, %s15
      %p141 = scmp.lt.s32.totalorder %s15, 3
      %p142 = pnand %p140, %p141
      %p143 = pneg %p142
      // Predicated region
      $region25: #{tpu_custom_call.1} parent=5 // pred_check
        _
      $region26: #{tpu_custom_call.1} parent=5 // pred_check_branch
        %145 = sbr.rel (%p142) target = $region28
      $region27: #{tpu_custom_call.1} parent=5 // pred_region
        %s146 = ssub.s32 %s15, 1
        // Predicated region
        $region29: #{tpu_custom_call.1} parent=27 // pred_check
          %p147 = pneg %p36
        $region30: #{tpu_custom_call.1} parent=27 // pred_check_branch
          %149 = sbr.rel (%p147) target = $region32
        $region31: #{tpu_custom_call.1} parent=27 // pred_region
          %150 = dma.done [#allocation4], 4096
        $region32: #{tpu_custom_call.1} parent=27 // pred_fallthru
          _
        %s151 = sand.u32 %s49, 1
        %s152 = scalar_lea.sflag [#allocation7], %s151
        %s153 = sand.u32 %s49, 1
        %s154 = smul.addr %s153, 128
        %s155 = scalar_lea.vmem [#allocation6], %s154
        // Predicated region
        $region33: #{tpu_custom_call.1} parent=27 // pred_check
          %p156 = pneg %p62
        $region34: #{tpu_custom_call.1} parent=27 // pred_check_branch
          %158 = sbr.rel (%p156) target = $region36
        $region35: #{tpu_custom_call.1} parent=27 // pred_region
          %159 = dma.done %s152, 2048
        $region36: #{tpu_custom_call.1} parent=27 // pred_fallthru
          _
        %p160 = pneg %p36
        %p161 = pneg %p33
        %s162 = sand.u32 %s49, 1
        %s163 = scalar_lea.sflag [#allocation7], %s162
        %s164 = sand.u32 %s49, 1
        %s165 = smul.addr %s164, 128
        %s166 = scalar_lea.vmem [#allocation6], %s165
        %p167 = pneg %p62
        %p168 = pneg %p59
        %p169 = pneg %p88
        %p170 = pneg %p85
        %s171 = sand.u32 %s75, 1
        %s172 = scalar_lea.sflag [#allocation5], %s171
        %s173 = sand.u32 %s75, 1
        %s174 = smul.addr %s173, 256
        %s175 = scalar_lea.vmem [#allocation8], %s174
        %v177 = vld [vmem:[%s155] sm:$0xf]
        %v178 = vld [vmem:[%s155 + $0x4] sm:$0xf]
        %v179 = vld [vmem:[%s155 + $0x8] sm:$0xf]
        %v180 = vld [vmem:[%s155 + $0xc] sm:$0xf]
        %v181 = vld [vmem:[%s155 + $0x10] sm:$0xf]
        %v182 = vld [vmem:[%s155 + $0x14] sm:$0xf]
        %v183 = vld [vmem:[%s155 + $0x18] sm:$0xf]
        %v184 = vld [vmem:[%s155 + $0x1c] sm:$0xf]
        %v185 = vld [vmem:[%s155 + $0x20] sm:$0xf]
        %v186 = vld [vmem:[%s155 + $0x24] sm:$0xf]
        %v187 = vld [vmem:[%s155 + $0x28] sm:$0xf]
        %v188 = vld [vmem:[%s155 + $0x2c] sm:$0xf]
        %v189 = vld [vmem:[%s155 + $0x30] sm:$0xf]
        %v190 = vld [vmem:[%s155 + $0x34] sm:$0xf]
        %v191 = vld [vmem:[%s155 + $0x38] sm:$0xf]
        %v192 = vld [vmem:[%s155 + $0x3c] sm:$0xf]
        %v193 = vld [vmem:[%s155 + $0x40] sm:$0xf]
        %v194 = vld [vmem:[%s155 + $0x44] sm:$0xf]
        %v195 = vld [vmem:[%s155 + $0x48] sm:$0xf]
        %v196 = vld [vmem:[%s155 + $0x4c] sm:$0xf]
        %v197 = vld [vmem:[%s155 + $0x50] sm:$0xf]
        %v198 = vld [vmem:[%s155 + $0x54] sm:$0xf]
        %v199 = vld [vmem:[%s155 + $0x58] sm:$0xf]
        %v200 = vld [vmem:[%s155 + $0x5c] sm:$0xf]
        %v201 = vld [vmem:[%s155 + $0x60] sm:$0xf]
        %v202 = vld [vmem:[%s155 + $0x64] sm:$0xf]
        %v203 = vld [vmem:[%s155 + $0x68] sm:$0xf]
        %v204 = vld [vmem:[%s155 + $0x6c] sm:$0xf]
        %v205 = vld [vmem:[%s155 + $0x70] sm:$0xf]
        %v206 = vld [vmem:[%s155 + $0x74] sm:$0xf]
        %v207 = vld [vmem:[%s155 + $0x78] sm:$0xf]
        %v208 = vld [vmem:[%s155 + $0x7c] sm:$0xf]
        %v209 = vunpack.c.l.bf16 %v177
        %v210 = vunpack.c.l.bf16 %v178
        %v211 = vunpack.c.l.bf16 %v179
        %v212 = vunpack.c.l.bf16 %v180
        %v213 = vunpack.c.l.bf16 %v181
        %v214 = vunpack.c.l.bf16 %v182
        %v215 = vunpack.c.l.bf16 %v183
        %v216 = vunpack.c.l.bf16 %v184
        %v217 = vunpack.c.l.bf16 %v185
        %v218 = vunpack.c.l.bf16 %v186
        %v219 = vunpack.c.l.bf16 %v187
        %v220 = vunpack.c.l.bf16 %v188
        %v221 = vunpack.c.l.bf16 %v189
        %v222 = vunpack.c.l.bf16 %v190
        %v223 = vunpack.c.l.bf16 %v191
        %v224 = vunpack.c.l.bf16 %v192
        %v225 = vunpack.c.l.bf16 %v193
        %v226 = vunpack.c.l.bf16 %v194
        %v227 = vunpack.c.l.bf16 %v195
        %v228 = vunpack.c.l.bf16 %v196
        %v229 = vunpack.c.l.bf16 %v197
        %v230 = vunpack.c.l.bf16 %v198
        %v231 = vunpack.c.l.bf16 %v199
        %v232 = vunpack.c.l.bf16 %v200
        %v233 = vunpack.c.l.bf16 %v201
        %v234 = vunpack.c.l.bf16 %v202
        %v235 = vunpack.c.l.bf16 %v203
        %v236 = vunpack.c.l.bf16 %v204
        %v237 = vunpack.c.l.bf16 %v205
        %v238 = vunpack.c.l.bf16 %v206
        %v239 = vunpack.c.l.bf16 %v207
        %v240 = vunpack.c.l.bf16 %v208
        %241 = vst [vmem:[%s175] sm:$0xff] %v209
        %242 = vst [vmem:[%s175 + $0x8] sm:$0xff] %v210
        %243 = vst [vmem:[%s175 + $0x10] sm:$0xff] %v211
        %244 = vst [vmem:[%s175 + $0x18] sm:$0xff] %v212
        %245 = vst [vmem:[%s175 + $0x20] sm:$0xff] %v213
        %246 = vst [vmem:[%s175 + $0x28] sm:$0xff] %v214
        %247 = vst [vmem:[%s175 + $0x30] sm:$0xff] %v215
        %248 = vst [vmem:[%s175 + $0x38] sm:$0xff] %v216
        %249 = vst [vmem:[%s175 + $0x40] sm:$0xff] %v217
        %250 = vst [vmem:[%s175 + $0x48] sm:$0xff] %v218
        %251 = vst [vmem:[%s175 + $0x50] sm:$0xff] %v219
        %252 = vst [vmem:[%s175 + $0x58] sm:$0xff] %v220
        %253 = vst [vmem:[%s175 + $0x60] sm:$0xff] %v221
        %254 = vst [vmem:[%s175 + $0x68] sm:$0xff] %v222
        %255 = vst [vmem:[%s175 + $0x70] sm:$0xff] %v223
        %256 = vst [vmem:[%s175 + $0x78] sm:$0xff] %v224
        %257 = vst [vmem:[%s175 + $0x80] sm:$0xff] %v225
        %258 = vst [vmem:[%s175 + $0x88] sm:$0xff] %v226
        %259 = vst [vmem:[%s175 + $0x90] sm:$0xff] %v227
        %260 = vst [vmem:[%s175 + $0x98] sm:$0xff] %v228
        %261 = vst [vmem:[%s175 + $0xa0] sm:$0xff] %v229
        %262 = vst [vmem:[%s175 + $0xa8] sm:$0xff] %v230
        %263 = vst [vmem:[%s175 + $0xb0] sm:$0xff] %v231
        %264 = vst [vmem:[%s175 + $0xb8] sm:$0xff] %v232
        %265 = vst [vmem:[%s175 + $0xc0] sm:$0xff] %v233
        %266 = vst [vmem:[%s175 + $0xc8] sm:$0xff] %v234
        %267 = vst [vmem:[%s175 + $0xd0] sm:$0xff] %v235
        %268 = vst [vmem:[%s175 + $0xd8] sm:$0xff] %v236
        %269 = vst [vmem:[%s175 + $0xe0] sm:$0xff] %v237
        %270 = vst [vmem:[%s175 + $0xe8] sm:$0xff] %v238
        %271 = vst [vmem:[%s175 + $0xf0] sm:$0xff] %v239
        %272 = vst [vmem:[%s175 + $0xf8] sm:$0xff] %v240
        %v305 = vunpack.c.l.b16 %v177
        %v306 = vunpack.c.l.b16 %v178
        %v307 = vunpack.c.l.b16 %v179
        %v308 = vunpack.c.l.b16 %v180
        %v309 = vunpack.c.l.b16 %v181
        %v310 = vunpack.c.l.b16 %v182
        %v311 = vunpack.c.l.b16 %v183
        %v312 = vunpack.c.l.b16 %v184
        %v313 = vunpack.c.l.b16 %v185
        %v314 = vunpack.c.l.b16 %v186
        %v315 = vunpack.c.l.b16 %v187
        %v316 = vunpack.c.l.b16 %v188
        %v317 = vunpack.c.l.b16 %v189
        %v318 = vunpack.c.l.b16 %v190
        %v319 = vunpack.c.l.b16 %v191
        %v320 = vunpack.c.l.b16 %v192
        %v321 = vunpack.c.l.b16 %v193
        %v322 = vunpack.c.l.b16 %v194
        %v323 = vunpack.c.l.b16 %v195
        %v324 = vunpack.c.l.b16 %v196
        %v325 = vunpack.c.l.b16 %v197
        %v326 = vunpack.c.l.b16 %v198
        %v327 = vunpack.c.l.b16 %v199
        %v328 = vunpack.c.l.b16 %v200
        %v329 = vunpack.c.l.b16 %v201
        %v330 = vunpack.c.l.b16 %v202
        %v331 = vunpack.c.l.b16 %v203
        %v332 = vunpack.c.l.b16 %v204
        %v333 = vunpack.c.l.b16 %v205
        %v334 = vunpack.c.l.b16 %v206
        %v335 = vunpack.c.l.b16 %v207
        %v336 = vunpack.c.l.b16 %v208
        %v337 = vpack.c.b16 %v306, %v305
        %v338 = vpack.c.b16 %v308, %v307
        %v339 = vpack.c.b16 %v310, %v309
        %v340 = vpack.c.b16 %v312, %v311
        %v341 = vpack.c.b16 %v314, %v313
        %v342 = vpack.c.b16 %v316, %v315
        %v343 = vpack.c.b16 %v318, %v317
        %v344 = vpack.c.b16 %v320, %v319
        %v345 = vpack.c.b16 %v322, %v321
        %v346 = vpack.c.b16 %v324, %v323
        %v347 = vpack.c.b16 %v326, %v325
        %v348 = vpack.c.b16 %v328, %v327
        %v349 = vpack.c.b16 %v330, %v329
        %v350 = vpack.c.b16 %v332, %v331
        %v351 = vpack.c.b16 %v334, %v333
        %v352 = vpack.c.b16 %v336, %v335
        %369 = vst [vmem:[#allocation2] sm:$0xff] %v337
        %370 = vst [vmem:[#allocation2 + $0x8] sm:$0xff] %v338
        %371 = vst [vmem:[#allocation2 + $0x10] sm:$0xff] %v339
        %372 = vst [vmem:[#allocation2 + $0x18] sm:$0xff] %v340
        %373 = vst [vmem:[#allocation2 + $0x20] sm:$0xff] %v341
        %374 = vst [vmem:[#allocation2 + $0x28] sm:$0xff] %v342
        %375 = vst [vmem:[#allocation2 + $0x30] sm:$0xff] %v343
        %376 = vst [vmem:[#allocation2 + $0x38] sm:$0xff] %v344
        %377 = vst [vmem:[#allocation2 + $0x40] sm:$0xff] %v345
        %378 = vst [vmem:[#allocation2 + $0x48] sm:$0xff] %v346
        %379 = vst [vmem:[#allocation2 + $0x50] sm:$0xff] %v347
        %380 = vst [vmem:[#allocation2 + $0x58] sm:$0xff] %v348
        %381 = vst [vmem:[#allocation2 + $0x60] sm:$0xff] %v349
        %382 = vst [vmem:[#allocation2 + $0x68] sm:$0xff] %v350
        %383 = vst [vmem:[#allocation2 + $0x70] sm:$0xff] %v351
        %384 = vst [vmem:[#allocation2 + $0x78] sm:$0xff] %v352
        %v385 = vld [vmem:[#allocation3] sm:$0xff]
        %v386 = vld [vmem:[#allocation3 + $0x8] sm:$0xff]
        %v387 = vld [vmem:[#allocation3 + $0x10] sm:$0xff]
        %v388 = vld [vmem:[#allocation3 + $0x18] sm:$0xff]
        %v389 = vld [vmem:[#allocation3 + $0x20] sm:$0xff]
        %v390 = vld [vmem:[#allocation3 + $0x28] sm:$0xff]
        %v391 = vld [vmem:[#allocation3 + $0x30] sm:$0xff]
        %v392 = vld [vmem:[#allocation3 + $0x38] sm:$0xff]
        %v393 = vld [vmem:[#allocation3 + $0x40] sm:$0xff]
        %v394 = vld [vmem:[#allocation3 + $0x48] sm:$0xff]
        %v395 = vld [vmem:[#allocation3 + $0x50] sm:$0xff]
        %v396 = vld [vmem:[#allocation3 + $0x58] sm:$0xff]
        %v397 = vld [vmem:[#allocation3 + $0x60] sm:$0xff]
        %v398 = vld [vmem:[#allocation3 + $0x68] sm:$0xff]
        %v399 = vld [vmem:[#allocation3 + $0x70] sm:$0xff]
        %v400 = vld [vmem:[#allocation3 + $0x78] sm:$0xff]
        %v401 = vld [vmem:[#allocation3 + $0x80] sm:$0xff]
        %v402 = vld [vmem:[#allocation3 + $0x88] sm:$0xff]
        %v403 = vld [vmem:[#allocation3 + $0x90] sm:$0xff]
        %v404 = vld [vmem:[#allocation3 + $0x98] sm:$0xff]
        %v405 = vld [vmem:[#allocation3 + $0xa0] sm:$0xff]
        %v406 = vld [vmem:[#allocation3 + $0xa8] sm:$0xff]
        %v407 = vld [vmem:[#allocation3 + $0xb0] sm:$0xff]
        %v408 = vld [vmem:[#allocation3 + $0xb8] sm:$0xff]
        %v409 = vld [vmem:[#allocation3 + $0xc0] sm:$0xff]
        %v410 = vld [vmem:[#allocation3 + $0xc8] sm:$0xff]
        %v411 = vld [vmem:[#allocation3 + $0xd0] sm:$0xff]
        %v412 = vld [vmem:[#allocation3 + $0xd8] sm:$0xff]
        %v413 = vld [vmem:[#allocation3 + $0xe0] sm:$0xff]
        %v414 = vld [vmem:[#allocation3 + $0xe8] sm:$0xff]
        %v415 = vld [vmem:[#allocation3 + $0xf0] sm:$0xff]
        %v416 = vld [vmem:[#allocation3 + $0xf8] sm:$0xff]
        %v417 = vld [vmem:[#allocation2] sm:$0xff]
        %v418 = vld [vmem:[#allocation2 + $0x8] sm:$0xff]
        %v419 = vld [vmem:[#allocation2 + $0x10] sm:$0xff]
        %v420 = vld [vmem:[#allocation2 + $0x18] sm:$0xff]
        %v421 = vld [vmem:[#allocation2 + $0x20] sm:$0xff]
        %v422 = vld [vmem:[#allocation2 + $0x28] sm:$0xff]
        %v423 = vld [vmem:[#allocation2 + $0x30] sm:$0xff]
        %v424 = vld [vmem:[#allocation2 + $0x38] sm:$0xff]
        %v425 = vld [vmem:[#allocation2 + $0x40] sm:$0xff]
        %v426 = vld [vmem:[#allocation2 + $0x48] sm:$0xff]
        %v427 = vld [vmem:[#allocation2 + $0x50] sm:$0xff]
        %v428 = vld [vmem:[#allocation2 + $0x58] sm:$0xff]
        %v429 = vld [vmem:[#allocation2 + $0x60] sm:$0xff]
        %v430 = vld [vmem:[#allocation2 + $0x68] sm:$0xff]
        %v431 = vld [vmem:[#allocation2 + $0x70] sm:$0xff]
        %v432 = vld [vmem:[#allocation2 + $0x78] sm:$0xff]
        %v465 = vunpack.c.l.b16 %v385
        %v466 = vunpack.c.h.b16 %v385
        %v467 = vunpack.c.l.b16 %v386
        %v468 = vunpack.c.h.b16 %v386
        %v469 = vunpack.c.l.b16 %v387
        %v470 = vunpack.c.h.b16 %v387
        %v471 = vunpack.c.l.b16 %v388
        %v472 = vunpack.c.h.b16 %v388
        %v473 = vunpack.c.l.b16 %v389
        %v474 = vunpack.c.h.b16 %v389
        %v475 = vunpack.c.l.b16 %v390
        %v476 = vunpack.c.h.b16 %v390
        %v477 = vunpack.c.l.b16 %v391
        %v478 = vunpack.c.h.b16 %v391
        %v479 = vunpack.c.l.b16 %v392
        %v480 = vunpack.c.h.b16 %v392
        %v481 = vunpack.c.l.b16 %v393
        %v482 = vunpack.c.h.b16 %v393
        %v483 = vunpack.c.l.b16 %v394
        %v484 = vunpack.c.h.b16 %v394
        %v485 = vunpack.c.l.b16 %v395
        %v486 = vunpack.c.h.b16 %v395
        %v487 = vunpack.c.l.b16 %v396
        %v488 = vunpack.c.h.b16 %v396
        %v489 = vunpack.c.l.b16 %v397
        %v490 = vunpack.c.h.b16 %v397
        %v491 = vunpack.c.l.b16 %v398
        %v492 = vunpack.c.h.b16 %v398
        %v493 = vunpack.c.l.b16 %v399
        %v494 = vunpack.c.h.b16 %v399
        %v495 = vunpack.c.l.b16 %v400
        %v496 = vunpack.c.h.b16 %v400
        %v497 = vunpack.c.l.b16 %v401
        %v498 = vunpack.c.h.b16 %v401
        %v499 = vunpack.c.l.b16 %v402
        %v500 = vunpack.c.h.b16 %v402
        %v501 = vunpack.c.l.b16 %v403
        %v502 = vunpack.c.h.b16 %v403
        %v503 = vunpack.c.l.b16 %v404
        %v504 = vunpack.c.h.b16 %v404
        %v505 = vunpack.c.l.b16 %v405
        %v506 = vunpack.c.h.b16 %v405
        %v507 = vunpack.c.l.b16 %v406
        %v508 = vunpack.c.h.b16 %v406
        %v509 = vunpack.c.l.b16 %v407
        %v510 = vunpack.c.h.b16 %v407
        %v511 = vunpack.c.l.b16 %v408
        %v512 = vunpack.c.h.b16 %v408
        %v513 = vunpack.c.l.b16 %v409
        %v514 = vunpack.c.h.b16 %v409
        %v515 = vunpack.c.l.b16 %v410
        %v516 = vunpack.c.h.b16 %v410
        %v517 = vunpack.c.l.b16 %v411
        %v518 = vunpack.c.h.b16 %v411
        %v519 = vunpack.c.l.b16 %v412
        %v520 = vunpack.c.h.b16 %v412
        %v521 = vunpack.c.l.b16 %v413
        %v522 = vunpack.c.h.b16 %v413
        %v523 = vunpack.c.l.b16 %v414
        %v524 = vunpack.c.h.b16 %v414
        %v525 = vunpack.c.l.b16 %v415
        %v526 = vunpack.c.h.b16 %v415
        %v527 = vunpack.c.l.b16 %v416
        %v528 = vunpack.c.h.b16 %v416
        %v529 = vpack.c.b16 %v467, %v465
        %v530 = vpack.c.b16 %v468, %v466
        %v531 = vpack.c.b16 %v471, %v469
        %v532 = vpack.c.b16 %v472, %v470
        %v533 = vpack.c.b16 %v475, %v473
        %v534 = vpack.c.b16 %v476, %v474
        %v535 = vpack.c.b16 %v479, %v477
        %v536 = vpack.c.b16 %v480, %v478
        %v537 = vpack.c.b16 %v483, %v481
        %v538 = vpack.c.b16 %v484, %v482
        %v539 = vpack.c.b16 %v487, %v485
        %v540 = vpack.c.b16 %v488, %v486
        %v541 = vpack.c.b16 %v491, %v489
        %v542 = vpack.c.b16 %v492, %v490
        %v543 = vpack.c.b16 %v495, %v493
        %v544 = vpack.c.b16 %v496, %v494
        %v545 = vpack.c.b16 %v499, %v497
        %v546 = vpack.c.b16 %v500, %v498
        %v547 = vpack.c.b16 %v503, %v501
        %v548 = vpack.c.b16 %v504, %v502
        %v549 = vpack.c.b16 %v507, %v505
        %v550 = vpack.c.b16 %v508, %v506
        %v551 = vpack.c.b16 %v511, %v509
        %v552 = vpack.c.b16 %v512, %v510
        %v553 = vpack.c.b16 %v515, %v513
        %v554 = vpack.c.b16 %v516, %v514
        %v555 = vpack.c.b16 %v519, %v517
        %v556 = vpack.c.b16 %v520, %v518
        %v557 = vpack.c.b16 %v523, %v521
        %v558 = vpack.c.b16 %v524, %v522
        %v559 = vpack.c.b16 %v527, %v525
        %v560 = vpack.c.b16 %v528, %v526
        %593 = vmatprep.subr.bf16.mxu0 0
        %594 = vmatpush1.bf16.msra.mxu0 %v417
        %595 = vmatprep.subr.bf16.mxu0 0
        %596 = vmatpush1.bf16.msra.mxu0 %v418
        %597 = vmatprep.subr.bf16.mxu0 0
        %598 = vmatpush1.bf16.msra.mxu0 %v419
        %599 = vmatprep.subr.bf16.mxu0 0
        %600 = vmatpush1.bf16.msra.mxu0 %v420
        %601 = vmatprep.subr.bf16.mxu0 0
        %602 = vmatpush1.bf16.msra.mxu0 %v421
        %603 = vmatprep.subr.bf16.mxu0 0
        %604 = vmatpush1.bf16.msra.mxu0 %v422
        %605 = vmatprep.subr.bf16.mxu0 0
        %606 = vmatpush1.bf16.msra.mxu0 %v423
        %607 = vmatprep.subr.bf16.mxu0 0
        %608 = vmatpush1.bf16.msra.mxu0 %v424
        %609 = vmatprep.subr.bf16.mxu0 0
        %610 = vmatpush1.bf16.msra.mxu0 %v425
        %611 = vmatprep.subr.bf16.mxu0 0
        %612 = vmatpush1.bf16.msra.mxu0 %v426
        %613 = vmatprep.subr.bf16.mxu0 0
        %614 = vmatpush1.bf16.msra.mxu0 %v427
        %615 = vmatprep.subr.bf16.mxu0 0
        %616 = vmatpush1.bf16.msra.mxu0 %v428
        %617 = vmatprep.subr.bf16.mxu0 0
        %618 = vmatpush1.bf16.msra.mxu0 %v429
        %619 = vmatprep.subr.bf16.mxu0 0
        %620 = vmatpush1.bf16.msra.mxu0 %v430
        %621 = vmatprep.subr.bf16.mxu0 0
        %622 = vmatpush1.bf16.msra.mxu0 %v431
        %623 = vmatprep.subr.bf16.mxu0 0
        %624 = vmatpush1.bf16.msra.mxu0 %v432
        %625 = vmatprep.mubr.bf16.mxu0 %v530
        %626 = vmatmul.mubr.bf16.gmra.mrb[0].mxu0 %v529
        %v627 = vpop.f32.mrb[0].mxu0
        %v628 = vadd.f32 0.0, %v627
        %v629 = vpop.f32.mrb[0].mxu0
        %v630 = vpop.f32.mrb[0].mxu0
        %v631 = vadd.f32 0.0, %v630
        %v632 = vpop.f32.mrb[0].mxu0
        %633 = vmatprep.mubr.bf16.mxu0 %v532
        %634 = vmatmul.mubr.bf16.gmra.mrb[0].mxu0 %v531
        %v635 = vpop.f32.mrb[0].mxu0
        %v636 = vadd.f32 0.0, %v635
        %v637 = vpop.f32.mrb[0].mxu0
        %v638 = vpop.f32.mrb[0].mxu0
        %v639 = vadd.f32 0.0, %v638
        %v640 = vpop.f32.mrb[0].mxu0
        %641 = vmatprep.mubr.bf16.mxu0 %v534
        %642 = vmatmul.mubr.bf16.gmra.mrb[0].mxu0 %v533
        %v643 = vpop.f32.mrb[0].mxu0
        %v644 = vadd.f32 0.0, %v643
        %v645 = vpop.f32.mrb[0].mxu0
        %v646 = vpop.f32.mrb[0].mxu0
        %v647 = vadd.f32 0.0, %v646
        %v648 = vpop.f32.mrb[0].mxu0
        %649 = vmatprep.mubr.bf16.mxu0 %v536
        %650 = vmatmul.mubr.bf16.gmra.mrb[0].mxu0 %v535
        %v651 = vpop.f32.mrb[0].mxu0
        %v652 = vadd.f32 0.0, %v651
        %v653 = vpop.f32.mrb[0].mxu0
        %v654 = vpop.f32.mrb[0].mxu0
        %v655 = vadd.f32 0.0, %v654
        %v656 = vpop.f32.mrb[0].mxu0
        %657 = vmatprep.mubr.bf16.mxu0 %v538
        %658 = vmatmul.mubr.bf16.gmra.mrb[0].mxu0 %v537
        %v659 = vpop.f32.mrb[0].mxu0
        %v660 = vadd.f32 0.0, %v659
        %v661 = vpop.f32.mrb[0].mxu0
        %v662 = vpop.f32.mrb[0].mxu0
        %v663 = vadd.f32 0.0, %v662
        %v664 = vpop.f32.mrb[0].mxu0
        %665 = vmatprep.mubr.bf16.mxu0 %v540
        %666 = vmatmul.mubr.bf16.gmra.mrb[0].mxu0 %v539
        %v667 = vpop.f32.mrb[0].mxu0
        %v668 = vadd.f32 0.0, %v667
        %v669 = vpop.f32.mrb[0].mxu0
        %v670 = vpop.f32.mrb[0].mxu0
        %v671 = vadd.f32 0.0, %v670
        %v672 = vpop.f32.mrb[0].mxu0
        %673 = vmatprep.mubr.bf16.mxu0 %v542
        %674 = vmatmul.mubr.bf16.gmra.mrb[0].mxu0 %v541
        %v675 = vpop.f32.mrb[0].mxu0
        %v676 = vadd.f32 0.0, %v675
        %v677 = vpop.f32.mrb[0].mxu0
        %v678 = vpop.f32.mrb[0].mxu0
        %v679 = vadd.f32 0.0, %v678
        %v680 = vpop.f32.mrb[0].mxu0
        %681 = vmatprep.mubr.bf16.mxu0 %v544
        %682 = vmatmul.mubr.bf16.gmra.mrb[0].mxu0 %v543
        %v683 = vpop.f32.mrb[0].mxu0
        %v684 = vadd.f32 0.0, %v683
        %v685 = vpop.f32.mrb[0].mxu0
        %v686 = vpop.f32.mrb[0].mxu0
        %v687 = vadd.f32 0.0, %v686
        %v688 = vpop.f32.mrb[0].mxu0
        %689 = vmatprep.mubr.bf16.mxu0 %v546
        %690 = vmatmul.mubr.bf16.gmra.mrb[0].mxu0 %v545
        %v691 = vpop.f32.mrb[0].mxu0
        %v692 = vadd.f32 0.0, %v691
        %v693 = vpop.f32.mrb[0].mxu0
        %v694 = vpop.f32.mrb[0].mxu0
        %v695 = vadd.f32 0.0, %v694
        %v696 = vpop.f32.mrb[0].mxu0
        %697 = vmatprep.mubr.bf16.mxu0 %v548
        %698 = vmatmul.mubr.bf16.gmra.mrb[0].mxu0 %v547
        %v699 = vpop.f32.mrb[0].mxu0
        %v700 = vadd.f32 0.0, %v699
        %v701 = vpop.f32.mrb[0].mxu0
        %v702 = vpop.f32.mrb[0].mxu0
        %v703 = vadd.f32 0.0, %v702
        %v704 = vpop.f32.mrb[0].mxu0
        %705 = vmatprep.mubr.bf16.mxu0 %v550
        %706 = vmatmul.mubr.bf16.gmra.mrb[0].mxu0 %v549
        %v707 = vpop.f32.mrb[0].mxu0
        %v708 = vadd.f32 0.0, %v707
        %v709 = vpop.f32.mrb[0].mxu0
        %v710 = vpop.f32.mrb[0].mxu0
        %v711 = vadd.f32 0.0, %v710
        %v712 = vpop.f32.mrb[0].mxu0
        %713 = vmatprep.mubr.bf16.mxu0 %v552
        %714 = vmatmul.mubr.bf16.gmra.mrb[0].mxu0 %v551
        %v715 = vpop.f32.mrb[0].mxu0
        %v716 = vadd.f32 0.0, %v715
        %v717 = vpop.f32.mrb[0].mxu0
        %v718 = vpop.f32.mrb[0].mxu0
        %v719 = vadd.f32 0.0, %v718
        %v720 = vpop.f32.mrb[0].mxu0
        %721 = vmatprep.mubr.bf16.mxu0 %v554
        %722 = vmatmul.mubr.bf16.gmra.mrb[0].mxu0 %v553
        %v723 = vpop.f32.mrb[0].mxu0
        %v724 = vadd.f32 0.0, %v723
        %v725 = vpop.f32.mrb[0].mxu0
        %v726 = vpop.f32.mrb[0].mxu0
        %v727 = vadd.f32 0.0, %v726
        %v728 = vpop.f32.mrb[0].mxu0
        %729 = vmatprep.mubr.bf16.mxu0 %v556
        %730 = vmatmul.mubr.bf16.gmra.mrb[0].mxu0 %v555
        %v731 = vpop.f32.mrb[0].mxu0
        %v732 = vadd.f32 0.0, %v731
        %v733 = vpop.f32.mrb[0].mxu0
        %v734 = vpop.f32.mrb[0].mxu0
        %v735 = vadd.f32 0.0, %v734
        %v736 = vpop.f32.mrb[0].mxu0
        %737 = vmatprep.mubr.bf16.mxu0 %v558
        %738 = vmatmul.mubr.bf16.gmra.mrb[0].mxu0 %v557
        %v739 = vpop.f32.mrb[0].mxu0
        %v740 = vadd.f32 0.0, %v739
        %v741 = vpop.f32.mrb[0].mxu0
        %v742 = vpop.f32.mrb[0].mxu0
        %v743 = vadd.f32 0.0, %v742
        %v744 = vpop.f32.mrb[0].mxu0
        %745 = vmatprep.mubr.bf16.mxu0 %v560
        %746 = vmatmul.mubr.bf16.gmra.mrb[0].mxu0 %v559
        %v747 = vpop.f32.mrb[0].mxu0
        %v748 = vadd.f32 0.0, %v747
        %v749 = vpop.f32.mrb[0].mxu0
        %v750 = vpop.f32.mrb[0].mxu0
        %v751 = vadd.f32 0.0, %v750
        %v752 = vpop.f32.mrb[0].mxu0
        %753 = vdwg.mxu0
        %v754 = vld [vmem:[%s175] sm:$0xff]
        %v755 = vld [vmem:[%s175 + $0x8] sm:$0xff]
        %v756 = vld [vmem:[%s175 + $0x10] sm:$0xff]
        %v757 = vld [vmem:[%s175 + $0x18] sm:$0xff]
        %v758 = vld [vmem:[%s175 + $0x20] sm:$0xff]
        %v759 = vld [vmem:[%s175 + $0x28] sm:$0xff]
        %v760 = vld [vmem:[%s175 + $0x30] sm:$0xff]
        %v761 = vld [vmem:[%s175 + $0x38] sm:$0xff]
        %v762 = vld [vmem:[%s175 + $0x40] sm:$0xff]
        %v763 = vld [vmem:[%s175 + $0x48] sm:$0xff]
        %v764 = vld [vmem:[%s175 + $0x50] sm:$0xff]
        %v765 = vld [vmem:[%s175 + $0x58] sm:$0xff]
        %v766 = vld [vmem:[%s175 + $0x60] sm:$0xff]
        %v767 = vld [vmem:[%s175 + $0x68] sm:$0xff]
        %v768 = vld [vmem:[%s175 + $0x70] sm:$0xff]
        %v769 = vld [vmem:[%s175 + $0x78] sm:$0xff]
        %v770 = vld [vmem:[%s175 + $0x80] sm:$0xff]
        %v771 = vld [vmem:[%s175 + $0x88] sm:$0xff]
        %v772 = vld [vmem:[%s175 + $0x90] sm:$0xff]
        %v773 = vld [vmem:[%s175 + $0x98] sm:$0xff]
        %v774 = vld [vmem:[%s175 + $0xa0] sm:$0xff]
        %v775 = vld [vmem:[%s175 + $0xa8] sm:$0xff]
        %v776 = vld [vmem:[%s175 + $0xb0] sm:$0xff]
        %v777 = vld [vmem:[%s175 + $0xb8] sm:$0xff]
        %v778 = vld [vmem:[%s175 + $0xc0] sm:$0xff]
        %v779 = vld [vmem:[%s175 + $0xc8] sm:$0xff]
        %v780 = vld [vmem:[%s175 + $0xd0] sm:$0xff]
        %v781 = vld [vmem:[%s175 + $0xd8] sm:$0xff]
        %v782 = vld [vmem:[%s175 + $0xe0] sm:$0xff]
        %v783 = vld [vmem:[%s175 + $0xe8] sm:$0xff]
        %v784 = vld [vmem:[%s175 + $0xf0] sm:$0xff]
        %v785 = vld [vmem:[%s175 + $0xf8] sm:$0xff]
        %v786 = vadd.f32 %v754, %v628
        %v787 = vadd.f32 %v755, %v631
        %v788 = vadd.f32 %v756, %v636
        %v789 = vadd.f32 %v757, %v639
        %v790 = vadd.f32 %v758, %v644
        %v791 = vadd.f32 %v759, %v647
        %v792 = vadd.f32 %v760, %v652
        %v793 = vadd.f32 %v761, %v655
        %v794 = vadd.f32 %v762, %v660
        %v795 = vadd.f32 %v763, %v663
        %v796 = vadd.f32 %v764, %v668
        %v797 = vadd.f32 %v765, %v671
        %v798 = vadd.f32 %v766, %v676
        %v799 = vadd.f32 %v767, %v679
        %v800 = vadd.f32 %v768, %v684
        %v801 = vadd.f32 %v769, %v687
        %v802 = vadd.f32 %v770, %v692
        %v803 = vadd.f32 %v771, %v695
        %v804 = vadd.f32 %v772, %v700
        %v805 = vadd.f32 %v773, %v703
        %v806 = vadd.f32 %v774, %v708
        %v807 = vadd.f32 %v775, %v711
        %v808 = vadd.f32 %v776, %v716
        %v809 = vadd.f32 %v777, %v719
        %v810 = vadd.f32 %v778, %v724
        %v811 = vadd.f32 %v779, %v727
        %v812 = vadd.f32 %v780, %v732
        %v813 = vadd.f32 %v781, %v735
        %v814 = vadd.f32 %v782, %v740
        %v815 = vadd.f32 %v783, %v743
        %v816 = vadd.f32 %v784, %v748
        %v817 = vadd.f32 %v785, %v751
        %818 = vst [vmem:[%s175] sm:$0xff] %v786
        %819 = vst [vmem:[%s175 + $0x8] sm:$0xff] %v787
        %820 = vst [vmem:[%s175 + $0x10] sm:$0xff] %v788
        %821 = vst [vmem:[%s175 + $0x18] sm:$0xff] %v789
        %822 = vst [vmem:[%s175 + $0x20] sm:$0xff] %v790
        %823 = vst [vmem:[%s175 + $0x28] sm:$0xff] %v791
        %824 = vst [vmem:[%s175 + $0x30] sm:$0xff] %v792
        %825 = vst [vmem:[%s175 + $0x38] sm:$0xff] %v793
        %826 = vst [vmem:[%s175 + $0x40] sm:$0xff] %v794
        %827 = vst [vmem:[%s175 + $0x48] sm:$0xff] %v795
        %828 = vst [vmem:[%s175 + $0x50] sm:$0xff] %v796
        %829 = vst [vmem:[%s175 + $0x58] sm:$0xff] %v797
        %830 = vst [vmem:[%s175 + $0x60] sm:$0xff] %v798
        %831 = vst [vmem:[%s175 + $0x68] sm:$0xff] %v799
        %832 = vst [vmem:[%s175 + $0x70] sm:$0xff] %v800
        %833 = vst [vmem:[%s175 + $0x78] sm:$0xff] %v801
        %834 = vst [vmem:[%s175 + $0x80] sm:$0xff] %v802
        %835 = vst [vmem:[%s175 + $0x88] sm:$0xff] %v803
        %836 = vst [vmem:[%s175 + $0x90] sm:$0xff] %v804
        %837 = vst [vmem:[%s175 + $0x98] sm:$0xff] %v805
        %838 = vst [vmem:[%s175 + $0xa0] sm:$0xff] %v806
        %839 = vst [vmem:[%s175 + $0xa8] sm:$0xff] %v807
        %840 = vst [vmem:[%s175 + $0xb0] sm:$0xff] %v808
        %841 = vst [vmem:[%s175 + $0xb8] sm:$0xff] %v809
        %842 = vst [vmem:[%s175 + $0xc0] sm:$0xff] %v810
        %843 = vst [vmem:[%s175 + $0xc8] sm:$0xff] %v811
        %844 = vst [vmem:[%s175 + $0xd0] sm:$0xff] %v812
        %845 = vst [vmem:[%s175 + $0xd8] sm:$0xff] %v813
        %846 = vst [vmem:[%s175 + $0xe0] sm:$0xff] %v814
        %847 = vst [vmem:[%s175 + $0xe8] sm:$0xff] %v815
        %848 = vst [vmem:[%s175 + $0xf0] sm:$0xff] %v816
        %849 = vst [vmem:[%s175 + $0xf8] sm:$0xff] %v817
        %v850 = vpack.c.bf16 %v631, %v628
        %v851 = vpack.c.bf16 %v639, %v636
        %v852 = vpack.c.bf16 %v647, %v644
        %v853 = vpack.c.bf16 %v655, %v652
        %v854 = vpack.c.bf16 %v663, %v660
        %v855 = vpack.c.bf16 %v671, %v668
        %v856 = vpack.c.bf16 %v679, %v676
        %v857 = vpack.c.bf16 %v687, %v684
        %v858 = vpack.c.bf16 %v695, %v692
        %v859 = vpack.c.bf16 %v703, %v700
        %v860 = vpack.c.bf16 %v711, %v708
        %v861 = vpack.c.bf16 %v719, %v716
        %v862 = vpack.c.bf16 %v727, %v724
        %v863 = vpack.c.bf16 %v735, %v732
        %v864 = vpack.c.bf16 %v743, %v740
        %v865 = vpack.c.bf16 %v751, %v748
        %866 = vst [vmem:[#allocation2] sm:$0xff] %v850
        %867 = vst [vmem:[#allocation2 + $0x8] sm:$0xff] %v851
        %868 = vst [vmem:[#allocation2 + $0x10] sm:$0xff] %v852
        %869 = vst [vmem:[#allocation2 + $0x18] sm:$0xff] %v853
        %870 = vst [vmem:[#allocation2 + $0x20] sm:$0xff] %v854
        %871 = vst [vmem:[#allocation2 + $0x28] sm:$0xff] %v855
        %872 = vst [vmem:[#allocation2 + $0x30] sm:$0xff] %v856
        %873 = vst [vmem:[#allocation2 + $0x38] sm:$0xff] %v857
        %874 = vst [vmem:[#allocation2 + $0x40] sm:$0xff] %v858
        %875 = vst [vmem:[#allocation2 + $0x48] sm:$0xff] %v859
        %876 = vst [vmem:[#allocation2 + $0x50] sm:$0xff] %v860
        %877 = vst [vmem:[#allocation2 + $0x58] sm:$0xff] %v861
        %878 = vst [vmem:[#allocation2 + $0x60] sm:$0xff] %v862
        %879 = vst [vmem:[#allocation2 + $0x68] sm:$0xff] %v863
        %880 = vst [vmem:[#allocation2 + $0x70] sm:$0xff] %v864
        %881 = vst [vmem:[#allocation2 + $0x78] sm:$0xff] %v865
        %v882 = vld [vmem:[#allocation3] sm:$0xff]
        %v883 = vld [vmem:[#allocation3 + $0x8] sm:$0xff]
        %v884 = vld [vmem:[#allocation3 + $0x10] sm:$0xff]
        %v885 = vld [vmem:[#allocation3 + $0x18] sm:$0xff]
        %v886 = vld [vmem:[#allocation3 + $0x20] sm:$0xff]
        %v887 = vld [vmem:[#allocation3 + $0x28] sm:$0xff]
        %v888 = vld [vmem:[#allocation3 + $0x30] sm:$0xff]
        %v889 = vld [vmem:[#allocation3 + $0x38] sm:$0xff]
        %v890 = vld [vmem:[#allocation3 + $0x40] sm:$0xff]
        %v891 = vld [vmem:[#allocation3 + $0x48] sm:$0xff]
        %v892 = vld [vmem:[#allocation3 + $0x50] sm:$0xff]
        %v893 = vld [vmem:[#allocation3 + $0x58] sm:$0xff]
        %v894 = vld [vmem:[#allocation3 + $0x60] sm:$0xff]
        %v895 = vld [vmem:[#allocation3 + $0x68] sm:$0xff]
        %v896 = vld [vmem:[#allocation3 + $0x70] sm:$0xff]
        %v897 = vld [vmem:[#allocation3 + $0x78] sm:$0xff]
        %v898 = vld [vmem:[#allocation3 + $0x80] sm:$0xff]
        %v899 = vld [vmem:[#allocation3 + $0x88] sm:$0xff]
        %v900 = vld [vmem:[#allocation3 + $0x90] sm:$0xff]
        %v901 = vld [vmem:[#allocation3 + $0x98] sm:$0xff]
        %v902 = vld [vmem:[#allocation3 + $0xa0] sm:$0xff]
        %v903 = vld [vmem:[#allocation3 + $0xa8] sm:$0xff]
        %v904 = vld [vmem:[#allocation3 + $0xb0] sm:$0xff]
        %v905 = vld [vmem:[#allocation3 + $0xb8] sm:$0xff]
        %v906 = vld [vmem:[#allocation3 + $0xc0] sm:$0xff]
        %v907 = vld [vmem:[#allocation3 + $0xc8] sm:$0xff]
        %v908 = vld [vmem:[#allocation3 + $0xd0] sm:$0xff]
        %v909 = vld [vmem:[#allocation3 + $0xd8] sm:$0xff]
        %v910 = vld [vmem:[#allocation3 + $0xe0] sm:$0xff]
        %v911 = vld [vmem:[#allocation3 + $0xe8] sm:$0xff]
        %v912 = vld [vmem:[#allocation3 + $0xf0] sm:$0xff]
        %v913 = vld [vmem:[#allocation3 + $0xf8] sm:$0xff]
        %v914 = vld [vmem:[#allocation2] sm:$0xff]
        %v915 = vld [vmem:[#allocation2 + $0x8] sm:$0xff]
        %v916 = vld [vmem:[#allocation2 + $0x10] sm:$0xff]
        %v917 = vld [vmem:[#allocation2 + $0x18] sm:$0xff]
        %v918 = vld [vmem:[#allocation2 + $0x20] sm:$0xff]
        %v919 = vld [vmem:[#allocation2 + $0x28] sm:$0xff]
        %v920 = vld [vmem:[#allocation2 + $0x30] sm:$0xff]
        %v921 = vld [vmem:[#allocation2 + $0x38] sm:$0xff]
        %v922 = vld [vmem:[#allocation2 + $0x40] sm:$0xff]
        %v923 = vld [vmem:[#allocation2 + $0x48] sm:$0xff]
        %v924 = vld [vmem:[#allocation2 + $0x50] sm:$0xff]
        %v925 = vld [vmem:[#allocation2 + $0x58] sm:$0xff]
        %v926 = vld [vmem:[#allocation2 + $0x60] sm:$0xff]
        %v927 = vld [vmem:[#allocation2 + $0x68] sm:$0xff]
        %v928 = vld [vmem:[#allocation2 + $0x70] sm:$0xff]
        %v929 = vld [vmem:[#allocation2 + $0x78] sm:$0xff]
        %v962 = vunpack.c.l.b16 %v882
        %v963 = vunpack.c.h.b16 %v882
        %v964 = vunpack.c.l.b16 %v883
        %v965 = vunpack.c.h.b16 %v883
        %v966 = vunpack.c.l.b16 %v884
        %v967 = vunpack.c.h.b16 %v884
        %v968 = vunpack.c.l.b16 %v885
        %v969 = vunpack.c.h.b16 %v885
        %v970 = vunpack.c.l.b16 %v886
        %v971 = vunpack.c.h.b16 %v886
        %v972 = vunpack.c.l.b16 %v887
        %v973 = vunpack.c.h.b16 %v887
        %v974 = vunpack.c.l.b16 %v888
        %v975 = vunpack.c.h.b16 %v888
        %v976 = vunpack.c.l.b16 %v889
        %v977 = vunpack.c.h.b16 %v889
        %v978 = vunpack.c.l.b16 %v890
        %v979 = vunpack.c.h.b16 %v890
        %v980 = vunpack.c.l.b16 %v891
        %v981 = vunpack.c.h.b16 %v891
        %v982 = vunpack.c.l.b16 %v892
        %v983 = vunpack.c.h.b16 %v892
        %v984 = vunpack.c.l.b16 %v893
        %v985 = vunpack.c.h.b16 %v893
        %v986 = vunpack.c.l.b16 %v894
        %v987 = vunpack.c.h.b16 %v894
        %v988 = vunpack.c.l.b16 %v895
        %v989 = vunpack.c.h.b16 %v895
        %v990 = vunpack.c.l.b16 %v896
        %v991 = vunpack.c.h.b16 %v896
        %v992 = vunpack.c.l.b16 %v897
        %v993 = vunpack.c.h.b16 %v897
        %v994 = vunpack.c.l.b16 %v898
        %v995 = vunpack.c.h.b16 %v898
        %v996 = vunpack.c.l.b16 %v899
        %v997 = vunpack.c.h.b16 %v899
        %v998 = vunpack.c.l.b16 %v900
        %v999 = vunpack.c.h.b16 %v900
        %v1000 = vunpack.c.l.b16 %v901
        %v1001 = vunpack.c.h.b16 %v901
        %v1002 = vunpack.c.l.b16 %v902
        %v1003 = vunpack.c.h.b16 %v902
        %v1004 = vunpack.c.l.b16 %v903
        %v1005 = vunpack.c.h.b16 %v903
        %v1006 = vunpack.c.l.b16 %v904
        %v1007 = vunpack.c.h.b16 %v904
        %v1008 = vunpack.c.l.b16 %v905
        %v1009 = vunpack.c.h.b16 %v905
        %v1010 = vunpack.c.l.b16 %v906
        %v1011 = vunpack.c.h.b16 %v906
        %v1012 = vunpack.c.l.b16 %v907
        %v1013 = vunpack.c.h.b16 %v907
        %v1014 = vunpack.c.l.b16 %v908
        %v1015 = vunpack.c.h.b16 %v908
        %v1016 = vunpack.c.l.b16 %v909
        %v1017 = vunpack.c.h.b16 %v909
        %v1018 = vunpack.c.l.b16 %v910
        %v1019 = vunpack.c.h.b16 %v910
        %v1020 = vunpack.c.l.b16 %v911
        %v1021 = vunpack.c.h.b16 %v911
        %v1022 = vunpack.c.l.b16 %v912
        %v1023 = vunpack.c.h.b16 %v912
        %v1024 = vunpack.c.l.b16 %v913
        %v1025 = vunpack.c.h.b16 %v913
        %v1026 = vpack.c.b16 %v964, %v962
        %v1027 = vpack.c.b16 %v965, %v963
        %v1028 = vpack.c.b16 %v968, %v966
        %v1029 = vpack.c.b16 %v969, %v967
        %v1030 = vpack.c.b16 %v972, %v970
        %v1031 = vpack.c.b16 %v973, %v971
        %v1032 = vpack.c.b16 %v976, %v974
        %v1033 = vpack.c.b16 %v977, %v975
        %v1034 = vpack.c.b16 %v980, %v978
        %v1035 = vpack.c.b16 %v981, %v979
        %v1036 = vpack.c.b16 %v984, %v982
        %v1037 = vpack.c.b16 %v985, %v983
        %v1038 = vpack.c.b16 %v988, %v986
        %v1039 = vpack.c.b16 %v989, %v987
        %v1040 = vpack.c.b16 %v992, %v990
        %v1041 = vpack.c.b16 %v993, %v991
        %v1042 = vpack.c.b16 %v996, %v994
        %v1043 = vpack.c.b16 %v997, %v995
        %v1044 = vpack.c.b16 %v1000, %v998
        %v1045 = vpack.c.b16 %v1001, %v999
        %v1046 = vpack.c.b16 %v1004, %v1002
        %v1047 = vpack.c.b16 %v1005, %v1003
        %v1048 = vpack.c.b16 %v1008, %v1006
        %v1049 = vpack.c.b16 %v1009, %v1007
        %v1050 = vpack.c.b16 %v1012, %v1010
        %v1051 = vpack.c.b16 %v1013, %v1011
        %v1052 = vpack.c.b16 %v1016, %v1014
        %v1053 = vpack.c.b16 %v1017, %v1015
        %v1054 = vpack.c.b16 %v1020, %v1018
        %v1055 = vpack.c.b16 %v1021, %v1019
        %v1056 = vpack.c.b16 %v1024, %v1022
        %v1057 = vpack.c.b16 %v1025, %v1023
        %1090 = vmatprep.subr.bf16.mxu0 0
        %1091 = vmatpush1.bf16.msra.mxu0 %v914
        %1092 = vmatprep.subr.bf16.mxu0 0
        %1093 = vmatpush1.bf16.msra.mxu0 %v915
        %1094 = vmatprep.subr.bf16.mxu0 0
        %1095 = vmatpush1.bf16.msra.mxu0 %v916
        %1096 = vmatprep.subr.bf16.mxu0 0
        %1097 = vmatpush1.bf16.msra.mxu0 %v917
        %1098 = vmatprep.subr.bf16.mxu0 0
        %1099 = vmatpush1.bf16.msra.mxu0 %v918
        %1100 = vmatprep.subr.bf16.mxu0 0
        %1101 = vmatpush1.bf16.msra.mxu0 %v919
        %1102 = vmatprep.subr.bf16.mxu0 0
        %1103 = vmatpush1.bf16.msra.mxu0 %v920
        %1104 = vmatprep.subr.bf16.mxu0 0
        %1105 = vmatpush1.bf16.msra.mxu0 %v921
        %1106 = vmatprep.subr.bf16.mxu0 0
        %1107 = vmatpush1.bf16.msra.mxu0 %v922
        %1108 = vmatprep.subr.bf16.mxu0 0
        %1109 = vmatpush1.bf16.msra.mxu0 %v923
        %1110 = vmatprep.subr.bf16.mxu0 0
        %1111 = vmatpush1.bf16.msra.mxu0 %v924
        %1112 = vmatprep.subr.bf16.mxu0 0
        %1113 = vmatpush1.bf16.msra.mxu0 %v925
        %1114 = vmatprep.subr.bf16.mxu0 0
        %1115 = vmatpush1.bf16.msra.mxu0 %v926
        %1116 = vmatprep.subr.bf16.mxu0 0
        %1117 = vmatpush1.bf16.msra.mxu0 %v927
        %1118 = vmatprep.subr.bf16.mxu0 0
        %1119 = vmatpush1.bf16.msra.mxu0 %v928
        %1120 = vmatprep.subr.bf16.mxu0 0
        %1121 = vmatpush1.bf16.msra.mxu0 %v929
        %1122 = vmatprep.mubr.bf16.mxu0 %v1027
        %1123 = vmatmul.mubr.bf16.gmra.mrb[0].mxu0 %v1026
        %v1124 = vpop.f32.mrb[0].mxu0
        %v1125 = vadd.f32 0.0, %v1124
        %v1126 = vpop.f32.mrb[0].mxu0
        %v1127 = vpop.f32.mrb[0].mxu0
        %v1128 = vadd.f32 0.0, %v1127
        %v1129 = vpop.f32.mrb[0].mxu0
        %1130 = vmatprep.mubr.bf16.mxu0 %v1029
        %1131 = vmatmul.mubr.bf16.gmra.mrb[0].mxu0 %v1028
        %v1132 = vpop.f32.mrb[0].mxu0
        %v1133 = vadd.f32 0.0, %v1132
        %v1134 = vpop.f32.mrb[0].mxu0
        %v1135 = vpop.f32.mrb[0].mxu0
        %v1136 = vadd.f32 0.0, %v1135
        %v1137 = vpop.f32.mrb[0].mxu0
        %1138 = vmatprep.mubr.bf16.mxu0 %v1031
        %1139 = vmatmul.mubr.bf16.gmra.mrb[0].mxu0 %v1030
        %v1140 = vpop.f32.mrb[0].mxu0
        %v1141 = vadd.f32 0.0, %v1140
        %v1142 = vpop.f32.mrb[0].mxu0
        %v1143 = vpop.f32.mrb[0].mxu0
        %v1144 = vadd.f32 0.0, %v1143
        %v1145 = vpop.f32.mrb[0].mxu0
        %1146 = vmatprep.mubr.bf16.mxu0 %v1033
        %1147 = vmatmul.mubr.bf16.gmra.mrb[0].mxu0 %v1032
        %v1148 = vpop.f32.mrb[0].mxu0
        %v1149 = vadd.f32 0.0, %v1148
        %v1150 = vpop.f32.mrb[0].mxu0
        %v1151 = vpop.f32.mrb[0].mxu0
        %v1152 = vadd.f32 0.0, %v1151
        %v1153 = vpop.f32.mrb[0].mxu0
        %1154 = vmatprep.mubr.bf16.mxu0 %v1035
        %1155 = vmatmul.mubr.bf16.gmra.mrb[0].mxu0 %v1034
        %v1156 = vpop.f32.mrb[0].mxu0
        %v1157 = vadd.f32 0.0, %v1156
        %v1158 = vpop.f32.mrb[0].mxu0
        %v1159 = vpop.f32.mrb[0].mxu0
        %v1160 = vadd.f32 0.0, %v1159
        %v1161 = vpop.f32.mrb[0].mxu0
        %1162 = vmatprep.mubr.bf16.mxu0 %v1037
        %1163 = vmatmul.mubr.bf16.gmra.mrb[0].mxu0 %v1036
        %v1164 = vpop.f32.mrb[0].mxu0
        %v1165 = vadd.f32 0.0, %v1164
        %v1166 = vpop.f32.mrb[0].mxu0
        %v1167 = vpop.f32.mrb[0].mxu0
        %v1168 = vadd.f32 0.0, %v1167
        %v1169 = vpop.f32.mrb[0].mxu0
        %1170 = vmatprep.mubr.bf16.mxu0 %v1039
        %1171 = vmatmul.mubr.bf16.gmra.mrb[0].mxu0 %v1038
        %v1172 = vpop.f32.mrb[0].mxu0
        %v1173 = vadd.f32 0.0, %v1172
        %v1174 = vpop.f32.mrb[0].mxu0
        %v1175 = vpop.f32.mrb[0].mxu0
        %v1176 = vadd.f32 0.0, %v1175
        %v1177 = vpop.f32.mrb[0].mxu0
        %1178 = vmatprep.mubr.bf16.mxu0 %v1041
        %1179 = vmatmul.mubr.bf16.gmra.mrb[0].mxu0 %v1040
        %v1180 = vpop.f32.mrb[0].mxu0
        %v1181 = vadd.f32 0.0, %v1180
        %v1182 = vpop.f32.mrb[0].mxu0
        %v1183 = vpop.f32.mrb[0].mxu0
        %v1184 = vadd.f32 0.0, %v1183
        %v1185 = vpop.f32.mrb[0].mxu0
        %1186 = vmatprep.mubr.bf16.mxu0 %v1043
        %1187 = vmatmul.mubr.bf16.gmra.mrb[0].mxu0 %v1042
        %v1188 = vpop.f32.mrb[0].mxu0
        %v1189 = vadd.f32 0.0, %v1188
        %v1190 = vpop.f32.mrb[0].mxu0
        %v1191 = vpop.f32.mrb[0].mxu0
        %v1192 = vadd.f32 0.0, %v1191
        %v1193 = vpop.f32.mrb[0].mxu0
        %1194 = vmatprep.mubr.bf16.mxu0 %v1045
        %1195 = vmatmul.mubr.bf16.gmra.mrb[0].mxu0 %v1044
        %v1196 = vpop.f32.mrb[0].mxu0
        %v1197 = vadd.f32 0.0, %v1196
        %v1198 = vpop.f32.mrb[0].mxu0
        %v1199 = vpop.f32.mrb[0].mxu0
        %v1200 = vadd.f32 0.0, %v1199
        %v1201 = vpop.f32.mrb[0].mxu0
        %1202 = vmatprep.mubr.bf16.mxu0 %v1047
        %1203 = vmatmul.mubr.bf16.gmra.mrb[0].mxu0 %v1046
        %v1204 = vpop.f32.mrb[0].mxu0
        %v1205 = vadd.f32 0.0, %v1204
        %v1206 = vpop.f32.mrb[0].mxu0
        %v1207 = vpop.f32.mrb[0].mxu0
        %v1208 = vadd.f32 0.0, %v1207
        %v1209 = vpop.f32.mrb[0].mxu0
        %1210 = vmatprep.mubr.bf16.mxu0 %v1049
        %1211 = vmatmul.mubr.bf16.gmra.mrb[0].mxu0 %v1048
        %v1212 = vpop.f32.mrb[0].mxu0
        %v1213 = vadd.f32 0.0, %v1212
        %v1214 = vpop.f32.mrb[0].mxu0
        %v1215 = vpop.f32.mrb[0].mxu0
        %v1216 = vadd.f32 0.0, %v1215
        %v1217 = vpop.f32.mrb[0].mxu0
        %1218 = vmatprep.mubr.bf16.mxu0 %v1051
        %1219 = vmatmul.mubr.bf16.gmra.mrb[0].mxu0 %v1050
        %v1220 = vpop.f32.mrb[0].mxu0
        %v1221 = vadd.f32 0.0, %v1220
        %v1222 = vpop.f32.mrb[0].mxu0
        %v1223 = vpop.f32.mrb[0].mxu0
        %v1224 = vadd.f32 0.0, %v1223
        %v1225 = vpop.f32.mrb[0].mxu0
        %1226 = vmatprep.mubr.bf16.mxu0 %v1053
        %1227 = vmatmul.mubr.bf16.gmra.mrb[0].mxu0 %v1052
        %v1228 = vpop.f32.mrb[0].mxu0
        %v1229 = vadd.f32 0.0, %v1228
        %v1230 = vpop.f32.mrb[0].mxu0
        %v1231 = vpop.f32.mrb[0].mxu0
        %v1232 = vadd.f32 0.0, %v1231
        %v1233 = vpop.f32.mrb[0].mxu0
        %1234 = vmatprep.mubr.bf16.mxu0 %v1055
        %1235 = vmatmul.mubr.bf16.gmra.mrb[0].mxu0 %v1054
        %v1236 = vpop.f32.mrb[0].mxu0
        %v1237 = vadd.f32 0.0, %v1236
        %v1238 = vpop.f32.mrb[0].mxu0
        %v1239 = vpop.f32.mrb[0].mxu0
        %v1240 = vadd.f32 0.0, %v1239
        %v1241 = vpop.f32.mrb[0].mxu0
        %1242 = vmatprep.mubr.bf16.mxu0 %v1057
        %1243 = vmatmul.mubr.bf16.gmra.mrb[0].mxu0 %v1056
        %v1244 = vpop.f32.mrb[0].mxu0
        %v1245 = vadd.f32 0.0, %v1244
        %v1246 = vpop.f32.mrb[0].mxu0
        %v1247 = vpop.f32.mrb[0].mxu0
        %v1248 = vadd.f32 0.0, %v1247
        %v1249 = vpop.f32.mrb[0].mxu0
        %1250 = vdwg.mxu0
        %v1251 = vld [vmem:[%s175] sm:$0xff]
        %v1252 = vld [vmem:[%s175 + $0x8] sm:$0xff]
        %v1253 = vld [vmem:[%s175 + $0x10] sm:$0xff]
        %v1254 = vld [vmem:[%s175 + $0x18] sm:$0xff]
        %v1255 = vld [vmem:[%s175 + $0x20] sm:$0xff]
        %v1256 = vld [vmem:[%s175 + $0x28] sm:$0xff]
        %v1257 = vld [vmem:[%s175 + $0x30] sm:$0xff]
        %v1258 = vld [vmem:[%s175 + $0x38] sm:$0xff]
        %v1259 = vld [vmem:[%s175 + $0x40] sm:$0xff]
        %v1260 = vld [vmem:[%s175 + $0x48] sm:$0xff]
        %v1261 = vld [vmem:[%s175 + $0x50] sm:$0xff]
        %v1262 = vld [vmem:[%s175 + $0x58] sm:$0xff]
        %v1263 = vld [vmem:[%s175 + $0x60] sm:$0xff]
        %v1264 = vld [vmem:[%s175 + $0x68] sm:$0xff]
        %v1265 = vld [vmem:[%s175 + $0x70] sm:$0xff]
        %v1266 = vld [vmem:[%s175 + $0x78] sm:$0xff]
        %v1267 = vld [vmem:[%s175 + $0x80] sm:$0xff]
        %v1268 = vld [vmem:[%s175 + $0x88] sm:$0xff]
        %v1269 = vld [vmem:[%s175 + $0x90] sm:$0xff]
        %v1270 = vld [vmem:[%s175 + $0x98] sm:$0xff]
        %v1271 = vld [vmem:[%s175 + $0xa0] sm:$0xff]
        %v1272 = vld [vmem:[%s175 + $0xa8] sm:$0xff]
        %v1273 = vld [vmem:[%s175 + $0xb0] sm:$0xff]
        %v1274 = vld [vmem:[%s175 + $0xb8] sm:$0xff]
        %v1275 = vld [vmem:[%s175 + $0xc0] sm:$0xff]
        %v1276 = vld [vmem:[%s175 + $0xc8] sm:$0xff]
        %v1277 = vld [vmem:[%s175 + $0xd0] sm:$0xff]
        %v1278 = vld [vmem:[%s175 + $0xd8] sm:$0xff]
        %v1279 = vld [vmem:[%s175 + $0xe0] sm:$0xff]
        %v1280 = vld [vmem:[%s175 + $0xe8] sm:$0xff]
        %v1281 = vld [vmem:[%s175 + $0xf0] sm:$0xff]
        %v1282 = vld [vmem:[%s175 + $0xf8] sm:$0xff]
        %v1283 = vadd.f32 %v1251, %v1125
        %v1284 = vadd.f32 %v1252, %v1128
        %v1285 = vadd.f32 %v1253, %v1133
        %v1286 = vadd.f32 %v1254, %v1136
        %v1287 = vadd.f32 %v1255, %v1141
        %v1288 = vadd.f32 %v1256, %v1144
        %v1289 = vadd.f32 %v1257, %v1149
        %v1290 = vadd.f32 %v1258, %v1152
        %v1291 = vadd.f32 %v1259, %v1157
        %v1292 = vadd.f32 %v1260, %v1160
        %v1293 = vadd.f32 %v1261, %v1165
        %v1294 = vadd.f32 %v1262, %v1168
        %v1295 = vadd.f32 %v1263, %v1173
        %v1296 = vadd.f32 %v1264, %v1176
        %v1297 = vadd.f32 %v1265, %v1181
        %v1298 = vadd.f32 %v1266, %v1184
        %v1299 = vadd.f32 %v1267, %v1189
        %v1300 = vadd.f32 %v1268, %v1192
        %v1301 = vadd.f32 %v1269, %v1197
        %v1302 = vadd.f32 %v1270, %v1200
        %v1303 = vadd.f32 %v1271, %v1205
        %v1304 = vadd.f32 %v1272, %v1208
        %v1305 = vadd.f32 %v1273, %v1213
        %v1306 = vadd.f32 %v1274, %v1216
        %v1307 = vadd.f32 %v1275, %v1221
        %v1308 = vadd.f32 %v1276, %v1224
        %v1309 = vadd.f32 %v1277, %v1229
        %v1310 = vadd.f32 %v1278, %v1232
        %v1311 = vadd.f32 %v1279, %v1237
        %v1312 = vadd.f32 %v1280, %v1240
        %v1313 = vadd.f32 %v1281, %v1245
        %v1314 = vadd.f32 %v1282, %v1248
        %1315 = vst [vmem:[%s175] sm:$0xff] %v1283
        %1316 = vst [vmem:[%s175 + $0x8] sm:$0xff] %v1284
        %1317 = vst [vmem:[%s175 + $0x10] sm:$0xff] %v1285
        %1318 = vst [vmem:[%s175 + $0x18] sm:$0xff] %v1286
        %1319 = vst [vmem:[%s175 + $0x20] sm:$0xff] %v1287
        %1320 = vst [vmem:[%s175 + $0x28] sm:$0xff] %v1288
        %1321 = vst [vmem:[%s175 + $0x30] sm:$0xff] %v1289
        %1322 = vst [vmem:[%s175 + $0x38] sm:$0xff] %v1290
        %1323 = vst [vmem:[%s175 + $0x40] sm:$0xff] %v1291
        %1324 = vst [vmem:[%s175 + $0x48] sm:$0xff] %v1292
        %1325 = vst [vmem:[%s175 + $0x50] sm:$0xff] %v1293
        %1326 = vst [vmem:[%s175 + $0x58] sm:$0xff] %v1294
        %1327 = vst [vmem:[%s175 + $0x60] sm:$0xff] %v1295
        %1328 = vst [vmem:[%s175 + $0x68] sm:$0xff] %v1296
        %1329 = vst [vmem:[%s175 + $0x70] sm:$0xff] %v1297
        %1330 = vst [vmem:[%s175 + $0x78] sm:$0xff] %v1298
        %1331 = vst [vmem:[%s175 + $0x80] sm:$0xff] %v1299
        %1332 = vst [vmem:[%s175 + $0x88] sm:$0xff] %v1300
        %1333 = vst [vmem:[%s175 + $0x90] sm:$0xff] %v1301
        %1334 = vst [vmem:[%s175 + $0x98] sm:$0xff] %v1302
        %1335 = vst [vmem:[%s175 + $0xa0] sm:$0xff] %v1303
        %1336 = vst [vmem:[%s175 + $0xa8] sm:$0xff] %v1304
        %1337 = vst [vmem:[%s175 + $0xb0] sm:$0xff] %v1305
        %1338 = vst [vmem:[%s175 + $0xb8] sm:$0xff] %v1306
        %1339 = vst [vmem:[%s175 + $0xc0] sm:$0xff] %v1307
        %1340 = vst [vmem:[%s175 + $0xc8] sm:$0xff] %v1308
        %1341 = vst [vmem:[%s175 + $0xd0] sm:$0xff] %v1309
        %1342 = vst [vmem:[%s175 + $0xd8] sm:$0xff] %v1310
        %1343 = vst [vmem:[%s175 + $0xe0] sm:$0xff] %v1311
        %1344 = vst [vmem:[%s175 + $0xe8] sm:$0xff] %v1312
        %1345 = vst [vmem:[%s175 + $0xf0] sm:$0xff] %v1313
        %1346 = vst [vmem:[%s175 + $0xf8] sm:$0xff] %v1314
        %v1347 = vpack.c.bf16 %v1128, %v1125
        %v1348 = vpack.c.bf16 %v1136, %v1133
        %v1349 = vpack.c.bf16 %v1144, %v1141
        %v1350 = vpack.c.bf16 %v1152, %v1149
        %v1351 = vpack.c.bf16 %v1160, %v1157
        %v1352 = vpack.c.bf16 %v1168, %v1165
        %v1353 = vpack.c.bf16 %v1176, %v1173
        %v1354 = vpack.c.bf16 %v1184, %v1181
        %v1355 = vpack.c.bf16 %v1192, %v1189
        %v1356 = vpack.c.bf16 %v1200, %v1197
        %v1357 = vpack.c.bf16 %v1208, %v1205
        %v1358 = vpack.c.bf16 %v1216, %v1213
        %v1359 = vpack.c.bf16 %v1224, %v1221
        %v1360 = vpack.c.bf16 %v1232, %v1229
        %v1361 = vpack.c.bf16 %v1240, %v1237
        %v1362 = vpack.c.bf16 %v1248, %v1245
        %1363 = vst [vmem:[#allocation2] sm:$0xff] %v1347
        %1364 = vst [vmem:[#allocation2 + $0x8] sm:$0xff] %v1348
        %1365 = vst [vmem:[#allocation2 + $0x10] sm:$0xff] %v1349
        %1366 = vst [vmem:[#allocation2 + $0x18] sm:$0xff] %v1350
        %1367 = vst [vmem:[#allocation2 + $0x20] sm:$0xff] %v1351
        %1368 = vst [vmem:[#allocation2 + $0x28] sm:$0xff] %v1352
        %1369 = vst [vmem:[#allocation2 + $0x30] sm:$0xff] %v1353
        %1370 = vst [vmem:[#allocation2 + $0x38] sm:$0xff] %v1354
        %1371 = vst [vmem:[#allocation2 + $0x40] sm:$0xff] %v1355
        %1372 = vst [vmem:[#allocation2 + $0x48] sm:$0xff] %v1356
        %1373 = vst [vmem:[#allocation2 + $0x50] sm:$0xff] %v1357
        %1374 = vst [vmem:[#allocation2 + $0x58] sm:$0xff] %v1358
        %1375 = vst [vmem:[#allocation2 + $0x60] sm:$0xff] %v1359
        %1376 = vst [vmem:[#allocation2 + $0x68] sm:$0xff] %v1360
        %1377 = vst [vmem:[#allocation2 + $0x70] sm:$0xff] %v1361
        %1378 = vst [vmem:[#allocation2 + $0x78] sm:$0xff] %v1362
        %v1379 = vld [vmem:[#allocation3] sm:$0xff]
        %v1380 = vld [vmem:[#allocation3 + $0x8] sm:$0xff]
        %v1381 = vld [vmem:[#allocation3 + $0x10] sm:$0xff]
        %v1382 = vld [vmem:[#allocation3 + $0x18] sm:$0xff]
        %v1383 = vld [vmem:[#allocation3 + $0x20] sm:$0xff]
        %v1384 = vld [vmem:[#allocation3 + $0x28] sm:$0xff]
        %v1385 = vld [vmem:[#allocation3 + $0x30] sm:$0xff]
        %v1386 = vld [vmem:[#allocation3 + $0x38] sm:$0xff]
        %v1387 = vld [vmem:[#allocation3 + $0x40] sm:$0xff]
        %v1388 = vld [vmem:[#allocation3 + $0x48] sm:$0xff]
        %v1389 = vld [vmem:[#allocation3 + $0x50] sm:$0xff]
        %v1390 = vld [vmem:[#allocation3 + $0x58] sm:$0xff]
        %v1391 = vld [vmem:[#allocation3 + $0x60] sm:$0xff]
        %v1392 = vld [vmem:[#allocation3 + $0x68] sm:$0xff]
        %v1393 = vld [vmem:[#allocation3 + $0x70] sm:$0xff]
        %v1394 = vld [vmem:[#allocation3 + $0x78] sm:$0xff]
        %v1395 = vld [vmem:[#allocation3 + $0x80] sm:$0xff]
        %v1396 = vld [vmem:[#allocation3 + $0x88] sm:$0xff]
        %v1397 = vld [vmem:[#allocation3 + $0x90] sm:$0xff]
        %v1398 = vld [vmem:[#allocation3 + $0x98] sm:$0xff]
        %v1399 = vld [vmem:[#allocation3 + $0xa0] sm:$0xff]
        %v1400 = vld [vmem:[#allocation3 + $0xa8] sm:$0xff]
        %v1401 = vld [vmem:[#allocation3 + $0xb0] sm:$0xff]
        %v1402 = vld [vmem:[#allocation3 + $0xb8] sm:$0xff]
        %v1403 = vld [vmem:[#allocation3 + $0xc0] sm:$0xff]
        %v1404 = vld [vmem:[#allocation3 + $0xc8] sm:$0xff]
        %v1405 = vld [vmem:[#allocation3 + $0xd0] sm:$0xff]
        %v1406 = vld [vmem:[#allocation3 + $0xd8] sm:$0xff]
        %v1407 = vld [vmem:[#allocation3 + $0xe0] sm:$0xff]
        %v1408 = vld [vmem:[#allocation3 + $0xe8] sm:$0xff]
        %v1409 = vld [vmem:[#allocation3 + $0xf0] sm:$0xff]
        %v1410 = vld [vmem:[#allocation3 + $0xf8] sm:$0xff]
        %v1411 = vld [vmem:[#allocation2] sm:$0xff]
        %v1412 = vld [vmem:[#allocation2 + $0x8] sm:$0xff]
        %v1413 = vld [vmem:[#allocation2 + $0x10] sm:$0xff]
        %v1414 = vld [vmem:[#allocation2 + $0x18] sm:$0xff]
        %v1415 = vld [vmem:[#allocation2 + $0x20] sm:$0xff]
        %v1416 = vld [vmem:[#allocation2 + $0x28] sm:$0xff]
        %v1417 = vld [vmem:[#allocation2 + $0x30] sm:$0xff]
        %v1418 = vld [vmem:[#allocation2 + $0x38] sm:$0xff]
        %v1419 = vld [vmem:[#allocation2 + $0x40] sm:$0xff]
        %v1420 = vld [vmem:[#allocation2 + $0x48] sm:$0xff]
        %v1421 = vld [vmem:[#allocation2 + $0x50] sm:$0xff]
        %v1422 = vld [vmem:[#allocation2 + $0x58] sm:$0xff]
        %v1423 = vld [vmem:[#allocation2 + $0x60] sm:$0xff]
        %v1424 = vld [vmem:[#allocation2 + $0x68] sm:$0xff]
        %v1425 = vld [vmem:[#allocation2 + $0x70] sm:$0xff]
        %v1426 = vld [vmem:[#allocation2 + $0x78] sm:$0xff]
        %v1459 = vunpack.c.l.b16 %v1379
        %v1460 = vunpack.c.h.b16 %v1379
        %v1461 = vunpack.c.l.b16 %v1380
        %v1462 = vunpack.c.h.b16 %v1380
        %v1463 = vunpack.c.l.b16 %v1381
        %v1464 = vunpack.c.h.b16 %v1381
        %v1465 = vunpack.c.l.b16 %v1382
        %v1466 = vunpack.c.h.b16 %v1382
        %v1467 = vunpack.c.l.b16 %v1383
        %v1468 = vunpack.c.h.b16 %v1383
        %v1469 = vunpack.c.l.b16 %v1384
        %v1470 = vunpack.c.h.b16 %v1384
        %v1471 = vunpack.c.l.b16 %v1385
        %v1472 = vunpack.c.h.b16 %v1385
        %v1473 = vunpack.c.l.b16 %v1386
        %v1474 = vunpack.c.h.b16 %v1386
        %v1475 = vunpack.c.l.b16 %v1387
        %v1476 = vunpack.c.h.b16 %v1387
        %v1477 = vunpack.c.l.b16 %v1388
        %v1478 = vunpack.c.h.b16 %v1388
        %v1479 = vunpack.c.l.b16 %v1389
        %v1480 = vunpack.c.h.b16 %v1389
        %v1481 = vunpack.c.l.b16 %v1390
        %v1482 = vunpack.c.h.b16 %v1390
        %v1483 = vunpack.c.l.b16 %v1391
        %v1484 = vunpack.c.h.b16 %v1391
        %v1485 = vunpack.c.l.b16 %v1392
        %v1486 = vunpack.c.h.b16 %v1392
        %v1487 = vunpack.c.l.b16 %v1393
        %v1488 = vunpack.c.h.b16 %v1393
        %v1489 = vunpack.c.l.b16 %v1394
        %v1490 = vunpack.c.h.b16 %v1394
        %v1491 = vunpack.c.l.b16 %v1395
        %v1492 = vunpack.c.h.b16 %v1395
        %v1493 = vunpack.c.l.b16 %v1396
        %v1494 = vunpack.c.h.b16 %v1396
        %v1495 = vunpack.c.l.b16 %v1397
        %v1496 = vunpack.c.h.b16 %v1397
        %v1497 = vunpack.c.l.b16 %v1398
        %v1498 = vunpack.c.h.b16 %v1398
        %v1499 = vunpack.c.l.b16 %v1399
        %v1500 = vunpack.c.h.b16 %v1399
        %v1501 = vunpack.c.l.b16 %v1400
        %v1502 = vunpack.c.h.b16 %v1400
        %v1503 = vunpack.c.l.b16 %v1401
        %v1504 = vunpack.c.h.b16 %v1401
        %v1505 = vunpack.c.l.b16 %v1402
        %v1506 = vunpack.c.h.b16 %v1402
        %v1507 = vunpack.c.l.b16 %v1403
        %v1508 = vunpack.c.h.b16 %v1403
        %v1509 = vunpack.c.l.b16 %v1404
        %v1510 = vunpack.c.h.b16 %v1404
        %v1511 = vunpack.c.l.b16 %v1405
        %v1512 = vunpack.c.h.b16 %v1405
        %v1513 = vunpack.c.l.b16 %v1406
        %v1514 = vunpack.c.h.b16 %v1406
        %v1515 = vunpack.c.l.b16 %v1407
        %v1516 = vunpack.c.h.b16 %v1407
        %v1517 = vunpack.c.l.b16 %v1408
        %v1518 = vunpack.c.h.b16 %v1408
        %v1519 = vunpack.c.l.b16 %v1409
        %v1520 = vunpack.c.h.b16 %v1409
        %v1521 = vunpack.c.l.b16 %v1410
        %v1522 = vunpack.c.h.b16 %v1410
        %v1523 = vpack.c.b16 %v1461, %v1459
        %v1524 = vpack.c.b16 %v1462, %v1460
        %v1525 = vpack.c.b16 %v1465, %v1463
        %v1526 = vpack.c.b16 %v1466, %v1464
        %v1527 = vpack.c.b16 %v1469, %v1467
        %v1528 = vpack.c.b16 %v1470, %v1468
        %v1529 = vpack.c.b16 %v1473, %v1471
        %v1530 = vpack.c.b16 %v1474, %v1472
        %v1531 = vpack.c.b16 %v1477, %v1475
        %v1532 = vpack.c.b16 %v1478, %v1476
        %v1533 = vpack.c.b16 %v1481, %v1479
        %v1534 = vpack.c.b16 %v1482, %v1480
        %v1535 = vpack.c.b16 %v1485, %v1483
        %v1536 = vpack.c.b16 %v1486, %v1484
        %v1537 = vpack.c.b16 %v1489, %v1487
        %v1538 = vpack.c.b16 %v1490, %v1488
        %v1539 = vpack.c.b16 %v1493, %v1491
        %v1540 = vpack.c.b16 %v1494, %v1492
        %v1541 = vpack.c.b16 %v1497, %v1495
        %v1542 = vpack.c.b16 %v1498, %v1496
        %v1543 = vpack.c.b16 %v1501, %v1499
        %v1544 = vpack.c.b16 %v1502, %v1500
        %v1545 = vpack.c.b16 %v1505, %v1503
        %v1546 = vpack.c.b16 %v1506, %v1504
        %v1547 = vpack.c.b16 %v1509, %v1507
        %v1548 = vpack.c.b16 %v1510, %v1508
        %v1549 = vpack.c.b16 %v1513, %v1511
        %v1550 = vpack.c.b16 %v1514, %v1512
        %v1551 = vpack.c.b16 %v1517, %v1515
        %v1552 = vpack.c.b16 %v1518, %v1516
        %v1553 = vpack.c.b16 %v1521, %v1519
        %v1554 = vpack.c.b16 %v1522, %v1520
        %1587 = vmatprep.subr.bf16.mxu0 0
        %1588 = vmatpush1.bf16.msra.mxu0 %v1411
        %1589 = vmatprep.subr.bf16.mxu0 0
        %1590 = vmatpush1.bf16.msra.mxu0 %v1412
        %1591 = vmatprep.subr.bf16.mxu0 0
        %1592 = vmatpush1.bf16.msra.mxu0 %v1413
        %1593 = vmatprep.subr.bf16.mxu0 0
        %1594 = vmatpush1.bf16.msra.mxu0 %v1414
        %1595 = vmatprep.subr.bf16.mxu0 0
        %1596 = vmatpush1.bf16.msra.mxu0 %v1415
        %1597 = vmatprep.subr.bf16.mxu0 0
        %1598 = vmatpush1.bf16.msra.mxu0 %v1416
        %1599 = vmatprep.subr.bf16.mxu0 0
        %1600 = vmatpush1.bf16.msra.mxu0 %v1417
        %1601 = vmatprep.subr.bf16.mxu0 0
        %1602 = vmatpush1.bf16.msra.mxu0 %v1418
        %1603 = vmatprep.subr.bf16.mxu0 0
        %1604 = vmatpush1.bf16.msra.mxu0 %v1419
        %1605 = vmatprep.subr.bf16.mxu0 0
        %1606 = vmatpush1.bf16.msra.mxu0 %v1420
        %1607 = vmatprep.subr.bf16.mxu0 0
        %1608 = vmatpush1.bf16.msra.mxu0 %v1421
        %1609 = vmatprep.subr.bf16.mxu0 0
        %1610 = vmatpush1.bf16.msra.mxu0 %v1422
        %1611 = vmatprep.subr.bf16.mxu0 0
        %1612 = vmatpush1.bf16.msra.mxu0 %v1423
        %1613 = vmatprep.subr.bf16.mxu0 0
        %1614 = vmatpush1.bf16.msra.mxu0 %v1424
        %1615 = vmatprep.subr.bf16.mxu0 0
        %1616 = vmatpush1.bf16.msra.mxu0 %v1425
        %1617 = vmatprep.subr.bf16.mxu0 0
        %1618 = vmatpush1.bf16.msra.mxu0 %v1426
        %1619 = vmatprep.mubr.bf16.mxu0 %v1524
        %1620 = vmatmul.mubr.bf16.gmra.mrb[0].mxu0 %v1523
        %v1621 = vpop.f32.mrb[0].mxu0
        %v1622 = vadd.f32 0.0, %v1621
        %v1623 = vpop.f32.mrb[0].mxu0
        %v1624 = vpop.f32.mrb[0].mxu0
        %v1625 = vadd.f32 0.0, %v1624
        %v1626 = vpop.f32.mrb[0].mxu0
        %1627 = vmatprep.mubr.bf16.mxu0 %v1526
        %1628 = vmatmul.mubr.bf16.gmra.mrb[0].mxu0 %v1525
        %v1629 = vpop.f32.mrb[0].mxu0
        %v1630 = vadd.f32 0.0, %v1629
        %v1631 = vpop.f32.mrb[0].mxu0
        %v1632 = vpop.f32.mrb[0].mxu0
        %v1633 = vadd.f32 0.0, %v1632
        %v1634 = vpop.f32.mrb[0].mxu0
        %1635 = vmatprep.mubr.bf16.mxu0 %v1528
        %1636 = vmatmul.mubr.bf16.gmra.mrb[0].mxu0 %v1527
        %v1637 = vpop.f32.mrb[0].mxu0
        %v1638 = vadd.f32 0.0, %v1637
        %v1639 = vpop.f32.mrb[0].mxu0
        %v1640 = vpop.f32.mrb[0].mxu0
        %v1641 = vadd.f32 0.0, %v1640
        %v1642 = vpop.f32.mrb[0].mxu0
        %1643 = vmatprep.mubr.bf16.mxu0 %v1530
        %1644 = vmatmul.mubr.bf16.gmra.mrb[0].mxu0 %v1529
        %v1645 = vpop.f32.mrb[0].mxu0
        %v1646 = vadd.f32 0.0, %v1645
        %v1647 = vpop.f32.mrb[0].mxu0
        %v1648 = vpop.f32.mrb[0].mxu0
        %v1649 = vadd.f32 0.0, %v1648
        %v1650 = vpop.f32.mrb[0].mxu0
        %1651 = vmatprep.mubr.bf16.mxu0 %v1532
        %1652 = vmatmul.mubr.bf16.gmra.mrb[0].mxu0 %v1531
        %v1653 = vpop.f32.mrb[0].mxu0
        %v1654 = vadd.f32 0.0, %v1653
        %v1655 = vpop.f32.mrb[0].mxu0
        %v1656 = vpop.f32.mrb[0].mxu0
        %v1657 = vadd.f32 0.0, %v1656
        %v1658 = vpop.f32.mrb[0].mxu0
        %1659 = vmatprep.mubr.bf16.mxu0 %v1534
        %1660 = vmatmul.mubr.bf16.gmra.mrb[0].mxu0 %v1533
        %v1661 = vpop.f32.mrb[0].mxu0
        %v1662 = vadd.f32 0.0, %v1661
        %v1663 = vpop.f32.mrb[0].mxu0
        %v1664 = vpop.f32.mrb[0].mxu0
        %v1665 = vadd.f32 0.0, %v1664
        %v1666 = vpop.f32.mrb[0].mxu0
        %1667 = vmatprep.mubr.bf16.mxu0 %v1536
        %1668 = vmatmul.mubr.bf16.gmra.mrb[0].mxu0 %v1535
        %v1669 = vpop.f32.mrb[0].mxu0
        %v1670 = vadd.f32 0.0, %v1669
        %v1671 = vpop.f32.mrb[0].mxu0
        %v1672 = vpop.f32.mrb[0].mxu0
        %v1673 = vadd.f32 0.0, %v1672
        %v1674 = vpop.f32.mrb[0].mxu0
        %1675 = vmatprep.mubr.bf16.mxu0 %v1538
        %1676 = vmatmul.mubr.bf16.gmra.mrb[0].mxu0 %v1537
        %v1677 = vpop.f32.mrb[0].mxu0
        %v1678 = vadd.f32 0.0, %v1677
        %v1679 = vpop.f32.mrb[0].mxu0
        %v1680 = vpop.f32.mrb[0].mxu0
        %v1681 = vadd.f32 0.0, %v1680
        %v1682 = vpop.f32.mrb[0].mxu0
        %1683 = vmatprep.mubr.bf16.mxu0 %v1540
        %1684 = vmatmul.mubr.bf16.gmra.mrb[0].mxu0 %v1539
        %v1685 = vpop.f32.mrb[0].mxu0
        %v1686 = vadd.f32 0.0, %v1685
        %v1687 = vpop.f32.mrb[0].mxu0
        %v1688 = vpop.f32.mrb[0].mxu0
        %v1689 = vadd.f32 0.0, %v1688
        %v1690 = vpop.f32.mrb[0].mxu0
        %1691 = vmatprep.mubr.bf16.mxu0 %v1542
        %1692 = vmatmul.mubr.bf16.gmra.mrb[0].mxu0 %v1541
        %v1693 = vpop.f32.mrb[0].mxu0
        %v1694 = vadd.f32 0.0, %v1693
        %v1695 = vpop.f32.mrb[0].mxu0
        %v1696 = vpop.f32.mrb[0].mxu0
        %v1697 = vadd.f32 0.0, %v1696
        %v1698 = vpop.f32.mrb[0].mxu0
        %1699 = vmatprep.mubr.bf16.mxu0 %v1544
        %1700 = vmatmul.mubr.bf16.gmra.mrb[0].mxu0 %v1543
        %v1701 = vpop.f32.mrb[0].mxu0
        %v1702 = vadd.f32 0.0, %v1701
        %v1703 = vpop.f32.mrb[0].mxu0
        %v1704 = vpop.f32.mrb[0].mxu0
        %v1705 = vadd.f32 0.0, %v1704
        %v1706 = vpop.f32.mrb[0].mxu0
        %1707 = vmatprep.mubr.bf16.mxu0 %v1546
        %1708 = vmatmul.mubr.bf16.gmra.mrb[0].mxu0 %v1545
        %v1709 = vpop.f32.mrb[0].mxu0
        %v1710 = vadd.f32 0.0, %v1709
        %v1711 = vpop.f32.mrb[0].mxu0
        %v1712 = vpop.f32.mrb[0].mxu0
        %v1713 = vadd.f32 0.0, %v1712
        %v1714 = vpop.f32.mrb[0].mxu0
        %1715 = vmatprep.mubr.bf16.mxu0 %v1548
        %1716 = vmatmul.mubr.bf16.gmra.mrb[0].mxu0 %v1547
        %v1717 = vpop.f32.mrb[0].mxu0
        %v1718 = vadd.f32 0.0, %v1717
        %v1719 = vpop.f32.mrb[0].mxu0
        %v1720 = vpop.f32.mrb[0].mxu0
        %v1721 = vadd.f32 0.0, %v1720
        %v1722 = vpop.f32.mrb[0].mxu0
        %1723 = vmatprep.mubr.bf16.mxu0 %v1550
        %1724 = vmatmul.mubr.bf16.gmra.mrb[0].mxu0 %v1549
        %v1725 = vpop.f32.mrb[0].mxu0
        %v1726 = vadd.f32 0.0, %v1725
        %v1727 = vpop.f32.mrb[0].mxu0
        %v1728 = vpop.f32.mrb[0].mxu0
        %v1729 = vadd.f32 0.0, %v1728
        %v1730 = vpop.f32.mrb[0].mxu0
        %1731 = vmatprep.mubr.bf16.mxu0 %v1552
        %1732 = vmatmul.mubr.bf16.gmra.mrb[0].mxu0 %v1551
        %v1733 = vpop.f32.mrb[0].mxu0
        %v1734 = vadd.f32 0.0, %v1733
        %v1735 = vpop.f32.mrb[0].mxu0
        %v1736 = vpop.f32.mrb[0].mxu0
        %v1737 = vadd.f32 0.0, %v1736
        %v1738 = vpop.f32.mrb[0].mxu0
        %1739 = vmatprep.mubr.bf16.mxu0 %v1554
        %1740 = vmatmul.mubr.bf16.gmra.mrb[0].mxu0 %v1553
        %v1741 = vpop.f32.mrb[0].mxu0
        %v1742 = vadd.f32 0.0, %v1741
        %v1743 = vpop.f32.mrb[0].mxu0
        %v1744 = vpop.f32.mrb[0].mxu0
        %v1745 = vadd.f32 0.0, %v1744
        %v1746 = vpop.f32.mrb[0].mxu0
        %1747 = vdwg.mxu0
        %v1748 = vld [vmem:[%s175] sm:$0xff]
        %v1749 = vld [vmem:[%s175 + $0x8] sm:$0xff]
        %v1750 = vld [vmem:[%s175 + $0x10] sm:$0xff]
        %v1751 = vld [vmem:[%s175 + $0x18] sm:$0xff]
        %v1752 = vld [vmem:[%s175 + $0x20] sm:$0xff]
        %v1753 = vld [vmem:[%s175 + $0x28] sm:$0xff]
        %v1754 = vld [vmem:[%s175 + $0x30] sm:$0xff]
        %v1755 = vld [vmem:[%s175 + $0x38] sm:$0xff]
        %v1756 = vld [vmem:[%s175 + $0x40] sm:$0xff]
        %v1757 = vld [vmem:[%s175 + $0x48] sm:$0xff]
        %v1758 = vld [vmem:[%s175 + $0x50] sm:$0xff]
        %v1759 = vld [vmem:[%s175 + $0x58] sm:$0xff]
        %v1760 = vld [vmem:[%s175 + $0x60] sm:$0xff]
        %v1761 = vld [vmem:[%s175 + $0x68] sm:$0xff]
        %v1762 = vld [vmem:[%s175 + $0x70] sm:$0xff]
        %v1763 = vld [vmem:[%s175 + $0x78] sm:$0xff]
        %v1764 = vld [vmem:[%s175 + $0x80] sm:$0xff]
        %v1765 = vld [vmem:[%s175 + $0x88] sm:$0xff]
        %v1766 = vld [vmem:[%s175 + $0x90] sm:$0xff]
        %v1767 = vld [vmem:[%s175 + $0x98] sm:$0xff]
        %v1768 = vld [vmem:[%s175 + $0xa0] sm:$0xff]
        %v1769 = vld [vmem:[%s175 + $0xa8] sm:$0xff]
        %v1770 = vld [vmem:[%s175 + $0xb0] sm:$0xff]
        %v1771 = vld [vmem:[%s175 + $0xb8] sm:$0xff]
        %v1772 = vld [vmem:[%s175 + $0xc0] sm:$0xff]
        %v1773 = vld [vmem:[%s175 + $0xc8] sm:$0xff]
        %v1774 = vld [vmem:[%s175 + $0xd0] sm:$0xff]
        %v1775 = vld [vmem:[%s175 + $0xd8] sm:$0xff]
        %v1776 = vld [vmem:[%s175 + $0xe0] sm:$0xff]
        %v1777 = vld [vmem:[%s175 + $0xe8] sm:$0xff]
        %v1778 = vld [vmem:[%s175 + $0xf0] sm:$0xff]
        %v1779 = vld [vmem:[%s175 + $0xf8] sm:$0xff]
        %v1780 = vadd.f32 %v1748, %v1622
        %v1781 = vadd.f32 %v1749, %v1625
        %v1782 = vadd.f32 %v1750, %v1630
        %v1783 = vadd.f32 %v1751, %v1633
        %v1784 = vadd.f32 %v1752, %v1638
        %v1785 = vadd.f32 %v1753, %v1641
        %v1786 = vadd.f32 %v1754, %v1646
        %v1787 = vadd.f32 %v1755, %v1649
        %v1788 = vadd.f32 %v1756, %v1654
        %v1789 = vadd.f32 %v1757, %v1657
        %v1790 = vadd.f32 %v1758, %v1662
        %v1791 = vadd.f32 %v1759, %v1665
        %v1792 = vadd.f32 %v1760, %v1670
        %v1793 = vadd.f32 %v1761, %v1673
        %v1794 = vadd.f32 %v1762, %v1678
        %v1795 = vadd.f32 %v1763, %v1681
        %v1796 = vadd.f32 %v1764, %v1686
        %v1797 = vadd.f32 %v1765, %v1689
        %v1798 = vadd.f32 %v1766, %v1694
        %v1799 = vadd.f32 %v1767, %v1697
        %v1800 = vadd.f32 %v1768, %v1702
        %v1801 = vadd.f32 %v1769, %v1705
        %v1802 = vadd.f32 %v1770, %v1710
        %v1803 = vadd.f32 %v1771, %v1713
        %v1804 = vadd.f32 %v1772, %v1718
        %v1805 = vadd.f32 %v1773, %v1721
        %v1806 = vadd.f32 %v1774, %v1726
        %v1807 = vadd.f32 %v1775, %v1729
        %v1808 = vadd.f32 %v1776, %v1734
        %v1809 = vadd.f32 %v1777, %v1737
        %v1810 = vadd.f32 %v1778, %v1742
        %v1811 = vadd.f32 %v1779, %v1745
        %1812 = vst [vmem:[%s175] sm:$0xff] %v1780
        %1813 = vst [vmem:[%s175 + $0x8] sm:$0xff] %v1781
        %1814 = vst [vmem:[%s175 + $0x10] sm:$0xff] %v1782
        %1815 = vst [vmem:[%s175 + $0x18] sm:$0xff] %v1783
        %1816 = vst [vmem:[%s175 + $0x20] sm:$0xff] %v1784
        %1817 = vst [vmem:[%s175 + $0x28] sm:$0xff] %v1785
        %1818 = vst [vmem:[%s175 + $0x30] sm:$0xff] %v1786
        %1819 = vst [vmem:[%s175 + $0x38] sm:$0xff] %v1787
        %1820 = vst [vmem:[%s175 + $0x40] sm:$0xff] %v1788
        %1821 = vst [vmem:[%s175 + $0x48] sm:$0xff] %v1789
        %1822 = vst [vmem:[%s175 + $0x50] sm:$0xff] %v1790
        %1823 = vst [vmem:[%s175 + $0x58] sm:$0xff] %v1791
        %1824 = vst [vmem:[%s175 + $0x60] sm:$0xff] %v1792
        %1825 = vst [vmem:[%s175 + $0x68] sm:$0xff] %v1793
        %1826 = vst [vmem:[%s175 + $0x70] sm:$0xff] %v1794
        %1827 = vst [vmem:[%s175 + $0x78] sm:$0xff] %v1795
        %1828 = vst [vmem:[%s175 + $0x80] sm:$0xff] %v1796
        %1829 = vst [vmem:[%s175 + $0x88] sm:$0xff] %v1797
        %1830 = vst [vmem:[%s175 + $0x90] sm:$0xff] %v1798
        %1831 = vst [vmem:[%s175 + $0x98] sm:$0xff] %v1799
        %1832 = vst [vmem:[%s175 + $0xa0] sm:$0xff] %v1800
        %1833 = vst [vmem:[%s175 + $0xa8] sm:$0xff] %v1801
        %1834 = vst [vmem:[%s175 + $0xb0] sm:$0xff] %v1802
        %1835 = vst [vmem:[%s175 + $0xb8] sm:$0xff] %v1803
        %1836 = vst [vmem:[%s175 + $0xc0] sm:$0xff] %v1804
        %1837 = vst [vmem:[%s175 + $0xc8] sm:$0xff] %v1805
        %1838 = vst [vmem:[%s175 + $0xd0] sm:$0xff] %v1806
        %1839 = vst [vmem:[%s175 + $0xd8] sm:$0xff] %v1807
        %1840 = vst [vmem:[%s175 + $0xe0] sm:$0xff] %v1808
        %1841 = vst [vmem:[%s175 + $0xe8] sm:$0xff] %v1809
        %1842 = vst [vmem:[%s175 + $0xf0] sm:$0xff] %v1810
        %1843 = vst [vmem:[%s175 + $0xf8] sm:$0xff] %v1811
        %v1844 = vpack.c.bf16 %v1625, %v1622
        %v1845 = vpack.c.bf16 %v1633, %v1630
        %v1846 = vpack.c.bf16 %v1641, %v1638
        %v1847 = vpack.c.bf16 %v1649, %v1646
        %v1848 = vpack.c.bf16 %v1657, %v1654
        %v1849 = vpack.c.bf16 %v1665, %v1662
        %v1850 = vpack.c.bf16 %v1673, %v1670
        %v1851 = vpack.c.bf16 %v1681, %v1678
        %v1852 = vpack.c.bf16 %v1689, %v1686
        %v1853 = vpack.c.bf16 %v1697, %v1694
        %v1854 = vpack.c.bf16 %v1705, %v1702
        %v1855 = vpack.c.bf16 %v1713, %v1710
        %v1856 = vpack.c.bf16 %v1721, %v1718
        %v1857 = vpack.c.bf16 %v1729, %v1726
        %v1858 = vpack.c.bf16 %v1737, %v1734
        %v1859 = vpack.c.bf16 %v1745, %v1742
        %1860 = vst [vmem:[#allocation2] sm:$0xff] %v1844
        %1861 = vst [vmem:[#allocation2 + $0x8] sm:$0xff] %v1845
        %1862 = vst [vmem:[#allocation2 + $0x10] sm:$0xff] %v1846
        %1863 = vst [vmem:[#allocation2 + $0x18] sm:$0xff] %v1847
        %1864 = vst [vmem:[#allocation2 + $0x20] sm:$0xff] %v1848
        %1865 = vst [vmem:[#allocation2 + $0x28] sm:$0xff] %v1849
        %1866 = vst [vmem:[#allocation2 + $0x30] sm:$0xff] %v1850
        %1867 = vst [vmem:[#allocation2 + $0x38] sm:$0xff] %v1851
        %1868 = vst [vmem:[#allocation2 + $0x40] sm:$0xff] %v1852
        %1869 = vst [vmem:[#allocation2 + $0x48] sm:$0xff] %v1853
        %1870 = vst [vmem:[#allocation2 + $0x50] sm:$0xff] %v1854
        %1871 = vst [vmem:[#allocation2 + $0x58] sm:$0xff] %v1855
        %1872 = vst [vmem:[#allocation2 + $0x60] sm:$0xff] %v1856
        %1873 = vst [vmem:[#allocation2 + $0x68] sm:$0xff] %v1857
        %1874 = vst [vmem:[#allocation2 + $0x70] sm:$0xff] %v1858
        %1875 = vst [vmem:[#allocation2 + $0x78] sm:$0xff] %v1859
        %v1876 = vld [vmem:[%s175] sm:$0xff]
        %v1877 = vld [vmem:[%s175 + $0x8] sm:$0xff]
        %v1878 = vld [vmem:[%s175 + $0x10] sm:$0xff]
        %v1879 = vld [vmem:[%s175 + $0x18] sm:$0xff]
        %v1880 = vld [vmem:[%s175 + $0x20] sm:$0xff]
        %v1881 = vld [vmem:[%s175 + $0x28] sm:$0xff]
        %v1882 = vld [vmem:[%s175 + $0x30] sm:$0xff]
        %v1883 = vld [vmem:[%s175 + $0x38] sm:$0xff]
        %v1884 = vld [vmem:[%s175 + $0x40] sm:$0xff]
        %v1885 = vld [vmem:[%s175 + $0x48] sm:$0xff]
        %v1886 = vld [vmem:[%s175 + $0x50] sm:$0xff]
        %v1887 = vld [vmem:[%s175 + $0x58] sm:$0xff]
        %v1888 = vld [vmem:[%s175 + $0x60] sm:$0xff]
        %v1889 = vld [vmem:[%s175 + $0x68] sm:$0xff]
        %v1890 = vld [vmem:[%s175 + $0x70] sm:$0xff]
        %v1891 = vld [vmem:[%s175 + $0x78] sm:$0xff]
        %v1892 = vld [vmem:[%s175 + $0x80] sm:$0xff]
        %v1893 = vld [vmem:[%s175 + $0x88] sm:$0xff]
        %v1894 = vld [vmem:[%s175 + $0x90] sm:$0xff]
        %v1895 = vld [vmem:[%s175 + $0x98] sm:$0xff]
        %v1896 = vld [vmem:[%s175 + $0xa0] sm:$0xff]
        %v1897 = vld [vmem:[%s175 + $0xa8] sm:$0xff]
        %v1898 = vld [vmem:[%s175 + $0xb0] sm:$0xff]
        %v1899 = vld [vmem:[%s175 + $0xb8] sm:$0xff]
        %v1900 = vld [vmem:[%s175 + $0xc0] sm:$0xff]
        %v1901 = vld [vmem:[%s175 + $0xc8] sm:$0xff]
        %v1902 = vld [vmem:[%s175 + $0xd0] sm:$0xff]
        %v1903 = vld [vmem:[%s175 + $0xd8] sm:$0xff]
        %v1904 = vld [vmem:[%s175 + $0xe0] sm:$0xff]
        %v1905 = vld [vmem:[%s175 + $0xe8] sm:$0xff]
        %v1906 = vld [vmem:[%s175 + $0xf0] sm:$0xff]
        %v1907 = vld [vmem:[%s175 + $0xf8] sm:$0xff]
        %v1908 = vmul.f32 %v1876, 0.25
        %v1909 = vmul.f32 %v1877, 0.25
        %v1910 = vmul.f32 %v1878, 0.25
        %v1911 = vmul.f32 %v1879, 0.25
        %v1912 = vmul.f32 %v1880, 0.25
        %v1913 = vmul.f32 %v1881, 0.25
        %v1914 = vmul.f32 %v1882, 0.25
        %v1915 = vmul.f32 %v1883, 0.25
        %v1916 = vmul.f32 %v1884, 0.25
        %v1917 = vmul.f32 %v1885, 0.25
        %v1918 = vmul.f32 %v1886, 0.25
        %v1919 = vmul.f32 %v1887, 0.25
        %v1920 = vmul.f32 %v1888, 0.25
        %v1921 = vmul.f32 %v1889, 0.25
        %v1922 = vmul.f32 %v1890, 0.25
        %v1923 = vmul.f32 %v1891, 0.25
        %v1924 = vmul.f32 %v1892, 0.25
        %v1925 = vmul.f32 %v1893, 0.25
        %v1926 = vmul.f32 %v1894, 0.25
        %v1927 = vmul.f32 %v1895, 0.25
        %v1928 = vmul.f32 %v1896, 0.25
        %v1929 = vmul.f32 %v1897, 0.25
        %v1930 = vmul.f32 %v1898, 0.25
        %v1931 = vmul.f32 %v1899, 0.25
        %v1932 = vmul.f32 %v1900, 0.25
        %v1933 = vmul.f32 %v1901, 0.25
        %v1934 = vmul.f32 %v1902, 0.25
        %v1935 = vmul.f32 %v1903, 0.25
        %v1936 = vmul.f32 %v1904, 0.25
        %v1937 = vmul.f32 %v1905, 0.25
        %v1938 = vmul.f32 %v1906, 0.25
        %v1939 = vmul.f32 %v1907, 0.25
        %1940 = vst [vmem:[%s175] sm:$0xff] %v1908
        %1941 = vst [vmem:[%s175 + $0x8] sm:$0xff] %v1909
        %1942 = vst [vmem:[%s175 + $0x10] sm:$0xff] %v1910
        %1943 = vst [vmem:[%s175 + $0x18] sm:$0xff] %v1911
        %1944 = vst [vmem:[%s175 + $0x20] sm:$0xff] %v1912
        %1945 = vst [vmem:[%s175 + $0x28] sm:$0xff] %v1913
        %1946 = vst [vmem:[%s175 + $0x30] sm:$0xff] %v1914
        %1947 = vst [vmem:[%s175 + $0x38] sm:$0xff] %v1915
        %1948 = vst [vmem:[%s175 + $0x40] sm:$0xff] %v1916
        %1949 = vst [vmem:[%s175 + $0x48] sm:$0xff] %v1917
        %1950 = vst [vmem:[%s175 + $0x50] sm:$0xff] %v1918
        %1951 = vst [vmem:[%s175 + $0x58] sm:$0xff] %v1919
        %1952 = vst [vmem:[%s175 + $0x60] sm:$0xff] %v1920
        %1953 = vst [vmem:[%s175 + $0x68] sm:$0xff] %v1921
        %1954 = vst [vmem:[%s175 + $0x70] sm:$0xff] %v1922
        %1955 = vst [vmem:[%s175 + $0x78] sm:$0xff] %v1923
        %1956 = vst [vmem:[%s175 + $0x80] sm:$0xff] %v1924
        %1957 = vst [vmem:[%s175 + $0x88] sm:$0xff] %v1925
        %1958 = vst [vmem:[%s175 + $0x90] sm:$0xff] %v1926
        %1959 = vst [vmem:[%s175 + $0x98] sm:$0xff] %v1927
        %1960 = vst [vmem:[%s175 + $0xa0] sm:$0xff] %v1928
        %1961 = vst [vmem:[%s175 + $0xa8] sm:$0xff] %v1929
        %1962 = vst [vmem:[%s175 + $0xb0] sm:$0xff] %v1930
        %1963 = vst [vmem:[%s175 + $0xb8] sm:$0xff] %v1931
        %1964 = vst [vmem:[%s175 + $0xc0] sm:$0xff] %v1932
        %1965 = vst [vmem:[%s175 + $0xc8] sm:$0xff] %v1933
        %1966 = vst [vmem:[%s175 + $0xd0] sm:$0xff] %v1934
        %1967 = vst [vmem:[%s175 + $0xd8] sm:$0xff] %v1935
        %1968 = vst [vmem:[%s175 + $0xe0] sm:$0xff] %v1936
        %1969 = vst [vmem:[%s175 + $0xe8] sm:$0xff] %v1937
        %1970 = vst [vmem:[%s175 + $0xf0] sm:$0xff] %v1938
        %1971 = vst [vmem:[%s175 + $0xf8] sm:$0xff] %v1939
        %s1972 = sand.u32 %s75, 1
        %s1973 = scalar_lea.sflag [#allocation5], %s1972
        %s1974 = sand.u32 %s75, 1
        %s1975 = smul.addr %s1974, 256
        %s1976 = scalar_lea.vmem [#allocation8], %s1975
        // Predicated region
        $region37: #{tpu_custom_call.1} parent=27 // pred_check
          %p1977 = pneg %p85
        $region38: #{tpu_custom_call.1} parent=27 // pred_check_branch
          %1979 = sbr.rel (%p1977) target = $region40
        $region39: #{tpu_custom_call.1} parent=27 // pred_region
          %s1981 = ssub.s32 4096, 4096
          %1982 = vsyncadd %s1973, %s1981
          %s1983 = smul.addr %s20, 128
          %s1984 = scalar_lea.hbm %s2, %s1983
          %s1985 = sshll.u32 %s1976, 4
          %s1986 = int_to_ptr.vmem [resolvable:$true] %s1985
          %1991 = dma.vmem_to_hbm [thread:$0]  %s1986, 4096, %s1984, %s1973, 128, 256, 8
        $region40: #{tpu_custom_call.1} parent=27 // pred_fallthru
          _
      $region28: #{tpu_custom_call.1} parent=5 // pred_fallthru
        _
      %p1992 = scmp.le.s32.totalorder 2, %s15
      // Predicated region
      $region41: #{tpu_custom_call.1} parent=5 // pred_check
        %p1993 = pneg %p1992
      $region42: #{tpu_custom_call.1} parent=5 // pred_check_branch
        %1995 = sbr.rel (%p1993) target = $region44
      $region43: #{tpu_custom_call.1} parent=5 // pred_region
        %s1996 = ssub.s32 %s15, 2
        // Predicated region
        $region45: #{tpu_custom_call.1} parent=43 // pred_check
          %p1997 = pneg %p91
        $region46: #{tpu_custom_call.1} parent=43 // pred_check_branch
          %1999 = sbr.rel (%p1997) target = $region48
        $region47: #{tpu_custom_call.1} parent=43 // pred_region
          %s2000 = sand.u32 %s76, 1
          %s2001 = scalar_lea.sflag [#allocation5], %s2000
          %s2002 = sand.u32 %s76, 1
          %s2003 = smul.addr %s2002, 256
          %s2004 = scalar_lea.vmem [#allocation8], %s2003
          %2005 = dma.done %s2001, 4096
        $region48: #{tpu_custom_call.1} parent=43 // pred_fallthru
          _
      $region44: #{tpu_custom_call.1} parent=5 // pred_fallthru
        _
    $region6: #{tpu_custom_call.1} parent=1 // loop_footer
      %s19 = sadd.s32 1, %s15
    $region7: #{tpu_custom_call.1} parent=1 // loop_footer_branch
      %14 = sbr.rel target = $region3
    $region8: #{tpu_custom_call.1} parent=1 // loop_exit
      _
    %2006 = vsyncpa [#allocation4], 1
    %s2007 = scalar_lea.sflag [#allocation4], 1
    %2008 = vsyncpa %s2007, 1
    %2009 = vsyncpa [#allocation7], 1
    %s2010 = scalar_lea.sflag [#allocation7], 1
    %2011 = vsyncpa %s2010, 1
    %2012 = vsyncpa [#allocation5], 1
    %s2013 = scalar_lea.sflag [#allocation5], 1
    %2014 = vsyncpa %s2013, 1

</llo_original>
